<compile_context>
chip_gen: v7x
topology: tpu7x:2x2x1
jax: 0.10.0
libtpu: 0.0.40
codegen_flags: <defaults>
</compile_context>

<pallas_src>
import functools
import math

import numpy as np
import jax
import jax.numpy as jnp
from jax.experimental import pallas as pl
from jax.experimental.pallas import tpu as pltpu


# ----------------------------------------------------------------------------
# Host-side (static) helpers
# ----------------------------------------------------------------------------
def _relative_position_index_np(wh, ww):
    coords = np.stack(np.meshgrid(np.arange(wh), np.arange(ww), indexing="ij"))
    cf = coords.reshape(2, -1)                                  # (2, wd)
    rel = cf[:, :, None] - cf[:, None, :]                       # (2, wd, wd)
    rel = rel.transpose(1, 2, 0).astype(np.int64)               # (wd, wd, 2)
    rel[:, :, 0] += wh - 1
    rel[:, :, 1] += ww - 1
    rel[:, :, 0] *= 2 * ww - 1
    return rel.sum(-1)                                          # (wd, wd)


def _window_partition_np(x, wh, ww):
    B, H, W, C = x.shape
    nwh, nww = H // wh, W // ww
    x = x.reshape(B, nwh, wh, nww, ww, C).transpose(0, 1, 3, 2, 4, 5)
    return x.reshape(B, nwh * nww, wh * ww, C)


def _create_mask_np(H, W, wh, ww, sh, sw):
    # Exactly mirrors SWMSA.create_mask.
    image_mask = np.zeros((1, H, W, 1), np.float32)
    h_slices = (slice(0, -wh), slice(-wh, -sh), slice(-sh, None))
    w_slices = (slice(0, -ww), slice(-ww, -sw), slice(-sw, None))
    cnt = 0
    for hs in h_slices:
        for ws in w_slices:
            image_mask[:, hs, ws, :] = cnt
            cnt += 1
    mw = _window_partition_np(image_mask, wh, ww).reshape(1, -1, wh * ww)  # (1,nw,wd)
    m = mw[:, :, None, :] - mw[:, :, :, None]                              # (1,nw,wd,wd)
    m = np.where(m != 0, np.float32(-100.0), np.float32(0.0))
    return m[0]                                                            # (nw,wd,wd)


def _token_perms_np(H, W, wh, ww, sh, sw):
    """perm_in[m]: source token of x for window-major position m of the
    shifted image (== cycle_shift + window_partition as one gather).
    perm_out[n]: window-major position whose attention output lands at final
    token n (== patch_format + reverse_cycle_shift as one gather)."""
    nww = W // ww
    wd = wh * ww
    N = H * W

    m = np.arange(N)
    win = m // wd
    p = m % wd
    i_wr = win // nww
    j = win % nww
    r = p // ww
    c = p % ww
    hh = i_wr * wh + r                      # row in the shifted image
    wcol = j * ww + c                       # col in the shifted image
    perm_in = ((hh + sh) % H) * W + ((wcol + sw) % W)

    n = np.arange(N)
    h = n // W
    w = n % W
    perm_out = ((h - sh) % H) * W + ((w - sw) % W)
    return perm_in.astype(np.int32), perm_out.astype(np.int32)


def _pick_row_block(nwh, row_tokens, num_heads, embed_dim,
                    vmem_budget_bytes=40 << 20):
    """Largest whole number of window-rows per grid step that fits the VMEM
    budget (double-buffered x/prior/out tiles + resident weights).

    Bigger T fills the MXU M dim and amortizes the ~0.35us per-step fixed
    cost; the explicit byte budget keeps v7x (64 MiB physical VMEM, 32 MiB
    default scoped) safe while letting v5e/v6e use the same tile."""
    best = 1
    for rb in range(1, nwh + 1):
        if nwh % rb:
            continue
        T = rb * row_tokens
        est = 2 * (T * embed_dim * 2            # x tile (bf16), double-buffered
                   + num_heads * T * T * 2      # prior tile (bf16)
                   + T * embed_dim * 4)         # out tile (f32)
        est += (embed_dim * 3 * embed_dim * 2 + 3 * embed_dim * 4   # qkv w/b
                + embed_dim * embed_dim * 2 + embed_dim * 4)        # proj w/b
        if est <= vmem_budget_bytes:
            best = rb
    return best


# ----------------------------------------------------------------------------
# Pallas kernel: fused qkv projection + masked window attention + output proj
# ----------------------------------------------------------------------------
def _swin_attn_kernel(x_ref, w_ref, b_ref, pw_ref, pb_ref, prior_ref, o_ref,
                      *, num_heads, head_dim):
    nh, hd = num_heads, head_dim
    E = nh * hd
    x = x_ref[0, 0]                                   # (T, E) bf16, lane-dense

    # fused block-diagonal q/k/v projection: one (T,E)@(E,3E) bf16 MXU matmul,
    # f32 accumulation; 1/sqrt(hd) already folded into the q columns/bias.
    qkv = jnp.dot(x, w_ref[...], preferred_element_type=jnp.float32) + b_ref[...]
    q = qkv[:, :E].astype(jnp.bfloat16)
    k = qkv[:, E:2 * E].astype(jnp.bfloat16)
    v = qkv[:, 2 * E:].astype(jnp.bfloat16)

    # head-batched (nh, T, hd) operands for the two batched MXU matmuls
    qb = jnp.stack([q[:, h * hd:(h + 1) * hd] for h in range(nh)], axis=0)
    kb = jnp.stack([k[:, h * hd:(h + 1) * hd] for h in range(nh)], axis=0)
    vb = jnp.stack([v[:, h * hd:(h + 1) * hd] for h in range(nh)], axis=0)

    # (already scaled) scores + additive prior; softmax math stays f32
    s = jax.lax.dot_general(qb, kb, (((2,), (2,)), ((0,), (0,))),
                            preferred_element_type=jnp.float32)
    s = s + prior_ref[0].astype(jnp.float32)
    s = s - jnp.max(s, axis=-1, keepdims=True)
    p = jnp.exp(s)
    p = p * pl.reciprocal(jnp.sum(p, axis=-1, keepdims=True), approx=True)

    # batched PV over the head axis: (nh, T, hd)
    o = jax.lax.dot_general(p.astype(jnp.bfloat16), vb,
                            (((2,), (1,)), ((0,), (0,))),
                            preferred_element_type=jnp.float32)

    # merge heads back to lane-dense (T, E) and apply the fused output
    # projection (resident (E,E) weight) before the single full-tile store.
    oc = jnp.concatenate([o[h] for h in range(nh)], axis=-1).astype(jnp.bfloat16)
    y = jnp.dot(oc, pw_ref[...], preferred_element_type=jnp.float32) + pb_ref[...]
    o_ref[0, 0] = y.astype(o_ref.dtype)


def _swin_attention_pallas(xb, w_big, b_big, pw, pb, prior, *,
                           num_heads, head_dim):
    B, nblk, T, E = xb.shape
    nh = num_heads
    kernel = functools.partial(_swin_attn_kernel, num_heads=nh, head_dim=head_dim)

    if nblk >= 2:
        # Window-row axis OUTER, batch INNER: the (nh,T,T) prior block index is
        # constant across consecutive steps, so Pallas skips its re-DMA
        # (~B-fold HBM traffic saving for the biggest per-step operand), and
        # the outer parallel axis still has >=2 steps for v7x megacore.
        grid = (nblk, B)
        x_map = lambda i, b: (b, i, 0, 0)
        prior_map = lambda i, b: (i, 0, 0, 0)
    else:
        # Single window-row block: the prior never changes anyway; put B on
        # the outer parallel axis so both v7x TensorCores get work.
        grid = (B, nblk)
        x_map = lambda b, i: (b, i, 0, 0)
        prior_map = lambda b, i: (i, 0, 0, 0)
    const2 = lambda *_: (0, 0)

    return pl.pallas_call(
        kernel,
        out_shape=jax.ShapeDtypeStruct((B, nblk, T, E), jnp.float32),
        grid_spec=pltpu.PrefetchScalarGridSpec(
            num_scalar_prefetch=0,
            grid=grid,
            in_specs=[
                pl.BlockSpec((1, 1, T, E), x_map),        # tokens (bf16)
                pl.BlockSpec((E, 3 * E), const2),         # fused qkv weight (bf16, resident)
                pl.BlockSpec((1, 3 * E), const2),         # fused qkv bias (f32, resident)
                pl.BlockSpec((E, E), const2),             # proj weight^T (bf16, resident)
                pl.BlockSpec((1, E), const2),             # proj bias (f32, resident)
                pl.BlockSpec((1, nh, T, T), prior_map),   # additive prior (bf16)
            ],
            out_specs=pl.BlockSpec((1, 1, T, E), x_map),
        ),
        compiler_params=pltpu.CompilerParams(
            dimension_semantics=("parallel", "parallel"),
            vmem_limit_bytes=48 << 20),
    )(xb, w_big, b_big, pw, pb, prior)


# ----------------------------------------------------------------------------
# Full SWMSA forward (tiny host-side glue, hot paths in the Pallas kernel)
# ----------------------------------------------------------------------------
def swmsa_forward(x, qkv_w, qkv_b, proj_w, proj_b, rel_pos_table, *,
                  image_resolution, window_size, shift_size, num_heads):
    B, N, E = x.shape
    H, W = image_resolution
    wh, ww = window_size
    sh, sw = shift_size
    nh = num_heads
    hd = E // nh
    wd = wh * ww
    nwh, nww = H // wh, W // ww

    RB = _pick_row_block(nwh, wh * W, nh, E)   # window-rows per grid step
    nblk = nwh // RB
    T = RB * wh * W                            # tokens per grid step
    wpb = RB * nww                             # windows per grid step

    # ---- additive prior: rel-pos bias + shift mask + cross-window mask ----
    t_idx = np.arange(T)
    lw = t_idx // wd                           # local window id inside the block
    p = t_idx % wd                             # local position inside the window
    same_win = (lw[:, None] == lw[None, :])
    mask_np = _create_mask_np(H, W, wh, ww, sh, sw)            # (nw, wd, wd)
    gwin = np.arange(nblk)[:, None] * wpb + lw[None, :]        # (nblk, T)
    shift_part = mask_np[gwin[:, :, None], p[None, :, None], p[None, None, :]]
    cross = np.where(same_win, 0.0, -1e9).astype(np.float32)   # (T, T)
    prior_np = (shift_part + cross[None]).astype(np.float32)   # (nblk, T, T)

    rpi = _relative_position_index_np(wh, ww)                  # (wd, wd)
    bias = rel_pos_table[rpi.reshape(-1)].reshape(wd, wd, nh).transpose(2, 0, 1)
    bias_big = bias[:, p[:, None], p[None, :]]                 # (nh, T, T)
    prior = (bias_big[None] + jnp.asarray(prior_np)[:, None]).astype(jnp.bfloat16)
    # TODO(synk): rebuild the prior in-kernel from the resident O(nh*wd^2 + nw*wd^2)
    # bias/mask tables (tiled patterns + iota window-id compare) instead of
    # materializing the O(nblk*nh*T^2) tensor in HBM; matters once T grows.

    # ---- fused block-diagonal qkv weight (torch: y = x @ W.T + b), bf16,
    #      with the 1/sqrt(head_dim) attention scale folded into the q part --
    scale = 1.0 / math.sqrt(hd)
    eye = jnp.eye(nh, dtype=jnp.float32)
    w_big = jnp.concatenate(
        [jnp.kron(eye, qkv_w[:hd, :].T) * scale,
         jnp.kron(eye, qkv_w[hd:2 * hd, :].T),
         jnp.kron(eye, qkv_w[2 * hd:, :].T)], axis=1).astype(jnp.bfloat16)  # (E,3E)
    b_big = jnp.concatenate(
        [jnp.tile(qkv_b[:hd], nh) * scale,
         jnp.tile(qkv_b[hd:2 * hd], nh),
         jnp.tile(qkv_b[2 * hd:], nh)]).reshape(1, 3 * E)       # (1,3E) f32
    pw = proj_w.T.astype(jnp.bfloat16)                          # (E, E)
    pb = proj_b.reshape(1, E)                                   # (1, E) f32

    # ---- cyclic shift + window partition as ONE gather ----
    perm_in, perm_out = _token_perms_np(H, W, wh, ww, sh, sw)
    # TODO(synk): fold both token-permutation gathers into the kernel via
    # scalar-prefetched per-block row offsets + pltpu.roll for the intra-row
    # cyclic column shift (saves ~2 full (B,N,E) HBM passes per layer).
    xw = jnp.take(x, jnp.asarray(perm_in), axis=1)              # (B, N, E) window-major
    xb = xw.reshape(B, nblk, T, E).astype(jnp.bfloat16)

    # ---- batched window attention + fused output projection (Pallas) ----
    o = _swin_attention_pallas(xb, w_big, b_big, pw, pb, prior,
                               num_heads=nh, head_dim=hd)
    o = o.reshape(B, N, E)

    # ---- patch_format (window-major reinterpreted as spatial) + reverse shift
    o = jnp.take(o, jnp.asarray(perm_out), axis=1)              # (B, N, E)

    # proj + dropout(p=0.0) already applied inside the kernel (per-token Linear
    # commutes with the token permutation; dropout is the identity).
    return o


# ----------------------------------------------------------------------------
# Pure-JAX reference (mirrors the PyTorch module) for a sanity check
# ----------------------------------------------------------------------------
def swmsa_reference(x, qkv_w, qkv_b, proj_w, proj_b, rel_pos_table, *,
                    image_resolution, window_size, shift_size, num_heads):
    B, N, E = x.shape
    H, W = image_resolution
    wh, ww = window_size
    sh, sw = shift_size
    nh = num_heads
    hd = E // nh
    wd = wh * ww
    nwh, nww = H // wh, W // ww
    nw = nwh * nww

    xs = jnp.roll(x.reshape(B, H, W, E), shift=(-sh, -sw), axis=(1, 2))
    xw = xs.reshape(B, nwh, wh, nww, ww, E).transpose(0, 1, 3, 2, 4, 5)
    xw = xw.reshape(B, nw, wd, nh, hd).transpose(0, 1, 3, 2, 4)   # (B,nw,nh,wd,hd)

    qkv = jnp.einsum("bwhtd,ed->bwhte", xw, qkv_w) + qkv_b        # (B,nw,nh,wd,3hd)
    q, k, v = qkv[..., :hd], qkv[..., hd:2 * hd], qkv[..., 2 * hd:]
    s = jnp.einsum("bwhqd,bwhkd->bwhqk", q, k) / math.sqrt(hd)

    rpi = _relative_position_index_np(wh, ww)
    bias = rel_pos_table[rpi.reshape(-1)].reshape(wd, wd, nh).transpose(2, 0, 1)
    mask = jnp.asarray(_create_mask_np(H, W, wh, ww, sh, sw))     # (nw,wd,wd)
    s = s + bias[None, None] + mask[None, :, None]
    p = jax.nn.softmax(s, axis=-1)
    o = jnp.einsum("bwhqk,bwhkd->bwhqd", p, v)
    o = o.transpose(0, 1, 3, 2, 4).reshape(B, nw, wd, E).reshape(B, N, E)
    o = jnp.roll(o.reshape(B, H, W, E), shift=(sh, sw), axis=(1, 2)).reshape(B, N, E)
    return o @ proj_w.T + proj_b


# ----------------------------------------------------------------------------
if __name__ == "__main__":
    # Small SWMSA config: 8x8 tokens, window 2x2, 8 heads, embed_dim 128, shift 1
    B = 2
    H = W = 8
    window_size = 2
    num_heads = 8
    embed_dim = 128
    shift_size = 1
    hd = embed_dim // num_heads
    N = H * W

    key = jax.random.PRNGKey(0)
    kx, kq, kqb, kp, kpb, kt = jax.random.split(key, 6)

    x = jax.random.normal(kx, (B, N, embed_dim), jnp.float32)

    # Deterministic synthetic parameters (shapes as in the module's __init__).
    qkv_w = jax.random.normal(kq, (3 * hd, hd), jnp.float32) * 0.1     # Linear(hd, 3hd).weight
    qkv_b = jax.random.normal(kqb, (3 * hd,), jnp.float32) * 0.1
    proj_w = jax.random.normal(kp, (embed_dim, embed_dim), jnp.float32) * 0.05
    proj_b = jax.random.normal(kpb, (embed_dim,), jnp.float32) * 0.05
    rel_pos_table = jax.random.normal(
        kt, ((2 * window_size - 1) * (2 * window_size - 1), num_heads), jnp.float32) * 0.1

    cfg = dict(image_resolution=(H, W),
               window_size=(window_size, window_size),
               shift_size=(shift_size, shift_size),
               num_heads=num_heads)

    out = jax.block_until_ready(
        swmsa_forward(x, qkv_w, qkv_b, proj_w, proj_b, rel_pos_table, **cfg))
    ref = jax.block_until_ready(
        swmsa_reference(x, qkv_w, qkv_b, proj_w, proj_b, rel_pos_table, **cfg))

    assert out.shape == (B, N, embed_dim)
    assert bool(jnp.all(jnp.isfinite(out)))
    # Tolerance accounts for bf16 MXU operands (f32 accumulation) + approx
    # reciprocal in the softmax denominator.
    np.testing.assert_allclose(np.asarray(out), np.asarray(ref),
                               rtol=2e-2, atol=2e-2)

    print("KERNEL_OK")
</pallas_src>

<mosaic_0001>
module attributes {stable_mosaic.version = 11 : i64} {
  func.func @_swin_attn_kernel(%arg0: i32, %arg1: i32, %arg2: memref<1x1x64x128xbf16, #tpu.memory_space<vmem>>, %arg3: memref<128x384xbf16, #tpu.memory_space<vmem>>, %arg4: memref<1x384xf32, #tpu.memory_space<vmem>>, %arg5: memref<128x128xbf16, #tpu.memory_space<vmem>>, %arg6: memref<1x128xf32, #tpu.memory_space<vmem>>, %arg7: memref<1x8x64x64xbf16, #tpu.memory_space<vmem>>, %arg8: memref<1x1x64x128xf32, #tpu.memory_space<vmem>>) attributes {dimension_semantics = [#tpu.dimension_semantics<parallel>, #tpu.dimension_semantics<parallel>], iteration_bounds = array<i64: 2, 1>, scalar_prefetch = 0 : i64, scratch_operands = 0 : i64, tpu.core_type = #tpu.core_type<tc>, window_params = [{transform_indices = @transform_0, window_bounds = array<i64: 1, 1, 64, 128>}, {pipeline_mode = #tpu.pipeline_mode<synchronous>, transform_indices = @transform_1, window_bounds = array<i64: 128, 384>}, {pipeline_mode = #tpu.pipeline_mode<synchronous>, transform_indices = @transform_2, window_bounds = array<i64: 1, 384>}, {pipeline_mode = #tpu.pipeline_mode<synchronous>, transform_indices = @transform_3, window_bounds = array<i64: 128, 128>}, {pipeline_mode = #tpu.pipeline_mode<synchronous>, transform_indices = @transform_4, window_bounds = array<i64: 1, 128>}, {transform_indices = @transform_5, window_bounds = array<i64: 1, 8, 64, 64>}, {transform_indices = @transform_6, window_bounds = array<i64: 1, 1, 64, 128>}]} {
    %c0 = arith.constant 0 : index
    %c0_0 = arith.constant 0 : index
    %c0_1 = arith.constant 0 : index
    %c0_2 = arith.constant 0 : index
    %0 = vector.load %arg2[%c0, %c0_0, %c0_1, %c0_2] : memref<1x1x64x128xbf16, #tpu.memory_space<vmem>>, vector<1x1x64x128xbf16>
    %1 = vector.shape_cast %0 : vector<1x1x64x128xbf16> to vector<64x128xbf16>
    %c0_3 = arith.constant 0 : index
    %c0_4 = arith.constant 0 : index
    %2 = vector.load %arg3[%c0_3, %c0_4] : memref<128x384xbf16, #tpu.memory_space<vmem>>, vector<128x384xbf16>
    %cst = arith.constant dense<0.000000e+00> : vector<64x384xf32>
    %3 = tpu.matmul %1, %2, %cst {dimension_numbers = #tpu.dot_dimension_numbers<[1], [0], [0], [1], [0, 0, 1, 1], [], []>} : vector<64x128xbf16>, vector<128x384xbf16>, vector<64x384xf32> -> vector<64x384xf32>
    %c0_5 = arith.constant 0 : index
    %c0_6 = arith.constant 0 : index
    %4 = vector.load %arg4[%c0_5, %c0_6] : memref<1x384xf32, #tpu.memory_space<vmem>>, vector<1x384xf32>
    %5 = vector.broadcast %4 : vector<1x384xf32> to vector<64x384xf32>
    %6 = arith.addf %3, %5 : vector<64x384xf32>
    %7 = vector.extract_strided_slice %6 {offsets = [0, 0], sizes = [64, 128], strides = [1, 1]} : vector<64x384xf32> to vector<64x128xf32>
    %8 = arith.truncf %7 : vector<64x128xf32> to vector<64x128xbf16>
    %9 = vector.extract_strided_slice %6 {offsets = [0, 128], sizes = [64, 128], strides = [1, 1]} : vector<64x384xf32> to vector<64x128xf32>
    %10 = arith.truncf %9 : vector<64x128xf32> to vector<64x128xbf16>
    %11 = vector.extract_strided_slice %6 {offsets = [0, 256], sizes = [64, 128], strides = [1, 1]} : vector<64x384xf32> to vector<64x128xf32>
    %12 = arith.truncf %11 : vector<64x128xf32> to vector<64x128xbf16>
    %13 = vector.extract_strided_slice %8 {offsets = [0, 0], sizes = [64, 16], strides = [1, 1]} : vector<64x128xbf16> to vector<64x16xbf16>
    %14 = vector.extract_strided_slice %8 {offsets = [0, 16], sizes = [64, 16], strides = [1, 1]} : vector<64x128xbf16> to vector<64x16xbf16>
    %15 = vector.extract_strided_slice %8 {offsets = [0, 32], sizes = [64, 16], strides = [1, 1]} : vector<64x128xbf16> to vector<64x16xbf16>
    %16 = vector.extract_strided_slice %8 {offsets = [0, 48], sizes = [64, 16], strides = [1, 1]} : vector<64x128xbf16> to vector<64x16xbf16>
    %17 = vector.extract_strided_slice %8 {offsets = [0, 64], sizes = [64, 16], strides = [1, 1]} : vector<64x128xbf16> to vector<64x16xbf16>
    %18 = vector.extract_strided_slice %8 {offsets = [0, 80], sizes = [64, 16], strides = [1, 1]} : vector<64x128xbf16> to vector<64x16xbf16>
    %19 = vector.extract_strided_slice %8 {offsets = [0, 96], sizes = [64, 16], strides = [1, 1]} : vector<64x128xbf16> to vector<64x16xbf16>
    %20 = vector.extract_strided_slice %8 {offsets = [0, 112], sizes = [64, 16], strides = [1, 1]} : vector<64x128xbf16> to vector<64x16xbf16>
    %21 = vector.shape_cast %13 : vector<64x16xbf16> to vector<1x64x16xbf16>
    %22 = vector.shape_cast %14 : vector<64x16xbf16> to vector<1x64x16xbf16>
    %23 = vector.shape_cast %15 : vector<64x16xbf16> to vector<1x64x16xbf16>
    %24 = vector.shape_cast %16 : vector<64x16xbf16> to vector<1x64x16xbf16>
    %25 = vector.shape_cast %17 : vector<64x16xbf16> to vector<1x64x16xbf16>
    %26 = vector.shape_cast %18 : vector<64x16xbf16> to vector<1x64x16xbf16>
    %27 = vector.shape_cast %19 : vector<64x16xbf16> to vector<1x64x16xbf16>
    %28 = vector.shape_cast %20 : vector<64x16xbf16> to vector<1x64x16xbf16>
    %29 = tpu.concatenate %21, %22, %23, %24, %25, %26, %27, %28 in 0 : vector<1x64x16xbf16>, vector<1x64x16xbf16>, vector<1x64x16xbf16>, vector<1x64x16xbf16>, vector<1x64x16xbf16>, vector<1x64x16xbf16>, vector<1x64x16xbf16>, vector<1x64x16xbf16> -> vector<8x64x16xbf16>
    %30 = vector.extract_strided_slice %10 {offsets = [0, 0], sizes = [64, 16], strides = [1, 1]} : vector<64x128xbf16> to vector<64x16xbf16>
    %31 = vector.extract_strided_slice %10 {offsets = [0, 16], sizes = [64, 16], strides = [1, 1]} : vector<64x128xbf16> to vector<64x16xbf16>
    %32 = vector.extract_strided_slice %10 {offsets = [0, 32], sizes = [64, 16], strides = [1, 1]} : vector<64x128xbf16> to vector<64x16xbf16>
    %33 = vector.extract_strided_slice %10 {offsets = [0, 48], sizes = [64, 16], strides = [1, 1]} : vector<64x128xbf16> to vector<64x16xbf16>
    %34 = vector.extract_strided_slice %10 {offsets = [0, 64], sizes = [64, 16], strides = [1, 1]} : vector<64x128xbf16> to vector<64x16xbf16>
    %35 = vector.extract_strided_slice %10 {offsets = [0, 80], sizes = [64, 16], strides = [1, 1]} : vector<64x128xbf16> to vector<64x16xbf16>
    %36 = vector.extract_strided_slice %10 {offsets = [0, 96], sizes = [64, 16], strides = [1, 1]} : vector<64x128xbf16> to vector<64x16xbf16>
    %37 = vector.extract_strided_slice %10 {offsets = [0, 112], sizes = [64, 16], strides = [1, 1]} : vector<64x128xbf16> to vector<64x16xbf16>
    %38 = vector.shape_cast %30 : vector<64x16xbf16> to vector<1x64x16xbf16>
    %39 = vector.shape_cast %31 : vector<64x16xbf16> to vector<1x64x16xbf16>
    %40 = vector.shape_cast %32 : vector<64x16xbf16> to vector<1x64x16xbf16>
    %41 = vector.shape_cast %33 : vector<64x16xbf16> to vector<1x64x16xbf16>
    %42 = vector.shape_cast %34 : vector<64x16xbf16> to vector<1x64x16xbf16>
    %43 = vector.shape_cast %35 : vector<64x16xbf16> to vector<1x64x16xbf16>
    %44 = vector.shape_cast %36 : vector<64x16xbf16> to vector<1x64x16xbf16>
    %45 = vector.shape_cast %37 : vector<64x16xbf16> to vector<1x64x16xbf16>
    %46 = tpu.concatenate %38, %39, %40, %41, %42, %43, %44, %45 in 0 : vector<1x64x16xbf16>, vector<1x64x16xbf16>, vector<1x64x16xbf16>, vector<1x64x16xbf16>, vector<1x64x16xbf16>, vector<1x64x16xbf16>, vector<1x64x16xbf16>, vector<1x64x16xbf16> -> vector<8x64x16xbf16>
    %47 = vector.extract_strided_slice %12 {offsets = [0, 0], sizes = [64, 16], strides = [1, 1]} : vector<64x128xbf16> to vector<64x16xbf16>
    %48 = vector.extract_strided_slice %12 {offsets = [0, 16], sizes = [64, 16], strides = [1, 1]} : vector<64x128xbf16> to vector<64x16xbf16>
    %49 = vector.extract_strided_slice %12 {offsets = [0, 32], sizes = [64, 16], strides = [1, 1]} : vector<64x128xbf16> to vector<64x16xbf16>
    %50 = vector.extract_strided_slice %12 {offsets = [0, 48], sizes = [64, 16], strides = [1, 1]} : vector<64x128xbf16> to vector<64x16xbf16>
    %51 = vector.extract_strided_slice %12 {offsets = [0, 64], sizes = [64, 16], strides = [1, 1]} : vector<64x128xbf16> to vector<64x16xbf16>
    %52 = vector.extract_strided_slice %12 {offsets = [0, 80], sizes = [64, 16], strides = [1, 1]} : vector<64x128xbf16> to vector<64x16xbf16>
    %53 = vector.extract_strided_slice %12 {offsets = [0, 96], sizes = [64, 16], strides = [1, 1]} : vector<64x128xbf16> to vector<64x16xbf16>
    %54 = vector.extract_strided_slice %12 {offsets = [0, 112], sizes = [64, 16], strides = [1, 1]} : vector<64x128xbf16> to vector<64x16xbf16>
    %55 = vector.shape_cast %47 : vector<64x16xbf16> to vector<1x64x16xbf16>
    %56 = vector.shape_cast %48 : vector<64x16xbf16> to vector<1x64x16xbf16>
    %57 = vector.shape_cast %49 : vector<64x16xbf16> to vector<1x64x16xbf16>
    %58 = vector.shape_cast %50 : vector<64x16xbf16> to vector<1x64x16xbf16>
    %59 = vector.shape_cast %51 : vector<64x16xbf16> to vector<1x64x16xbf16>
    %60 = vector.shape_cast %52 : vector<64x16xbf16> to vector<1x64x16xbf16>
    %61 = vector.shape_cast %53 : vector<64x16xbf16> to vector<1x64x16xbf16>
    %62 = vector.shape_cast %54 : vector<64x16xbf16> to vector<1x64x16xbf16>
    %63 = tpu.concatenate %55, %56, %57, %58, %59, %60, %61, %62 in 0 : vector<1x64x16xbf16>, vector<1x64x16xbf16>, vector<1x64x16xbf16>, vector<1x64x16xbf16>, vector<1x64x16xbf16>, vector<1x64x16xbf16>, vector<1x64x16xbf16>, vector<1x64x16xbf16> -> vector<8x64x16xbf16>
    %cst_7 = arith.constant dense<0.000000e+00> : vector<8x64x64xf32>
    %64 = tpu.matmul %29, %46, %cst_7 {dimension_numbers = #tpu.dot_dimension_numbers<[2], [2], [1], [1], [0, 0, 0, 1, 1, 1], [0], [0]>} : vector<8x64x16xbf16>, vector<8x64x16xbf16>, vector<8x64x64xf32> -> vector<8x64x64xf32>
    %c0_8 = arith.constant 0 : index
    %c0_9 = arith.constant 0 : index
    %c0_10 = arith.constant 0 : index
    %c0_11 = arith.constant 0 : index
    %65 = vector.load %arg7[%c0_8, %c0_9, %c0_10, %c0_11] : memref<1x8x64x64xbf16, #tpu.memory_space<vmem>>, vector<1x8x64x64xbf16>
    %66 = vector.shape_cast %65 : vector<1x8x64x64xbf16> to vector<8x64x64xbf16>
    %67 = arith.extf %66 : vector<8x64x64xbf16> to vector<8x64x64xf32>
    %68 = arith.addf %64, %67 : vector<8x64x64xf32>
    %cst_12 = arith.constant dense<0xFF800000> : vector<8x64xf32>
    %69 = vector.multi_reduction <maximumf>, %68, %cst_12 [2] : vector<8x64x64xf32> to vector<8x64xf32>
    %70 = vector.shape_cast %69 : vector<8x64xf32> to vector<8x64x1xf32>
    %71 = vector.broadcast %70 : vector<8x64x1xf32> to vector<8x64x64xf32>
    %72 = arith.subf %68, %71 : vector<8x64x64xf32>
    %73 = math.exp %72 : vector<8x64x64xf32>
    %cst_13 = arith.constant dense<0.000000e+00> : vector<8x64xf32>
    %74 = vector.multi_reduction <add>, %73, %cst_13 [2] : vector<8x64x64xf32> to vector<8x64xf32>
    %75 = vector.shape_cast %74 : vector<8x64xf32> to vector<8x64x1xf32>
    %76 = tpu.reciprocal %75 {approx = true} : vector<8x64x1xf32> -> vector<8x64x1xf32>
    %77 = vector.broadcast %76 : vector<8x64x1xf32> to vector<8x64x64xf32>
    %78 = arith.mulf %73, %77 : vector<8x64x64xf32>
    %79 = arith.truncf %78 : vector<8x64x64xf32> to vector<8x64x64xbf16>
    %cst_14 = arith.constant dense<0.000000e+00> : vector<8x64x16xf32>
    %80 = tpu.matmul %79, %63, %cst_14 {dimension_numbers = #tpu.dot_dimension_numbers<[2], [1], [1], [2], [0, 0, 0, 1, 1, 2], [0], [0]>} : vector<8x64x64xbf16>, vector<8x64x16xbf16>, vector<8x64x16xf32> -> vector<8x64x16xf32>
    %81 = vector.extract_strided_slice %80 {offsets = [0, 0, 0], sizes = [1, 64, 16], strides = [1, 1, 1]} : vector<8x64x16xf32> to vector<1x64x16xf32>
    %82 = vector.shape_cast %81 : vector<1x64x16xf32> to vector<64x16xf32>
    %83 = vector.extract_strided_slice %80 {offsets = [1, 0, 0], sizes = [1, 64, 16], strides = [1, 1, 1]} : vector<8x64x16xf32> to vector<1x64x16xf32>
    %84 = vector.shape_cast %83 : vector<1x64x16xf32> to vector<64x16xf32>
    %85 = vector.extract_strided_slice %80 {offsets = [2, 0, 0], sizes = [1, 64, 16], strides = [1, 1, 1]} : vector<8x64x16xf32> to vector<1x64x16xf32>
    %86 = vector.shape_cast %85 : vector<1x64x16xf32> to vector<64x16xf32>
    %87 = vector.extract_strided_slice %80 {offsets = [3, 0, 0], sizes = [1, 64, 16], strides = [1, 1, 1]} : vector<8x64x16xf32> to vector<1x64x16xf32>
    %88 = vector.shape_cast %87 : vector<1x64x16xf32> to vector<64x16xf32>
    %89 = vector.extract_strided_slice %80 {offsets = [4, 0, 0], sizes = [1, 64, 16], strides = [1, 1, 1]} : vector<8x64x16xf32> to vector<1x64x16xf32>
    %90 = vector.shape_cast %89 : vector<1x64x16xf32> to vector<64x16xf32>
    %91 = vector.extract_strided_slice %80 {offsets = [5, 0, 0], sizes = [1, 64, 16], strides = [1, 1, 1]} : vector<8x64x16xf32> to vector<1x64x16xf32>
    %92 = vector.shape_cast %91 : vector<1x64x16xf32> to vector<64x16xf32>
    %93 = vector.extract_strided_slice %80 {offsets = [6, 0, 0], sizes = [1, 64, 16], strides = [1, 1, 1]} : vector<8x64x16xf32> to vector<1x64x16xf32>
    %94 = vector.shape_cast %93 : vector<1x64x16xf32> to vector<64x16xf32>
    %95 = vector.extract_strided_slice %80 {offsets = [7, 0, 0], sizes = [1, 64, 16], strides = [1, 1, 1]} : vector<8x64x16xf32> to vector<1x64x16xf32>
    %96 = vector.shape_cast %95 : vector<1x64x16xf32> to vector<64x16xf32>
    %97 = tpu.concatenate %82, %84, %86, %88, %90, %92, %94, %96 in 1 : vector<64x16xf32>, vector<64x16xf32>, vector<64x16xf32>, vector<64x16xf32>, vector<64x16xf32>, vector<64x16xf32>, vector<64x16xf32>, vector<64x16xf32> -> vector<64x128xf32>
    %98 = arith.truncf %97 : vector<64x128xf32> to vector<64x128xbf16>
    %c0_15 = arith.constant 0 : index
    %c0_16 = arith.constant 0 : index
    %99 = vector.load %arg5[%c0_15, %c0_16] : memref<128x128xbf16, #tpu.memory_space<vmem>>, vector<128x128xbf16>
    %cst_17 = arith.constant dense<0.000000e+00> : vector<64x128xf32>
    %100 = tpu.matmul %98, %99, %cst_17 {dimension_numbers = #tpu.dot_dimension_numbers<[1], [0], [0], [1], [0, 0, 1, 1], [], []>} : vector<64x128xbf16>, vector<128x128xbf16>, vector<64x128xf32> -> vector<64x128xf32>
    %c0_18 = arith.constant 0 : index
    %c0_19 = arith.constant 0 : index
    %101 = vector.load %arg6[%c0_18, %c0_19] : memref<1x128xf32, #tpu.memory_space<vmem>>, vector<1x128xf32>
    %102 = vector.broadcast %101 : vector<1x128xf32> to vector<64x128xf32>
    %103 = arith.addf %100, %102 : vector<64x128xf32>
    %c0_20 = arith.constant 0 : index
    %c0_21 = arith.constant 0 : index
    %c0_22 = arith.constant 0 : index
    %c0_23 = arith.constant 0 : index
    %104 = vector.load %arg8[%c0_20, %c0_21, %c0_22, %c0_23] : memref<1x1x64x128xf32, #tpu.memory_space<vmem>>, vector<1x1x64x128xf32>
    %105 = vector.shape_cast %104 : vector<1x1x64x128xf32> to vector<64x128xf32>
    %106 = vector.shape_cast %103 : vector<64x128xf32> to vector<1x1x64x128xf32>
    tpu.vector_store %arg8[%c0_20, %c0_21, %c0_22, %c0_23], %106 {strides = array<i32>} : memref<1x1x64x128xf32, #tpu.memory_space<vmem>>, vector<1x1x64x128xf32>,
    return
  }
  func.func @transform_0(%arg0: i32, %arg1: i32) -> (i32, i32, i32, i32) {
    %c0_i32 = arith.constant 0 : i32
    %c0_i32_0 = arith.constant 0 : i32
    %c0_i32_1 = arith.constant 0 : i32
    return %arg0, %arg1, %c0_i32, %c0_i32_0 : i32, i32, i32, i32
  }
  func.func @transform_1(%arg0: i32, %arg1: i32) -> (i32, i32) {
    %c0_i32 = arith.constant 0 : i32
    %c0_i32_0 = arith.constant 0 : i32
    %c0_i32_1 = arith.constant 0 : i32
    return %c0_i32, %c0_i32_0 : i32, i32
  }
  func.func @transform_2(%arg0: i32, %arg1: i32) -> (i32, i32) {
    %c0_i32 = arith.constant 0 : i32
    %c0_i32_0 = arith.constant 0 : i32
    %c0_i32_1 = arith.constant 0 : i32
    return %c0_i32, %c0_i32_0 : i32, i32
  }
  func.func @transform_3(%arg0: i32, %arg1: i32) -> (i32, i32) {
    %c0_i32 = arith.constant 0 : i32
    %c0_i32_0 = arith.constant 0 : i32
    %c0_i32_1 = arith.constant 0 : i32
    return %c0_i32, %c0_i32_0 : i32, i32
  }
  func.func @transform_4(%arg0: i32, %arg1: i32) -> (i32, i32) {
    %c0_i32 = arith.constant 0 : i32
    %c0_i32_0 = arith.constant 0 : i32
    %c0_i32_1 = arith.constant 0 : i32
    return %c0_i32, %c0_i32_0 : i32, i32
  }
  func.func @transform_5(%arg0: i32, %arg1: i32) -> (i32, i32, i32, i32) {
    %c0_i32 = arith.constant 0 : i32
    %c0_i32_0 = arith.constant 0 : i32
    %c0_i32_1 = arith.constant 0 : i32
    %c0_i32_2 = arith.constant 0 : i32
    return %arg1, %c0_i32, %c0_i32_0, %c0_i32_1 : i32, i32, i32, i32
  }
  func.func @transform_6(%arg0: i32, %arg1: i32) -> (i32, i32, i32, i32) {
    %c0_i32 = arith.constant 0 : i32
    %c0_i32_0 = arith.constant 0 : i32
    %c0_i32_1 = arith.constant 0 : i32
    return %arg0, %arg1, %c0_i32, %c0_i32_0 : i32, i32, i32, i32
  }
}

</mosaic_0001>

<llo_original>
// kernel: tpu_custom_call.1
$region0: #{tpu_custom_call.1}
  #allocation0 [shape = 'u32[]', space=smem, size = 0x4, offset = 0x4, fixed_abs, tag = 'smem constant byte address 0x4 - core index']
  #allocation1 [shape = 'u32[144,128]{1,0:T(1,128)}', space=vmem, size = 0x12000, scoped, tag = 'internal scratch']
  %s0 = inlined_call_operand.hbm [shape: bf16[2,1,64,128], index: 0, kind: input, shape index: {}]
  %s1 = inlined_call_operand.hbm [shape: bf16[128,384], index: 1, kind: input, shape index: {}]
  %s2 = inlined_call_operand.vmem [shape: f32[1,384], index: 2, kind: input, shape index: {}]
  %s3 = inlined_call_operand.hbm [shape: bf16[128,128], index: 3, kind: input, shape index: {}]
  %s4 = inlined_call_operand.vmem [shape: f32[1,128], index: 4, kind: input, shape index: {}]
  %s5 = inlined_call_operand.hbm [shape: bf16[1,8,64,64], index: 5, kind: input, shape index: {}]
  %s6 = inlined_call_operand.hbm [shape: f32[2,1,64,128], index: 6, kind: output, shape index: {}]
  %s7 = sld [smem:[#allocation0]]
  $region73: #{tpu_custom_call.1} parent=0
    _
  %s9 = ssub.s32 1, %s7
  %s10 = scalar_select 0, %s9, %s7
  $region1: #{tpu_custom_call.1} parent=0
    #allocation2 [shape = 'u8[32768]{0}', space=vmem, size = 0x8000, scoped, tag = 'input window, operand 0']
    #allocation3 [shape = 's32[2]{0}', space=sflag, size = 0x8, scoped, tag = 'scoped memory for tpu_custom_call.1']
    #allocation4 [shape = 's32[2]{0}', space=sflag, size = 0x8, scoped, tag = 'scoped memory for tpu_custom_call.1']
    #allocation5 [shape = 'u8[98304]{0}', space=vmem, size = 0x18000, scoped, tag = 'input window, operand 1, single buffered']
    #allocation6 [shape = 's32[1]{0}', space=sflag, size = 0x4, scoped, tag = 'scoped memory for tpu_custom_call.1']
    #allocation7 [shape = 'u8[32768]{0}', space=vmem, size = 0x8000, scoped, tag = 'input window, operand 3, single buffered']
    #allocation8 [shape = 'u8[131072]{0}', space=vmem, size = 0x20000, scoped, tag = 'input window, operand 5, single buffered']
    #allocation9 [shape = 's32[1]{0}', space=sflag, size = 0x4, scoped, tag = 'scoped memory for tpu_custom_call.1']
    #allocation10 [shape = 'u8[65536]{0}', space=vmem, size = 0x10000, scoped, tag = 'output window, operand 0']
    %11 = vsyncpa [#allocation3], 0
    %s12 = scalar_lea.sflag [#allocation3], 1
    %13 = vsyncpa %s12, 0
    %14 = vsyncpa [#allocation6], 0
    %15 = vsyncpa [#allocation9], 0
    %16 = vsyncpa [#allocation4], 0
    %s17 = scalar_lea.sflag [#allocation4], 1
    %18 = vsyncpa %s17, 0
    loop: start=0, step=1, limit=4
    $region2: #{tpu_custom_call.1} parent=1 // loop_pre_header
      _
    $region3: #{tpu_custom_call.1} parent=1 // loop_header
      %s20 = sphi 0, %s24
      %p21 = scmp.ge.s32.totalorder %s20, 4
      %s27 = sphi 0, %s39
      %s28 = sphi 0, %s35
      %s29 = sphi 0, %s27
      %s30 = sphi 0, %s28
      %s31 = sphi 0, %s29
      %s32 = sphi 0, %s30
      %s44 = sphi 0, %s46
      %s47 = sphi 0, %s44
      %s48 = sphi 0, %s47
      %s64 = sphi 0, %s48
      %s68 = sphi 0, %s68
      %s70 = sphi 0, %s68
      %s71 = sphi 0, %s70
      %s85 = sphi 0, %s71
      %s89 = sphi 0, %s89
      %s91 = sphi 0, %s89
      %s92 = sphi 0, %s91
      %s106 = sphi 0, %s92
      %s110 = sphi 0, %s110
      %s112 = sphi 0, %s110
      %s113 = sphi 0, %s112
      %s127 = sphi 0, %s113
      %s131 = sphi 0, %s131
      %s133 = sphi 0, %s131
      %s134 = sphi 0, %s133
      %s148 = sphi 0, %s134
      %s154 = sphi 0, %s156
      %s157 = sphi 0, %s154
      %s158 = sphi 0, %s157
      %s174 = sphi 0, %s158
      %s182 = sphi 0, %s184
      %s185 = sphi 0, %s182
      %s186 = sphi 0, %s185
      %s202 = sphi 0, %s186
    $region4: #{tpu_custom_call.1} parent=1 // loop_header_branch
      %23 = sbr.rel (%p21) target = $region8
    $region5: #{tpu_custom_call.1} parent=1 // loop_body
      %s25 = ssub.s32 %s20, 1
      %s26 = ssub.s32 %s20, 2
      %s33 = sadd.s32 1, %s28
      %p34 = scmp.ge.s32.totalorder %s33, 1
      %s35 = scalar_select %p34, 0, %s33
      %s36 = sadd.s32 1, %s27
      %s37 = scalar_select %p34, %s36, %s27
      %p38 = scmp.ge.s32.totalorder %s37, 2
      %s39 = scalar_select %p38, 0, %s37
      %s40 = ssub.s32 %s27, %s39
      %s41 = ssub.s32 %s28, %s35
      %s42 = sor.u32 %s40, %s41
      %p43 = scmp.eq.s32.totalorder %s42, 0
      %s45 = sadd.s32 %s44, 1
      %s46 = scalar_select %p43, %s44, %s45
      %p49 = pneg %p43
      %p50 = scmp.eq.s32.totalorder %s20, 1
      %p51 = por %p49, %p50
      %p52 = scmp.ne.s32.totalorder %s44, %s47
      %p53 = scmp.eq.s32.totalorder %s20, 0
      %p54 = por %p52, %p53
      %p55 = scmp.ne.s32.totalorder %s44, %s47
      %p56 = scmp.eq.s32.totalorder %s25, 1
      %p57 = por %p55, %p56
      %p58 = scmp.ne.s32.totalorder %s47, %s48
      %p59 = scmp.eq.s32.totalorder %s25, 0
      %p60 = por %p58, %p59
      %p61 = scmp.ne.s32.totalorder %s47, %s48
      %p62 = scmp.eq.s32.totalorder %s26, 1
      %p63 = por %p61, %p62
      %p65 = scmp.ne.s32.totalorder %s48, %s64
      %p66 = scmp.eq.s32.totalorder %s26, 0
      %p67 = por %p65, %p66
      %s69 = sadd.s32 %s68, 1
      %p72 = scmp.eq.s32.totalorder %s20, 1
      %p73 = scmp.ne.s32.totalorder %s68, %s70
      %p74 = scmp.eq.s32.totalorder %s20, 0
      %p75 = por %p73, %p74
      %p76 = scmp.ne.s32.totalorder %s68, %s70
      %p77 = scmp.eq.s32.totalorder %s25, 1
      %p78 = por %p76, %p77
      %p79 = scmp.ne.s32.totalorder %s70, %s71
      %p80 = scmp.eq.s32.totalorder %s25, 0
      %p81 = por %p79, %p80
      %p82 = scmp.ne.s32.totalorder %s70, %s71
      %p83 = scmp.eq.s32.totalorder %s26, 1
      %p84 = por %p82, %p83
      %p86 = scmp.ne.s32.totalorder %s71, %s85
      %p87 = scmp.eq.s32.totalorder %s26, 0
      %p88 = por %p86, %p87
      %s90 = sadd.s32 %s89, 1
      %p93 = scmp.eq.s32.totalorder %s20, 1
      %p94 = scmp.ne.s32.totalorder %s89, %s91
      %p95 = scmp.eq.s32.totalorder %s20, 0
      %p96 = por %p94, %p95
      %p97 = scmp.ne.s32.totalorder %s89, %s91
      %p98 = scmp.eq.s32.totalorder %s25, 1
      %p99 = por %p97, %p98
      %p100 = scmp.ne.s32.totalorder %s91, %s92
      %p101 = scmp.eq.s32.totalorder %s25, 0
      %p102 = por %p100, %p101
      %p103 = scmp.ne.s32.totalorder %s91, %s92
      %p104 = scmp.eq.s32.totalorder %s26, 1
      %p105 = por %p103, %p104
      %p107 = scmp.ne.s32.totalorder %s92, %s106
      %p108 = scmp.eq.s32.totalorder %s26, 0
      %p109 = por %p107, %p108
      %s111 = sadd.s32 %s110, 1
      %p114 = scmp.eq.s32.totalorder %s20, 1
      %p115 = scmp.ne.s32.totalorder %s110, %s112
      %p116 = scmp.eq.s32.totalorder %s20, 0
      %p117 = por %p115, %p116
      %p118 = scmp.ne.s32.totalorder %s110, %s112
      %p119 = scmp.eq.s32.totalorder %s25, 1
      %p120 = por %p118, %p119
      %p121 = scmp.ne.s32.totalorder %s112, %s113
      %p122 = scmp.eq.s32.totalorder %s25, 0
      %p123 = por %p121, %p122
      %p124 = scmp.ne.s32.totalorder %s112, %s113
      %p125 = scmp.eq.s32.totalorder %s26, 1
      %p126 = por %p124, %p125
      %p128 = scmp.ne.s32.totalorder %s113, %s127
      %p129 = scmp.eq.s32.totalorder %s26, 0
      %p130 = por %p128, %p129
      %s132 = sadd.s32 %s131, 1
      %p135 = scmp.eq.s32.totalorder %s20, 1
      %p136 = scmp.ne.s32.totalorder %s131, %s133
      %p137 = scmp.eq.s32.totalorder %s20, 0
      %p138 = por %p136, %p137
      %p139 = scmp.ne.s32.totalorder %s131, %s133
      %p140 = scmp.eq.s32.totalorder %s25, 1
      %p141 = por %p139, %p140
      %p142 = scmp.ne.s32.totalorder %s133, %s134
      %p143 = scmp.eq.s32.totalorder %s25, 0
      %p144 = por %p142, %p143
      %p145 = scmp.ne.s32.totalorder %s133, %s134
      %p146 = scmp.eq.s32.totalorder %s26, 1
      %p147 = por %p145, %p146
      %p149 = scmp.ne.s32.totalorder %s134, %s148
      %p150 = scmp.eq.s32.totalorder %s26, 0
      %p151 = por %p149, %p150
      %s152 = ssub.s32 %s28, %s35
      %p153 = scmp.eq.s32.totalorder %s152, 0
      %s155 = sadd.s32 %s154, 1
      %s156 = scalar_select %p153, %s154, %s155
      %p159 = pneg %p153
      %p160 = scmp.eq.s32.totalorder %s20, 1
      %p161 = por %p159, %p160
      %p162 = scmp.ne.s32.totalorder %s154, %s157
      %p163 = scmp.eq.s32.totalorder %s20, 0
      %p164 = por %p162, %p163
      %p165 = scmp.ne.s32.totalorder %s154, %s157
      %p166 = scmp.eq.s32.totalorder %s25, 1
      %p167 = por %p165, %p166
      %p168 = scmp.ne.s32.totalorder %s157, %s158
      %p169 = scmp.eq.s32.totalorder %s25, 0
      %p170 = por %p168, %p169
      %p171 = scmp.ne.s32.totalorder %s157, %s158
      %p172 = scmp.eq.s32.totalorder %s26, 1
      %p173 = por %p171, %p172
      %p175 = scmp.ne.s32.totalorder %s158, %s174
      %p176 = scmp.eq.s32.totalorder %s26, 0
      %p177 = por %p175, %p176
      %s178 = ssub.s32 %s27, %s39
      %s179 = ssub.s32 %s28, %s35
      %s180 = sor.u32 %s178, %s179
      %p181 = scmp.eq.s32.totalorder %s180, 0
      %s183 = sadd.s32 %s182, 1
      %s184 = scalar_select %p181, %s182, %s183
      %p187 = pneg %p181
      %p188 = scmp.eq.s32.totalorder %s20, 1
      %p189 = por %p187, %p188
      %p190 = scmp.ne.s32.totalorder %s182, %s185
      %p191 = scmp.eq.s32.totalorder %s20, 0
      %p192 = por %p190, %p191
      %p193 = scmp.ne.s32.totalorder %s182, %s185
      %p194 = scmp.eq.s32.totalorder %s25, 1
      %p195 = por %p193, %p194
      %p196 = scmp.ne.s32.totalorder %s185, %s186
      %p197 = scmp.eq.s32.totalorder %s25, 0
      %p198 = por %p196, %p197
      %p199 = scmp.ne.s32.totalorder %s185, %s186
      %p200 = scmp.eq.s32.totalorder %s26, 1
      %p201 = por %p199, %p200
      %p203 = scmp.ne.s32.totalorder %s186, %s202
      %p204 = scmp.eq.s32.totalorder %s26, 0
      %p205 = por %p203, %p204
      %p206 = scmp.le.s32.totalorder 1, %s20
      %p207 = scmp.lt.s32.totalorder %s20, 3
      %p208 = pnand %p206, %p207
      %p209 = pneg %p208
      // Predicated region
      $region9: #{tpu_custom_call.1} parent=5 // pred_check
        _
      $region10: #{tpu_custom_call.1} parent=5 // pred_check_branch
        %211 = sbr.rel (%p208) target = $region12
      $region11: #{tpu_custom_call.1} parent=5 // pred_region
        %s212 = ssub.s32 %s20, 1
        // Predicated region
        $region13: #{tpu_custom_call.1} parent=11 // pred_check
          %p213 = pneg %p81
        $region14: #{tpu_custom_call.1} parent=11 // pred_check_branch
          %215 = sbr.rel (%p213) target = $region16
        $region15: #{tpu_custom_call.1} parent=11 // pred_region
          %s217 = ssub.s32 3072, 3072
          %218 = vsyncadd [#allocation6], %s217
          %s219 = sshll.u32 [#allocation5], 4
          %s220 = int_to_ptr.vmem [resolvable:$true] %s219
          %225 = dma.hbm_to_vmem [thread:$0]  %s1, 3072, %s220, [#allocation6], 192, 192, 12
        $region16: #{tpu_custom_call.1} parent=11 // pred_fallthru
          _
        // Predicated region
        $region17: #{tpu_custom_call.1} parent=11 // pred_check
          %p226 = pneg %p102
        $region18: #{tpu_custom_call.1} parent=11 // pred_check_branch
          %228 = sbr.rel (%p226) target = $region20
        $region19: #{tpu_custom_call.1} parent=11 // pred_region
          _
        $region20: #{tpu_custom_call.1} parent=11 // pred_fallthru
          _
        // Predicated region
        $region21: #{tpu_custom_call.1} parent=11 // pred_check
          %p229 = pneg %p123
        $region22: #{tpu_custom_call.1} parent=11 // pred_check_branch
          %231 = sbr.rel (%p229) target = $region24
        $region23: #{tpu_custom_call.1} parent=11 // pred_region
          %s233 = ssub.s32 1024, 1024
          %234 = vsyncadd [#allocation6], %s233
          %s235 = sshll.u32 [#allocation7], 4
          %s236 = int_to_ptr.vmem [resolvable:$true] %s235
          %241 = dma.hbm_to_vmem [thread:$0]  %s3, 1024, %s236, [#allocation6], 64, 64, 4
        $region24: #{tpu_custom_call.1} parent=11 // pred_fallthru
          _
        // Predicated region
        $region25: #{tpu_custom_call.1} parent=11 // pred_check
          %p242 = pneg %p144
        $region26: #{tpu_custom_call.1} parent=11 // pred_check_branch
          %244 = sbr.rel (%p242) target = $region28
        $region27: #{tpu_custom_call.1} parent=11 // pred_region
          _
        $region28: #{tpu_custom_call.1} parent=11 // pred_fallthru
          _
        // Predicated region
        $region29: #{tpu_custom_call.1} parent=11 // pred_check
          %p245 = pneg %p170
        $region30: #{tpu_custom_call.1} parent=11 // pred_check_branch
          %247 = sbr.rel (%p245) target = $region32
        $region31: #{tpu_custom_call.1} parent=11 // pred_region
          %s249 = ssub.s32 4096, 4096
          %250 = vsyncadd [#allocation9], %s249
          %s251 = smul.addr %s30, 64
          %s252 = smul.addr %s251, 64
          %s253 = scalar_lea.hbm %s5, %s252
          %s254 = sshll.u32 [#allocation8], 4
          %s255 = int_to_ptr.vmem [resolvable:$true] %s254
          %260 = dma.hbm_to_vmem [thread:$0]  %s253, 4096, %s255, [#allocation9], 64, 64, 4
        $region32: #{tpu_custom_call.1} parent=11 // pred_fallthru
          _
      $region12: #{tpu_custom_call.1} parent=5 // pred_fallthru
        _
      %p261 = scmp.lt.s32.totalorder %s20, 2
      // Predicated region
      $region33: #{tpu_custom_call.1} parent=5 // pred_check
        %p262 = pneg %p261
      $region34: #{tpu_custom_call.1} parent=5 // pred_check_branch
        %264 = sbr.rel (%p262) target = $region36
      $region35: #{tpu_custom_call.1} parent=5 // pred_region
        // Predicated region
        $region37: #{tpu_custom_call.1} parent=35 // pred_check
          %p265 = pneg %p54
        $region38: #{tpu_custom_call.1} parent=35 // pred_check_branch
          %267 = sbr.rel (%p265) target = $region40
        $region39: #{tpu_custom_call.1} parent=35 // pred_region
          %s268 = sand.u32 %s44, 1
          %s269 = scalar_lea.sflag [#allocation3], %s268
          %s270 = sand.u32 %s44, 1
          %s271 = smul.addr %s270, 32
          %s272 = scalar_lea.vmem [#allocation2], %s271
          %s274 = ssub.s32 512, 512
          %275 = vsyncadd %s269, %s274
          %s276 = smul.addr %s28, 8
          %s277 = smul.addr %s27, 8
          %s278 = sadd.s32 %s276, %s277
          %s279 = smul.addr %s278, 64
          %s280 = scalar_lea.hbm %s0, %s279
          %s281 = sshll.u32 %s272, 4
          %s282 = int_to_ptr.vmem [resolvable:$true] %s281
          %287 = dma.hbm_to_vmem [thread:$0]  %s280, 512, %s282, %s269, 64, 64, 4
        $region40: #{tpu_custom_call.1} parent=35 // pred_fallthru
          _
      $region36: #{tpu_custom_call.1} parent=5 // pred_fallthru
        _
      %p288 = scmp.le.s32.totalorder 1, %s20
      %p289 = scmp.lt.s32.totalorder %s20, 3
      %p290 = pnand %p288, %p289
      %p291 = pneg %p290
      // Predicated region
      $region41: #{tpu_custom_call.1} parent=5 // pred_check
        _
      $region42: #{tpu_custom_call.1} parent=5 // pred_check_branch
        %293 = sbr.rel (%p290) target = $region44
      $region43: #{tpu_custom_call.1} parent=5 // pred_region
        %s294 = ssub.s32 %s20, 1
        %s295 = sand.u32 %s47, 1
        %s296 = scalar_lea.sflag [#allocation3], %s295
        %s297 = sand.u32 %s47, 1
        %s298 = smul.addr %s297, 32
        %s299 = scalar_lea.vmem [#allocation2], %s298
        // Predicated region
        $region45: #{tpu_custom_call.1} parent=43 // pred_check
          %p300 = pneg %p60
        $region46: #{tpu_custom_call.1} parent=43 // pred_check_branch
          %302 = sbr.rel (%p300) target = $region48
        $region47: #{tpu_custom_call.1} parent=43 // pred_region
          %303 = dma.done %s296, 512
        $region48: #{tpu_custom_call.1} parent=43 // pred_fallthru
          _
        // Predicated region
        $region49: #{tpu_custom_call.1} parent=43 // pred_check
          %p304 = pneg %p81
        $region50: #{tpu_custom_call.1} parent=43 // pred_check_branch
          %306 = sbr.rel (%p304) target = $region52
        $region51: #{tpu_custom_call.1} parent=43 // pred_region
          %307 = dma.done [#allocation6], 3072
        $region52: #{tpu_custom_call.1} parent=43 // pred_fallthru
          _
        // Predicated region
        $region53: #{tpu_custom_call.1} parent=43 // pred_check
          %p308 = pneg %p123
        $region54: #{tpu_custom_call.1} parent=43 // pred_check_branch
          %310 = sbr.rel (%p308) target = $region56
        $region55: #{tpu_custom_call.1} parent=43 // pred_region
          %311 = dma.done [#allocation6], 1024
        $region56: #{tpu_custom_call.1} parent=43 // pred_fallthru
          _
        // Predicated region
        $region57: #{tpu_custom_call.1} parent=43 // pred_check
          %p312 = pneg %p170
        $region58: #{tpu_custom_call.1} parent=43 // pred_check_branch
          %314 = sbr.rel (%p312) target = $region60
        $region59: #{tpu_custom_call.1} parent=43 // pred_region
          %315 = dma.done [#allocation9], 4096
        $region60: #{tpu_custom_call.1} parent=43 // pred_fallthru
          _
        %s316 = sand.u32 %s47, 1
        %s317 = scalar_lea.sflag [#allocation3], %s316
        %s318 = sand.u32 %s47, 1
        %s319 = smul.addr %s318, 32
        %s320 = scalar_lea.vmem [#allocation2], %s319
        %p321 = pneg %p60
        %p322 = pneg %p57
        %p323 = pneg %p81
        %p324 = pneg %p78
        %p325 = pneg %p102
        %p326 = pneg %p99
        %p327 = pneg %p123
        %p328 = pneg %p120
        %p329 = pneg %p144
        %p330 = pneg %p141
        %p331 = pneg %p170
        %p332 = pneg %p167
        %p333 = pneg %p198
        %p334 = pneg %p195
        %s335 = sand.u32 %s185, 1
        %s336 = scalar_lea.sflag [#allocation4], %s335
        %s337 = sand.u32 %s185, 1
        %s338 = smul.addr %s337, 64
        %s339 = scalar_lea.vmem [#allocation10], %s338
        %v341 = vld [vmem:[%s299] sm:$0xf]
        %v342 = vld [vmem:[%s299 + $0x4] sm:$0xf]
        %v343 = vld [vmem:[%s299 + $0x8] sm:$0xf]
        %v344 = vld [vmem:[%s299 + $0xc] sm:$0xf]
        %v345 = vld [vmem:[%s299 + $0x10] sm:$0xf]
        %v346 = vld [vmem:[%s299 + $0x14] sm:$0xf]
        %v347 = vld [vmem:[%s299 + $0x18] sm:$0xf]
        %v348 = vld [vmem:[%s299 + $0x1c] sm:$0xf]
        %v349 = vld [vmem:[#allocation5] sm:$0xff]
        %v350 = vld [vmem:[#allocation5 + $0x8] sm:$0xf]
        %v351 = vld [vmem:[#allocation5 + $0xc] sm:$0xff]
        %v352 = vld [vmem:[#allocation5 + $0x14] sm:$0xf]
        %v353 = vld [vmem:[#allocation5 + $0x18] sm:$0xff]
        %v354 = vld [vmem:[#allocation5 + $0x20] sm:$0xf]
        %v355 = vld [vmem:[#allocation5 + $0x24] sm:$0xff]
        %v356 = vld [vmem:[#allocation5 + $0x2c] sm:$0xf]
        %v357 = vld [vmem:[#allocation5 + $0x30] sm:$0xff]
        %v358 = vld [vmem:[#allocation5 + $0x38] sm:$0xf]
        %v359 = vld [vmem:[#allocation5 + $0x3c] sm:$0xff]
        %v360 = vld [vmem:[#allocation5 + $0x44] sm:$0xf]
        %v361 = vld [vmem:[#allocation5 + $0x48] sm:$0xff]
        %v362 = vld [vmem:[#allocation5 + $0x50] sm:$0xf]
        %v363 = vld [vmem:[#allocation5 + $0x54] sm:$0xff]
        %v364 = vld [vmem:[#allocation5 + $0x5c] sm:$0xf]
        %v365 = vld [vmem:[#allocation5 + $0x60] sm:$0xff]
        %v366 = vld [vmem:[#allocation5 + $0x68] sm:$0xf]
        %v367 = vld [vmem:[#allocation5 + $0x6c] sm:$0xff]
        %v368 = vld [vmem:[#allocation5 + $0x74] sm:$0xf]
        %v369 = vld [vmem:[#allocation5 + $0x78] sm:$0xff]
        %v370 = vld [vmem:[#allocation5 + $0x80] sm:$0xf]
        %v371 = vld [vmem:[#allocation5 + $0x84] sm:$0xff]
        %v372 = vld [vmem:[#allocation5 + $0x8c] sm:$0xf]
        %v373 = vld [vmem:[#allocation5 + $0x90] sm:$0xff]
        %v374 = vld [vmem:[#allocation5 + $0x98] sm:$0xf]
        %v375 = vld [vmem:[#allocation5 + $0x9c] sm:$0xff]
        %v376 = vld [vmem:[#allocation5 + $0xa4] sm:$0xf]
        %v377 = vld [vmem:[#allocation5 + $0xa8] sm:$0xff]
        %v378 = vld [vmem:[#allocation5 + $0xb0] sm:$0xf]
        %v379 = vld [vmem:[#allocation5 + $0xb4] sm:$0xff]
        %v380 = vld [vmem:[#allocation5 + $0xbc] sm:$0xf]
        %v381 = vld [vmem:[%s2] sm:$0x7]
        %v383 = vlaneseq
        %v384 = vshrl.u32 %v383, 7
        %v385 = vsub.s32 0, %v384
        %v386 = vrot.slane %v381, %v385
        %v387 = vlaneseq
        %v388 = vshrl.u32 %v387, 7
        %v389 = vsub.s32 1, %v388
        %v390 = vrot.slane %v381, %v389
        %v391 = vlaneseq
        %v392 = vshrl.u32 %v391, 7
        %v393 = vsub.s32 2, %v392
        %v394 = vrot.slane %v381, %v393
        %v406 = vunpack.c.l.b16 %v341
        %v407 = vunpack.c.l.b16 %v342
        %v408 = vunpack.c.l.b16 %v343
        %v409 = vunpack.c.l.b16 %v344
        %v410 = vunpack.c.l.b16 %v345
        %v411 = vunpack.c.l.b16 %v346
        %v412 = vunpack.c.l.b16 %v347
        %v413 = vunpack.c.l.b16 %v348
        %v414 = vpack.c.b16 %v407, %v406
        %v415 = vpack.c.b16 %v409, %v408
        %v416 = vpack.c.b16 %v411, %v410
        %v417 = vpack.c.b16 %v413, %v412
        %v454 = vunpack.c.l.b16 %v349
        %v455 = vunpack.c.h.b16 %v349
        %v456 = vunpack.c.l.b16 %v350
        %v457 = vunpack.c.l.b16 %v351
        %v458 = vunpack.c.h.b16 %v351
        %v459 = vunpack.c.l.b16 %v352
        %v460 = vunpack.c.l.b16 %v353
        %v461 = vunpack.c.h.b16 %v353
        %v462 = vunpack.c.l.b16 %v354
        %v463 = vunpack.c.l.b16 %v355
        %v464 = vunpack.c.h.b16 %v355
        %v465 = vunpack.c.l.b16 %v356
        %v466 = vunpack.c.l.b16 %v357
        %v467 = vunpack.c.h.b16 %v357
        %v468 = vunpack.c.l.b16 %v358
        %v469 = vunpack.c.l.b16 %v359
        %v470 = vunpack.c.h.b16 %v359
        %v471 = vunpack.c.l.b16 %v360
        %v472 = vunpack.c.l.b16 %v361
        %v473 = vunpack.c.h.b16 %v361
        %v474 = vunpack.c.l.b16 %v362
        %v475 = vunpack.c.l.b16 %v363
        %v476 = vunpack.c.h.b16 %v363
        %v477 = vunpack.c.l.b16 %v364
        %v478 = vunpack.c.l.b16 %v365
        %v479 = vunpack.c.h.b16 %v365
        %v480 = vunpack.c.l.b16 %v366
        %v481 = vunpack.c.l.b16 %v367
        %v482 = vunpack.c.h.b16 %v367
        %v483 = vunpack.c.l.b16 %v368
        %v484 = vunpack.c.l.b16 %v369
        %v485 = vunpack.c.h.b16 %v369
        %v486 = vunpack.c.l.b16 %v370
        %v487 = vunpack.c.l.b16 %v371
        %v488 = vunpack.c.h.b16 %v371
        %v489 = vunpack.c.l.b16 %v372
        %v490 = vunpack.c.l.b16 %v373
        %v491 = vunpack.c.h.b16 %v373
        %v492 = vunpack.c.l.b16 %v374
        %v493 = vunpack.c.l.b16 %v375
        %v494 = vunpack.c.h.b16 %v375
        %v495 = vunpack.c.l.b16 %v376
        %v496 = vunpack.c.l.b16 %v377
        %v497 = vunpack.c.h.b16 %v377
        %v498 = vunpack.c.l.b16 %v378
        %v499 = vunpack.c.l.b16 %v379
        %v500 = vunpack.c.h.b16 %v379
        %v501 = vunpack.c.l.b16 %v380
        %v502 = vpack.c.b16 %v457, %v454
        %v503 = vpack.c.b16 %v458, %v455
        %v504 = vpack.c.b16 %v459, %v456
        %v505 = vpack.c.b16 %v463, %v460
        %v506 = vpack.c.b16 %v464, %v461
        %v507 = vpack.c.b16 %v465, %v462
        %v508 = vpack.c.b16 %v469, %v466
        %v509 = vpack.c.b16 %v470, %v467
        %v510 = vpack.c.b16 %v471, %v468
        %v511 = vpack.c.b16 %v475, %v472
        %v512 = vpack.c.b16 %v476, %v473
        %v513 = vpack.c.b16 %v477, %v474
        %v514 = vpack.c.b16 %v481, %v478
        %v515 = vpack.c.b16 %v482, %v479
        %v516 = vpack.c.b16 %v483, %v480
        %v517 = vpack.c.b16 %v487, %v484
        %v518 = vpack.c.b16 %v488, %v485
        %v519 = vpack.c.b16 %v489, %v486
        %v520 = vpack.c.b16 %v493, %v490
        %v521 = vpack.c.b16 %v494, %v491
        %v522 = vpack.c.b16 %v495, %v492
        %v523 = vpack.c.b16 %v499, %v496
        %v524 = vpack.c.b16 %v500, %v497
        %v525 = vpack.c.b16 %v501, %v498
        %550 = vmatprep.subr.bf16.mxu0 %v503
        %551 = vmatpush1.bf16.msra.mxu0 %v502
        %552 = vmatprep.subr.bf16.mxu0 %v506
        %553 = vmatpush1.bf16.msra.mxu0 %v505
        %554 = vmatprep.subr.bf16.mxu0 %v509
        %555 = vmatpush1.bf16.msra.mxu0 %v508
        %556 = vmatprep.subr.bf16.mxu0 %v512
        %557 = vmatpush1.bf16.msra.mxu0 %v511
        %558 = vmatprep.subr.bf16.mxu0 %v515
        %559 = vmatpush1.bf16.msra.mxu0 %v514
        %560 = vmatprep.subr.bf16.mxu0 %v518
        %561 = vmatpush1.bf16.msra.mxu0 %v517
        %562 = vmatprep.subr.bf16.mxu0 %v521
        %563 = vmatpush1.bf16.msra.mxu0 %v520
        %564 = vmatprep.subr.bf16.mxu0 %v524
        %565 = vmatpush1.bf16.msra.mxu0 %v523
        %566 = vmatprep.subr.bf16.mxu0 0
        %567 = vmatpush1.bf16.msra.mxu0 0
        %568 = vmatprep.subr.bf16.mxu0 0
        %569 = vmatpush1.bf16.msra.mxu0 0
        %570 = vmatprep.subr.bf16.mxu0 0
        %571 = vmatpush1.bf16.msra.mxu0 0
        %572 = vmatprep.subr.bf16.mxu0 0
        %573 = vmatpush1.bf16.msra.mxu0 0
        %574 = vmatprep.subr.bf16.mxu0 0
        %575 = vmatpush1.bf16.msra.mxu0 0
        %576 = vmatprep.subr.bf16.mxu0 0
        %577 = vmatpush1.bf16.msra.mxu0 0
        %578 = vmatprep.subr.bf16.mxu0 0
        %579 = vmatpush1.bf16.msra.mxu0 0
        %580 = vmatprep.subr.bf16.mxu0 0
        %581 = vmatpush1.bf16.msra.mxu0 0
        %582 = vmatprep.mubr.bf16.mxu0 0
        %583 = vmatmul.mubr.bf16.gmra.mrb[0].mxu0 %v414
        %v584 = vpop.f32.mrb[0].mxu0
        %v585 = vadd.f32 %v386, %v584
        %v586 = vpop.f32.mrb[0].mxu0
        %v587 = vadd.f32 %v390, %v586
        %v588 = vpop.f32.mrb[0].mxu0
        %v589 = vadd.f32 %v386, %v588
        %v590 = vpop.f32.mrb[0].mxu0
        %v591 = vadd.f32 %v390, %v590
        %592 = vmatprep.mubr.bf16.mxu0 0
        %593 = vmatmul.mubr.bf16.gmra.mrb[0].mxu0 %v415
        %v594 = vpop.f32.mrb[0].mxu0
        %v595 = vadd.f32 %v386, %v594
        %v596 = vpop.f32.mrb[0].mxu0
        %v597 = vadd.f32 %v390, %v596
        %v598 = vpop.f32.mrb[0].mxu0
        %v599 = vadd.f32 %v386, %v598
        %v600 = vpop.f32.mrb[0].mxu0
        %v601 = vadd.f32 %v390, %v600
        %602 = vmatprep.mubr.bf16.mxu0 0
        %603 = vmatmul.mubr.bf16.gmra.mrb[0].mxu0 %v416
        %v604 = vpop.f32.mrb[0].mxu0
        %v605 = vadd.f32 %v386, %v604
        %v606 = vpop.f32.mrb[0].mxu0
        %v607 = vadd.f32 %v390, %v606
        %v608 = vpop.f32.mrb[0].mxu0
        %v609 = vadd.f32 %v386, %v608
        %v610 = vpop.f32.mrb[0].mxu0
        %v611 = vadd.f32 %v390, %v610
        %612 = vmatprep.mubr.bf16.mxu0 0
        %613 = vmatmul.mubr.bf16.gmra.mrb[0].mxu0 %v417
        %v614 = vpop.f32.mrb[0].mxu0
        %v615 = vadd.f32 %v386, %v614
        %v616 = vpop.f32.mrb[0].mxu0
        %v617 = vadd.f32 %v390, %v616
        %v618 = vpop.f32.mrb[0].mxu0
        %v619 = vadd.f32 %v386, %v618
        %v620 = vpop.f32.mrb[0].mxu0
        %v621 = vadd.f32 %v390, %v620
        %622 = vdwg.mxu0
        %623 = vmatprep.subr.bf16.mxu0 0
        %624 = vmatpush1.bf16.msra.mxu0 %v504
        %625 = vmatprep.subr.bf16.mxu0 0
        %626 = vmatpush1.bf16.msra.mxu0 %v507
        %627 = vmatprep.subr.bf16.mxu0 0
        %628 = vmatpush1.bf16.msra.mxu0 %v510
        %629 = vmatprep.subr.bf16.mxu0 0
        %630 = vmatpush1.bf16.msra.mxu0 %v513
        %631 = vmatprep.subr.bf16.mxu0 0
        %632 = vmatpush1.bf16.msra.mxu0 %v516
        %633 = vmatprep.subr.bf16.mxu0 0
        %634 = vmatpush1.bf16.msra.mxu0 %v519
        %635 = vmatprep.subr.bf16.mxu0 0
        %636 = vmatpush1.bf16.msra.mxu0 %v522
        %637 = vmatprep.subr.bf16.mxu0 0
        %638 = vmatpush1.bf16.msra.mxu0 %v525
        %639 = vmatprep.subr.bf16.mxu0 0
        %640 = vmatpush1.bf16.msra.mxu0 0
        %641 = vmatprep.subr.bf16.mxu0 0
        %642 = vmatpush1.bf16.msra.mxu0 0
        %643 = vmatprep.subr.bf16.mxu0 0
        %644 = vmatpush1.bf16.msra.mxu0 0
        %645 = vmatprep.subr.bf16.mxu0 0
        %646 = vmatpush1.bf16.msra.mxu0 0
        %647 = vmatprep.subr.bf16.mxu0 0
        %648 = vmatpush1.bf16.msra.mxu0 0
        %649 = vmatprep.subr.bf16.mxu0 0
        %650 = vmatpush1.bf16.msra.mxu0 0
        %651 = vmatprep.subr.bf16.mxu0 0
        %652 = vmatpush1.bf16.msra.mxu0 0
        %653 = vmatprep.subr.bf16.mxu0 0
        %654 = vmatpush1.bf16.msra.mxu0 0
        %655 = vmatprep.mubr.bf16.mxu0 0
        %656 = vmatmul.mubr.bf16.gmra.mrb[0].mxu0 %v414
        %v657 = vpop.f32.mrb[0].mxu0
        %v658 = vadd.f32 %v394, %v657
        %v659 = vpop.f32.mrb[0].mxu0
        %v660 = vpop.f32.mrb[0].mxu0
        %v661 = vadd.f32 %v394, %v660
        %v662 = vpop.f32.mrb[0].mxu0
        %663 = vmatprep.mubr.bf16.mxu0 0
        %664 = vmatmul.mubr.bf16.gmra.mrb[0].mxu0 %v415
        %v665 = vpop.f32.mrb[0].mxu0
        %v666 = vadd.f32 %v394, %v665
        %v667 = vpop.f32.mrb[0].mxu0
        %v668 = vpop.f32.mrb[0].mxu0
        %v669 = vadd.f32 %v394, %v668
        %v670 = vpop.f32.mrb[0].mxu0
        %671 = vmatprep.mubr.bf16.mxu0 0
        %672 = vmatmul.mubr.bf16.gmra.mrb[0].mxu0 %v416
        %v673 = vpop.f32.mrb[0].mxu0
        %v674 = vadd.f32 %v394, %v673
        %v675 = vpop.f32.mrb[0].mxu0
        %v676 = vpop.f32.mrb[0].mxu0
        %v677 = vadd.f32 %v394, %v676
        %v678 = vpop.f32.mrb[0].mxu0
        %679 = vmatprep.mubr.bf16.mxu0 0
        %680 = vmatmul.mubr.bf16.gmra.mrb[0].mxu0 %v417
        %v681 = vpop.f32.mrb[0].mxu0
        %v682 = vadd.f32 %v394, %v681
        %v683 = vpop.f32.mrb[0].mxu0
        %v684 = vpop.f32.mrb[0].mxu0
        %v685 = vadd.f32 %v394, %v684
        %v686 = vpop.f32.mrb[0].mxu0
        %687 = vdwg.mxu0
        %v688 = vpack.c.bf16 %v589, %v585
        %v689 = vpack.c.bf16 %v599, %v595
        %v690 = vpack.c.bf16 %v609, %v605
        %v691 = vpack.c.bf16 %v619, %v615
        %v692 = vpack.c.bf16 %v591, %v587
        %v693 = vpack.c.bf16 %v601, %v597
        %v694 = vpack.c.bf16 %v611, %v607
        %v695 = vpack.c.bf16 %v621, %v617
        %v696 = vpack.c.bf16 %v661, %v658
        %v697 = vpack.c.bf16 %v669, %v666
        %v698 = vpack.c.bf16 %v677, %v674
        %v699 = vpack.c.bf16 %v685, %v682
        %704 = vrot.lane.b32.xlu0 %v688, 112
        %v705 = vpop.permute.xlu0 %704
        %706 = vrot.lane.b32.xlu0 %v689, 112
        %v707 = vpop.permute.xlu0 %706
        %708 = vrot.lane.b32.xlu0 %v690, 112
        %v709 = vpop.permute.xlu0 %708
        %710 = vrot.lane.b32.xlu0 %v691, 112
        %v711 = vpop.permute.xlu0 %710
        %712 = vrot.lane.b32.xlu0 %v688, 96
        %v713 = vpop.permute.xlu0 %712
        %714 = vrot.lane.b32.xlu0 %v689, 96
        %v715 = vpop.permute.xlu0 %714
        %716 = vrot.lane.b32.xlu0 %v690, 96
        %v717 = vpop.permute.xlu0 %716
        %718 = vrot.lane.b32.xlu0 %v691, 96
        %v719 = vpop.permute.xlu0 %718
        %720 = vrot.lane.b32.xlu0 %v688, 80
        %v721 = vpop.permute.xlu0 %720
        %722 = vrot.lane.b32.xlu0 %v689, 80
        %v723 = vpop.permute.xlu0 %722
        %724 = vrot.lane.b32.xlu0 %v690, 80
        %v725 = vpop.permute.xlu0 %724
        %726 = vrot.lane.b32.xlu0 %v691, 80
        %v727 = vpop.permute.xlu0 %726
        %728 = vrot.lane.b32.xlu0 %v688, 64
        %v729 = vpop.permute.xlu0 %728
        %730 = vrot.lane.b32.xlu0 %v689, 64
        %v731 = vpop.permute.xlu0 %730
        %732 = vrot.lane.b32.xlu0 %v690, 64
        %v733 = vpop.permute.xlu0 %732
        %734 = vrot.lane.b32.xlu0 %v691, 64
        %v735 = vpop.permute.xlu0 %734
        %736 = vrot.lane.b32.xlu0 %v688, 48
        %v737 = vpop.permute.xlu0 %736
        %738 = vrot.lane.b32.xlu0 %v689, 48
        %v739 = vpop.permute.xlu0 %738
        %740 = vrot.lane.b32.xlu0 %v690, 48
        %v741 = vpop.permute.xlu0 %740
        %742 = vrot.lane.b32.xlu0 %v691, 48
        %v743 = vpop.permute.xlu0 %742
        %744 = vrot.lane.b32.xlu0 %v688, 32
        %v745 = vpop.permute.xlu0 %744
        %746 = vrot.lane.b32.xlu0 %v689, 32
        %v747 = vpop.permute.xlu0 %746
        %748 = vrot.lane.b32.xlu0 %v690, 32
        %v749 = vpop.permute.xlu0 %748
        %750 = vrot.lane.b32.xlu0 %v691, 32
        %v751 = vpop.permute.xlu0 %750
        %752 = vrot.lane.b32.xlu0 %v688, 16
        %v753 = vpop.permute.xlu0 %752
        %754 = vrot.lane.b32.xlu0 %v689, 16
        %v755 = vpop.permute.xlu0 %754
        %756 = vrot.lane.b32.xlu0 %v690, 16
        %v757 = vpop.permute.xlu0 %756
        %758 = vrot.lane.b32.xlu0 %v691, 16
        %v759 = vpop.permute.xlu0 %758
        %764 = vrot.lane.b32.xlu0 %v692, 112
        %v765 = vpop.permute.xlu0 %764
        %766 = vrot.lane.b32.xlu0 %v693, 112
        %v767 = vpop.permute.xlu0 %766
        %768 = vrot.lane.b32.xlu0 %v694, 112
        %v769 = vpop.permute.xlu0 %768
        %770 = vrot.lane.b32.xlu0 %v695, 112
        %v771 = vpop.permute.xlu0 %770
        %772 = vrot.lane.b32.xlu0 %v692, 96
        %v773 = vpop.permute.xlu0 %772
        %774 = vrot.lane.b32.xlu0 %v693, 96
        %v775 = vpop.permute.xlu0 %774
        %776 = vrot.lane.b32.xlu0 %v694, 96
        %v777 = vpop.permute.xlu0 %776
        %778 = vrot.lane.b32.xlu0 %v695, 96
        %v779 = vpop.permute.xlu0 %778
        %780 = vrot.lane.b32.xlu0 %v692, 80
        %v781 = vpop.permute.xlu0 %780
        %782 = vrot.lane.b32.xlu0 %v693, 80
        %v783 = vpop.permute.xlu0 %782
        %784 = vrot.lane.b32.xlu0 %v694, 80
        %v785 = vpop.permute.xlu0 %784
        %786 = vrot.lane.b32.xlu0 %v695, 80
        %v787 = vpop.permute.xlu0 %786
        %788 = vrot.lane.b32.xlu0 %v692, 64
        %v789 = vpop.permute.xlu0 %788
        %790 = vrot.lane.b32.xlu0 %v693, 64
        %v791 = vpop.permute.xlu0 %790
        %792 = vrot.lane.b32.xlu0 %v694, 64
        %v793 = vpop.permute.xlu0 %792
        %794 = vrot.lane.b32.xlu0 %v695, 64
        %v795 = vpop.permute.xlu0 %794
        %796 = vrot.lane.b32.xlu0 %v692, 48
        %v797 = vpop.permute.xlu0 %796
        %798 = vrot.lane.b32.xlu0 %v693, 48
        %v799 = vpop.permute.xlu0 %798
        %800 = vrot.lane.b32.xlu0 %v694, 48
        %v801 = vpop.permute.xlu0 %800
        %802 = vrot.lane.b32.xlu0 %v695, 48
        %v803 = vpop.permute.xlu0 %802
        %804 = vrot.lane.b32.xlu0 %v692, 32
        %v805 = vpop.permute.xlu0 %804
        %806 = vrot.lane.b32.xlu0 %v693, 32
        %v807 = vpop.permute.xlu0 %806
        %808 = vrot.lane.b32.xlu0 %v694, 32
        %v809 = vpop.permute.xlu0 %808
        %810 = vrot.lane.b32.xlu0 %v695, 32
        %v811 = vpop.permute.xlu0 %810
        %812 = vrot.lane.b32.xlu0 %v692, 16
        %v813 = vpop.permute.xlu0 %812
        %814 = vrot.lane.b32.xlu0 %v693, 16
        %v815 = vpop.permute.xlu0 %814
        %816 = vrot.lane.b32.xlu0 %v694, 16
        %v817 = vpop.permute.xlu0 %816
        %818 = vrot.lane.b32.xlu0 %v695, 16
        %v819 = vpop.permute.xlu0 %818
        %824 = vrot.lane.b32.xlu0 %v696, 112
        %v825 = vpop.permute.xlu0 %824
        %826 = vrot.lane.b32.xlu0 %v697, 112
        %v827 = vpop.permute.xlu0 %826
        %828 = vrot.lane.b32.xlu0 %v698, 112
        %v829 = vpop.permute.xlu0 %828
        %830 = vrot.lane.b32.xlu0 %v699, 112
        %v831 = vpop.permute.xlu0 %830
        %836 = vrot.lane.b32.xlu0 %v696, 96
        %v837 = vpop.permute.xlu0 %836
        %838 = vrot.lane.b32.xlu0 %v697, 96
        %v839 = vpop.permute.xlu0 %838
        %840 = vrot.lane.b32.xlu0 %v698, 96
        %v841 = vpop.permute.xlu0 %840
        %842 = vrot.lane.b32.xlu0 %v699, 96
        %v843 = vpop.permute.xlu0 %842
        %848 = vrot.lane.b32.xlu0 %v696, 80
        %v849 = vpop.permute.xlu0 %848
        %850 = vrot.lane.b32.xlu0 %v697, 80
        %v851 = vpop.permute.xlu0 %850
        %852 = vrot.lane.b32.xlu0 %v698, 80
        %v853 = vpop.permute.xlu0 %852
        %854 = vrot.lane.b32.xlu0 %v699, 80
        %v855 = vpop.permute.xlu0 %854
        %860 = vrot.lane.b32.xlu0 %v696, 64
        %v861 = vpop.permute.xlu0 %860
        %862 = vrot.lane.b32.xlu0 %v697, 64
        %v863 = vpop.permute.xlu0 %862
        %864 = vrot.lane.b32.xlu0 %v698, 64
        %v865 = vpop.permute.xlu0 %864
        %866 = vrot.lane.b32.xlu0 %v699, 64
        %v867 = vpop.permute.xlu0 %866
        %872 = vrot.lane.b32.xlu0 %v696, 48
        %v873 = vpop.permute.xlu0 %872
        %874 = vrot.lane.b32.xlu0 %v697, 48
        %v875 = vpop.permute.xlu0 %874
        %876 = vrot.lane.b32.xlu0 %v698, 48
        %v877 = vpop.permute.xlu0 %876
        %878 = vrot.lane.b32.xlu0 %v699, 48
        %v879 = vpop.permute.xlu0 %878
        %884 = vrot.lane.b32.xlu0 %v696, 32
        %v885 = vpop.permute.xlu0 %884
        %886 = vrot.lane.b32.xlu0 %v697, 32
        %v887 = vpop.permute.xlu0 %886
        %888 = vrot.lane.b32.xlu0 %v698, 32
        %v889 = vpop.permute.xlu0 %888
        %890 = vrot.lane.b32.xlu0 %v699, 32
        %v891 = vpop.permute.xlu0 %890
        %896 = vrot.lane.b32.xlu0 %v696, 16
        %v897 = vpop.permute.xlu0 %896
        %898 = vrot.lane.b32.xlu0 %v697, 16
        %v899 = vpop.permute.xlu0 %898
        %900 = vrot.lane.b32.xlu0 %v698, 16
        %v901 = vpop.permute.xlu0 %900
        %902 = vrot.lane.b32.xlu0 %v699, 16
        %v903 = vpop.permute.xlu0 %902
        %v908 = vld [vmem:[#allocation8] sm:$0xf]
        %v909 = vld [vmem:[#allocation8 + $0x4] sm:$0xf]
        %v910 = vld [vmem:[#allocation8 + $0x8] sm:$0xf]
        %v911 = vld [vmem:[#allocation8 + $0xc] sm:$0xf]
        %v912 = vld [vmem:[#allocation8 + $0x10] sm:$0xf]
        %v913 = vld [vmem:[#allocation8 + $0x14] sm:$0xf]
        %v914 = vld [vmem:[#allocation8 + $0x18] sm:$0xf]
        %v915 = vld [vmem:[#allocation8 + $0x1c] sm:$0xf]
        %v916 = vld [vmem:[#allocation8 + $0x20] sm:$0xf]
        %v917 = vld [vmem:[#allocation8 + $0x24] sm:$0xf]
        %v918 = vld [vmem:[#allocation8 + $0x28] sm:$0xf]
        %v919 = vld [vmem:[#allocation8 + $0x2c] sm:$0xf]
        %v920 = vld [vmem:[#allocation8 + $0x30] sm:$0xf]
        %v921 = vld [vmem:[#allocation8 + $0x34] sm:$0xf]
        %v922 = vld [vmem:[#allocation8 + $0x38] sm:$0xf]
        %v923 = vld [vmem:[#allocation8 + $0x3c] sm:$0xf]
        %v924 = vld [vmem:[#allocation8 + $0x40] sm:$0xf]
        %v925 = vld [vmem:[#allocation8 + $0x44] sm:$0xf]
        %v926 = vld [vmem:[#allocation8 + $0x48] sm:$0xf]
        %v927 = vld [vmem:[#allocation8 + $0x4c] sm:$0xf]
        %v928 = vld [vmem:[#allocation8 + $0x50] sm:$0xf]
        %v929 = vld [vmem:[#allocation8 + $0x54] sm:$0xf]
        %v930 = vld [vmem:[#allocation8 + $0x58] sm:$0xf]
        %v931 = vld [vmem:[#allocation8 + $0x5c] sm:$0xf]
        %v932 = vld [vmem:[#allocation8 + $0x60] sm:$0xf]
        %v933 = vld [vmem:[#allocation8 + $0x64] sm:$0xf]
        %v934 = vld [vmem:[#allocation8 + $0x68] sm:$0xf]
        %v935 = vld [vmem:[#allocation8 + $0x6c] sm:$0xf]
        %v936 = vld [vmem:[#allocation8 + $0x70] sm:$0xf]
        %v937 = vld [vmem:[#allocation8 + $0x74] sm:$0xf]
        %v938 = vld [vmem:[#allocation8 + $0x78] sm:$0xf]
        %v939 = vld [vmem:[#allocation8 + $0x7c] sm:$0xf]
        %v940 = vld [vmem:[#allocation8 + $0x80] sm:$0xf]
        %v941 = vld [vmem:[#allocation8 + $0x84] sm:$0xf]
        %v942 = vld [vmem:[#allocation8 + $0x88] sm:$0xf]
        %v943 = vld [vmem:[#allocation8 + $0x8c] sm:$0xf]
        %v944 = vld [vmem:[#allocation8 + $0x90] sm:$0xf]
        %v945 = vld [vmem:[#allocation8 + $0x94] sm:$0xf]
        %v946 = vld [vmem:[#allocation8 + $0x98] sm:$0xf]
        %v947 = vld [vmem:[#allocation8 + $0x9c] sm:$0xf]
        %v948 = vld [vmem:[#allocation8 + $0xa0] sm:$0xf]
        %v949 = vld [vmem:[#allocation8 + $0xa4] sm:$0xf]
        %v950 = vld [vmem:[#allocation8 + $0xa8] sm:$0xf]
        %v951 = vld [vmem:[#allocation8 + $0xac] sm:$0xf]
        %v952 = vld [vmem:[#allocation8 + $0xb0] sm:$0xf]
        %v953 = vld [vmem:[#allocation8 + $0xb4] sm:$0xf]
        %v954 = vld [vmem:[#allocation8 + $0xb8] sm:$0xf]
        %v955 = vld [vmem:[#allocation8 + $0xbc] sm:$0xf]
        %v956 = vld [vmem:[#allocation8 + $0xc0] sm:$0xf]
        %v957 = vld [vmem:[#allocation8 + $0xc4] sm:$0xf]
        %v958 = vld [vmem:[#allocation8 + $0xc8] sm:$0xf]
        %v959 = vld [vmem:[#allocation8 + $0xcc] sm:$0xf]
        %v960 = vld [vmem:[#allocation8 + $0xd0] sm:$0xf]
        %v961 = vld [vmem:[#allocation8 + $0xd4] sm:$0xf]
        %v962 = vld [vmem:[#allocation8 + $0xd8] sm:$0xf]
        %v963 = vld [vmem:[#allocation8 + $0xdc] sm:$0xf]
        %v964 = vld [vmem:[#allocation8 + $0xe0] sm:$0xf]
        %v965 = vld [vmem:[#allocation8 + $0xe4] sm:$0xf]
        %v966 = vld [vmem:[#allocation8 + $0xe8] sm:$0xf]
        %v967 = vld [vmem:[#allocation8 + $0xec] sm:$0xf]
        %v968 = vld [vmem:[#allocation8 + $0xf0] sm:$0xf]
        %v969 = vld [vmem:[#allocation8 + $0xf4] sm:$0xf]
        %v970 = vld [vmem:[#allocation8 + $0xf8] sm:$0xf]
        %v971 = vld [vmem:[#allocation8 + $0xfc] sm:$0xf]
        %v972 = vunpack.c.l.bf16 %v908
        %v973 = vunpack.c.l.bf16 %v909
        %v974 = vunpack.c.l.bf16 %v910
        %v975 = vunpack.c.l.bf16 %v911
        %v976 = vunpack.c.l.bf16 %v912
        %v977 = vunpack.c.l.bf16 %v913
        %v978 = vunpack.c.l.bf16 %v914
        %v979 = vunpack.c.l.bf16 %v915
        %v980 = vunpack.c.l.bf16 %v916
        %v981 = vunpack.c.l.bf16 %v917
        %v982 = vunpack.c.l.bf16 %v918
        %v983 = vunpack.c.l.bf16 %v919
        %v984 = vunpack.c.l.bf16 %v920
        %v985 = vunpack.c.l.bf16 %v921
        %v986 = vunpack.c.l.bf16 %v922
        %v987 = vunpack.c.l.bf16 %v923
        %v988 = vunpack.c.l.bf16 %v924
        %v989 = vunpack.c.l.bf16 %v925
        %v990 = vunpack.c.l.bf16 %v926
        %v991 = vunpack.c.l.bf16 %v927
        %v992 = vunpack.c.l.bf16 %v928
        %v993 = vunpack.c.l.bf16 %v929
        %v994 = vunpack.c.l.bf16 %v930
        %v995 = vunpack.c.l.bf16 %v931
        %v996 = vunpack.c.l.bf16 %v932
        %v997 = vunpack.c.l.bf16 %v933
        %v998 = vunpack.c.l.bf16 %v934
        %v999 = vunpack.c.l.bf16 %v935
        %v1000 = vunpack.c.l.bf16 %v936
        %v1001 = vunpack.c.l.bf16 %v937
        %v1002 = vunpack.c.l.bf16 %v938
        %v1003 = vunpack.c.l.bf16 %v939
        %v1004 = vunpack.c.l.bf16 %v940
        %v1005 = vunpack.c.l.bf16 %v941
        %v1006 = vunpack.c.l.bf16 %v942
        %v1007 = vunpack.c.l.bf16 %v943
        %v1008 = vunpack.c.l.bf16 %v944
        %v1009 = vunpack.c.l.bf16 %v945
        %v1010 = vunpack.c.l.bf16 %v946
        %v1011 = vunpack.c.l.bf16 %v947
        %v1012 = vunpack.c.l.bf16 %v948
        %v1013 = vunpack.c.l.bf16 %v949
        %v1014 = vunpack.c.l.bf16 %v950
        %v1015 = vunpack.c.l.bf16 %v951
        %v1016 = vunpack.c.l.bf16 %v952
        %v1017 = vunpack.c.l.bf16 %v953
        %v1018 = vunpack.c.l.bf16 %v954
        %v1019 = vunpack.c.l.bf16 %v955
        %v1020 = vunpack.c.l.bf16 %v956
        %v1021 = vunpack.c.l.bf16 %v957
        %v1022 = vunpack.c.l.bf16 %v958
        %v1023 = vunpack.c.l.bf16 %v959
        %v1024 = vunpack.c.l.bf16 %v960
        %v1025 = vunpack.c.l.bf16 %v961
        %v1026 = vunpack.c.l.bf16 %v962
        %v1027 = vunpack.c.l.bf16 %v963
        %v1028 = vunpack.c.l.bf16 %v964
        %v1029 = vunpack.c.l.bf16 %v965
        %v1030 = vunpack.c.l.bf16 %v966
        %v1031 = vunpack.c.l.bf16 %v967
        %v1032 = vunpack.c.l.bf16 %v968
        %v1033 = vunpack.c.l.bf16 %v969
        %v1034 = vunpack.c.l.bf16 %v970
        %v1035 = vunpack.c.l.bf16 %v971
        %vm1036 = vcmask 130048
        %v1038 = vsel %vm1036, %v688, 0
        %v1041 = vsel %vm1036, %v689, 0
        %v1044 = vsel %vm1036, %v690, 0
        %v1047 = vsel %vm1036, %v691, 0
        %v1050 = vsel %vm1036, %v692, 0
        %v1053 = vsel %vm1036, %v693, 0
        %v1056 = vsel %vm1036, %v694, 0
        %v1059 = vsel %vm1036, %v695, 0
        %1061 = vmatprep.subr.bf16.mxu0 0
        %1062 = vmatpush1.bf16.xpose.msra.mxu0 %v1050
        %1063 = vmatprep.subr.bf16.mxu0 0
        %1064 = vmatpush1.bf16.xpose.msra.mxu0 %v1053
        %1065 = vmatprep.subr.bf16.mxu0 0
        %1066 = vmatpush1.bf16.xpose.msra.mxu0 %v1056
        %1067 = vmatprep.subr.bf16.mxu0 0
        %1068 = vmatpush1.bf16.xpose.msra.mxu0 %v1059
        %1069 = vmatprep.subr.bf16.mxu0 0
        %1070 = vmatpush1.bf16.xpose.msra.mxu0 0
        %1071 = vmatprep.subr.bf16.mxu0 0
        %1072 = vmatpush1.bf16.xpose.msra.mxu0 0
        %1073 = vmatprep.subr.bf16.mxu0 0
        %1074 = vmatpush1.bf16.xpose.msra.mxu0 0
        %1075 = vmatprep.subr.bf16.mxu0 0
        %1076 = vmatpush1.bf16.xpose.msra.mxu0 0
        %1077 = vmatprep.subr.bf16.mxu0 0
        %1078 = vmatpush1.bf16.xpose.msra.mxu0 0
        %1079 = vmatprep.subr.bf16.mxu0 0
        %1080 = vmatpush1.bf16.xpose.msra.mxu0 0
        %1081 = vmatprep.subr.bf16.mxu0 0
        %1082 = vmatpush1.bf16.xpose.msra.mxu0 0
        %1083 = vmatprep.subr.bf16.mxu0 0
        %1084 = vmatpush1.bf16.xpose.msra.mxu0 0
        %1085 = vmatprep.subr.bf16.mxu0 0
        %1086 = vmatpush1.bf16.xpose.msra.mxu0 0
        %1087 = vmatprep.subr.bf16.mxu0 0
        %1088 = vmatpush1.bf16.xpose.msra.mxu0 0
        %1089 = vmatprep.subr.bf16.mxu0 0
        %1090 = vmatpush1.bf16.xpose.msra.mxu0 0
        %1091 = vmatprep.subr.bf16.mxu0 0
        %1092 = vmatpush1.bf16.xpose.msra.mxu0 0
        %1093 = vmatprep.mubr.bf16.mxu0 0
        %1094 = vmatmul.mubr.bf16.gmra.mrb[0].mxu0 %v1038
        %v1095 = vpop.f32.mrb[0].mxu0
        %v1096 = vadd.f32 %v972, %v1095
        %v1097 = vpop.f32.mrb[0].mxu0
        %v1098 = vpop.f32.mrb[0].mxu0
        %v1099 = vadd.f32 %v973, %v1098
        %v1100 = vpop.f32.mrb[0].mxu0
        %1101 = vmatprep.mubr.bf16.mxu0 0
        %1102 = vmatmul.mubr.bf16.gmra.mrb[0].mxu0 %v1041
        %v1103 = vpop.f32.mrb[0].mxu0
        %v1104 = vadd.f32 %v974, %v1103
        %v1105 = vpop.f32.mrb[0].mxu0
        %v1106 = vpop.f32.mrb[0].mxu0
        %v1107 = vadd.f32 %v975, %v1106
        %v1108 = vpop.f32.mrb[0].mxu0
        %1109 = vmatprep.mubr.bf16.mxu0 0
        %1110 = vmatmul.mubr.bf16.gmra.mrb[0].mxu0 %v1044
        %v1111 = vpop.f32.mrb[0].mxu0
        %v1112 = vadd.f32 %v976, %v1111
        %v1113 = vpop.f32.mrb[0].mxu0
        %v1114 = vpop.f32.mrb[0].mxu0
        %v1115 = vadd.f32 %v977, %v1114
        %v1116 = vpop.f32.mrb[0].mxu0
        %1117 = vmatprep.mubr.bf16.mxu0 0
        %1118 = vmatmul.mubr.bf16.gmra.mrb[0].mxu0 %v1047
        %v1119 = vpop.f32.mrb[0].mxu0
        %v1120 = vadd.f32 %v978, %v1119
        %v1121 = vpop.f32.mrb[0].mxu0
        %v1122 = vpop.f32.mrb[0].mxu0
        %v1123 = vadd.f32 %v979, %v1122
        %v1124 = vpop.f32.mrb[0].mxu0
        %1125 = vdwg.mxu0
        %v1127 = vsel %vm1036, %v705, 0
        %v1130 = vsel %vm1036, %v707, 0
        %v1133 = vsel %vm1036, %v709, 0
        %v1136 = vsel %vm1036, %v711, 0
        %v1139 = vsel %vm1036, %v765, 0
        %v1142 = vsel %vm1036, %v767, 0
        %v1145 = vsel %vm1036, %v769, 0
        %v1148 = vsel %vm1036, %v771, 0
        %1150 = vmatprep.subr.bf16.mxu0 0
        %1151 = vmatpush1.bf16.xpose.msra.mxu0 %v1139
        %1152 = vmatprep.subr.bf16.mxu0 0
        %1153 = vmatpush1.bf16.xpose.msra.mxu0 %v1142
        %1154 = vmatprep.subr.bf16.mxu0 0
        %1155 = vmatpush1.bf16.xpose.msra.mxu0 %v1145
        %1156 = vmatprep.subr.bf16.mxu0 0
        %1157 = vmatpush1.bf16.xpose.msra.mxu0 %v1148
        %1158 = vmatprep.subr.bf16.mxu0 0
        %1159 = vmatpush1.bf16.xpose.msra.mxu0 0
        %1160 = vmatprep.subr.bf16.mxu0 0
        %1161 = vmatpush1.bf16.xpose.msra.mxu0 0
        %1162 = vmatprep.subr.bf16.mxu0 0
        %1163 = vmatpush1.bf16.xpose.msra.mxu0 0
        %1164 = vmatprep.subr.bf16.mxu0 0
        %1165 = vmatpush1.bf16.xpose.msra.mxu0 0
        %1166 = vmatprep.subr.bf16.mxu0 0
        %1167 = vmatpush1.bf16.xpose.msra.mxu0 0
        %1168 = vmatprep.subr.bf16.mxu0 0
        %1169 = vmatpush1.bf16.xpose.msra.mxu0 0
        %1170 = vmatprep.subr.bf16.mxu0 0
        %1171 = vmatpush1.bf16.xpose.msra.mxu0 0
        %1172 = vmatprep.subr.bf16.mxu0 0
        %1173 = vmatpush1.bf16.xpose.msra.mxu0 0
        %1174 = vmatprep.subr.bf16.mxu0 0
        %1175 = vmatpush1.bf16.xpose.msra.mxu0 0
        %1176 = vmatprep.subr.bf16.mxu0 0
        %1177 = vmatpush1.bf16.xpose.msra.mxu0 0
        %1178 = vmatprep.subr.bf16.mxu0 0
        %1179 = vmatpush1.bf16.xpose.msra.mxu0 0
        %1180 = vmatprep.subr.bf16.mxu0 0
        %1181 = vmatpush1.bf16.xpose.msra.mxu0 0
        %1182 = vmatprep.mubr.bf16.mxu0 0
        %1183 = vmatmul.mubr.bf16.gmra.mrb[0].mxu0 %v1127
        %v1184 = vpop.f32.mrb[0].mxu0
        %v1185 = vadd.f32 %v980, %v1184
        %v1186 = vpop.f32.mrb[0].mxu0
        %v1187 = vpop.f32.mrb[0].mxu0
        %v1188 = vadd.f32 %v981, %v1187
        %v1189 = vpop.f32.mrb[0].mxu0
        %1190 = vmatprep.mubr.bf16.mxu0 0
        %1191 = vmatmul.mubr.bf16.gmra.mrb[0].mxu0 %v1130
        %v1192 = vpop.f32.mrb[0].mxu0
        %v1193 = vadd.f32 %v982, %v1192
        %v1194 = vpop.f32.mrb[0].mxu0
        %v1195 = vpop.f32.mrb[0].mxu0
        %v1196 = vadd.f32 %v983, %v1195
        %v1197 = vpop.f32.mrb[0].mxu0
        %1198 = vmatprep.mubr.bf16.mxu0 0
        %1199 = vmatmul.mubr.bf16.gmra.mrb[0].mxu0 %v1133
        %v1200 = vpop.f32.mrb[0].mxu0
        %v1201 = vadd.f32 %v984, %v1200
        %v1202 = vpop.f32.mrb[0].mxu0
        %v1203 = vpop.f32.mrb[0].mxu0
        %v1204 = vadd.f32 %v985, %v1203
        %v1205 = vpop.f32.mrb[0].mxu0
        %1206 = vmatprep.mubr.bf16.mxu0 0
        %1207 = vmatmul.mubr.bf16.gmra.mrb[0].mxu0 %v1136
        %v1208 = vpop.f32.mrb[0].mxu0
        %v1209 = vadd.f32 %v986, %v1208
        %v1210 = vpop.f32.mrb[0].mxu0
        %v1211 = vpop.f32.mrb[0].mxu0
        %v1212 = vadd.f32 %v987, %v1211
        %v1213 = vpop.f32.mrb[0].mxu0
        %1214 = vdwg.mxu0
        %v1216 = vsel %vm1036, %v713, 0
        %v1219 = vsel %vm1036, %v715, 0
        %v1222 = vsel %vm1036, %v717, 0
        %v1225 = vsel %vm1036, %v719, 0
        %v1228 = vsel %vm1036, %v773, 0
        %v1231 = vsel %vm1036, %v775, 0
        %v1234 = vsel %vm1036, %v777, 0
        %v1237 = vsel %vm1036, %v779, 0
        %1239 = vmatprep.subr.bf16.mxu0 0
        %1240 = vmatpush1.bf16.xpose.msra.mxu0 %v1228
        %1241 = vmatprep.subr.bf16.mxu0 0
        %1242 = vmatpush1.bf16.xpose.msra.mxu0 %v1231
        %1243 = vmatprep.subr.bf16.mxu0 0
        %1244 = vmatpush1.bf16.xpose.msra.mxu0 %v1234
        %1245 = vmatprep.subr.bf16.mxu0 0
        %1246 = vmatpush1.bf16.xpose.msra.mxu0 %v1237
        %1247 = vmatprep.subr.bf16.mxu0 0
        %1248 = vmatpush1.bf16.xpose.msra.mxu0 0
        %1249 = vmatprep.subr.bf16.mxu0 0
        %1250 = vmatpush1.bf16.xpose.msra.mxu0 0
        %1251 = vmatprep.subr.bf16.mxu0 0
        %1252 = vmatpush1.bf16.xpose.msra.mxu0 0
        %1253 = vmatprep.subr.bf16.mxu0 0
        %1254 = vmatpush1.bf16.xpose.msra.mxu0 0
        %1255 = vmatprep.subr.bf16.mxu0 0
        %1256 = vmatpush1.bf16.xpose.msra.mxu0 0
        %1257 = vmatprep.subr.bf16.mxu0 0
        %1258 = vmatpush1.bf16.xpose.msra.mxu0 0
        %1259 = vmatprep.subr.bf16.mxu0 0
        %1260 = vmatpush1.bf16.xpose.msra.mxu0 0
        %1261 = vmatprep.subr.bf16.mxu0 0
        %1262 = vmatpush1.bf16.xpose.msra.mxu0 0
        %1263 = vmatprep.subr.bf16.mxu0 0
        %1264 = vmatpush1.bf16.xpose.msra.mxu0 0
        %1265 = vmatprep.subr.bf16.mxu0 0
        %1266 = vmatpush1.bf16.xpose.msra.mxu0 0
        %1267 = vmatprep.subr.bf16.mxu0 0
        %1268 = vmatpush1.bf16.xpose.msra.mxu0 0
        %1269 = vmatprep.subr.bf16.mxu0 0
        %1270 = vmatpush1.bf16.xpose.msra.mxu0 0
        %1271 = vmatprep.mubr.bf16.mxu0 0
        %1272 = vmatmul.mubr.bf16.gmra.mrb[0].mxu0 %v1216
        %v1273 = vpop.f32.mrb[0].mxu0
        %v1274 = vadd.f32 %v988, %v1273
        %v1275 = vpop.f32.mrb[0].mxu0
        %v1276 = vpop.f32.mrb[0].mxu0
        %v1277 = vadd.f32 %v989, %v1276
        %v1278 = vpop.f32.mrb[0].mxu0
        %1279 = vmatprep.mubr.bf16.mxu0 0
        %1280 = vmatmul.mubr.bf16.gmra.mrb[0].mxu0 %v1219
        %v1281 = vpop.f32.mrb[0].mxu0
        %v1282 = vadd.f32 %v990, %v1281
        %v1283 = vpop.f32.mrb[0].mxu0
        %v1284 = vpop.f32.mrb[0].mxu0
        %v1285 = vadd.f32 %v991, %v1284
        %v1286 = vpop.f32.mrb[0].mxu0
        %1287 = vmatprep.mubr.bf16.mxu0 0
        %1288 = vmatmul.mubr.bf16.gmra.mrb[0].mxu0 %v1222
        %v1289 = vpop.f32.mrb[0].mxu0
        %v1290 = vadd.f32 %v992, %v1289
        %v1291 = vpop.f32.mrb[0].mxu0
        %v1292 = vpop.f32.mrb[0].mxu0
        %v1293 = vadd.f32 %v993, %v1292
        %v1294 = vpop.f32.mrb[0].mxu0
        %1295 = vmatprep.mubr.bf16.mxu0 0
        %1296 = vmatmul.mubr.bf16.gmra.mrb[0].mxu0 %v1225
        %v1297 = vpop.f32.mrb[0].mxu0
        %v1298 = vadd.f32 %v994, %v1297
        %v1299 = vpop.f32.mrb[0].mxu0
        %v1300 = vpop.f32.mrb[0].mxu0
        %v1301 = vadd.f32 %v995, %v1300
        %v1302 = vpop.f32.mrb[0].mxu0
        %1303 = vdwg.mxu0
        %v1305 = vsel %vm1036, %v721, 0
        %v1308 = vsel %vm1036, %v723, 0
        %v1311 = vsel %vm1036, %v725, 0
        %v1314 = vsel %vm1036, %v727, 0
        %v1317 = vsel %vm1036, %v781, 0
        %v1320 = vsel %vm1036, %v783, 0
        %v1323 = vsel %vm1036, %v785, 0
        %v1326 = vsel %vm1036, %v787, 0
        %1328 = vmatprep.subr.bf16.mxu0 0
        %1329 = vmatpush1.bf16.xpose.msra.mxu0 %v1317
        %1330 = vmatprep.subr.bf16.mxu0 0
        %1331 = vmatpush1.bf16.xpose.msra.mxu0 %v1320
        %1332 = vmatprep.subr.bf16.mxu0 0
        %1333 = vmatpush1.bf16.xpose.msra.mxu0 %v1323
        %1334 = vmatprep.subr.bf16.mxu0 0
        %1335 = vmatpush1.bf16.xpose.msra.mxu0 %v1326
        %1336 = vmatprep.subr.bf16.mxu0 0
        %1337 = vmatpush1.bf16.xpose.msra.mxu0 0
        %1338 = vmatprep.subr.bf16.mxu0 0
        %1339 = vmatpush1.bf16.xpose.msra.mxu0 0
        %1340 = vmatprep.subr.bf16.mxu0 0
        %1341 = vmatpush1.bf16.xpose.msra.mxu0 0
        %1342 = vmatprep.subr.bf16.mxu0 0
        %1343 = vmatpush1.bf16.xpose.msra.mxu0 0
        %1344 = vmatprep.subr.bf16.mxu0 0
        %1345 = vmatpush1.bf16.xpose.msra.mxu0 0
        %1346 = vmatprep.subr.bf16.mxu0 0
        %1347 = vmatpush1.bf16.xpose.msra.mxu0 0
        %1348 = vmatprep.subr.bf16.mxu0 0
        %1349 = vmatpush1.bf16.xpose.msra.mxu0 0
        %1350 = vmatprep.subr.bf16.mxu0 0
        %1351 = vmatpush1.bf16.xpose.msra.mxu0 0
        %1352 = vmatprep.subr.bf16.mxu0 0
        %1353 = vmatpush1.bf16.xpose.msra.mxu0 0
        %1354 = vmatprep.subr.bf16.mxu0 0
        %1355 = vmatpush1.bf16.xpose.msra.mxu0 0
        %1356 = vmatprep.subr.bf16.mxu0 0
        %1357 = vmatpush1.bf16.xpose.msra.mxu0 0
        %1358 = vmatprep.subr.bf16.mxu0 0
        %1359 = vmatpush1.bf16.xpose.msra.mxu0 0
        %1360 = vmatprep.mubr.bf16.mxu0 0
        %1361 = vmatmul.mubr.bf16.gmra.mrb[0].mxu0 %v1305
        %v1362 = vpop.f32.mrb[0].mxu0
        %v1363 = vadd.f32 %v996, %v1362
        %v1364 = vpop.f32.mrb[0].mxu0
        %v1365 = vpop.f32.mrb[0].mxu0
        %v1366 = vadd.f32 %v997, %v1365
        %v1367 = vpop.f32.mrb[0].mxu0
        %1368 = vmatprep.mubr.bf16.mxu0 0
        %1369 = vmatmul.mubr.bf16.gmra.mrb[0].mxu0 %v1308
        %v1370 = vpop.f32.mrb[0].mxu0
        %v1371 = vadd.f32 %v998, %v1370
        %v1372 = vpop.f32.mrb[0].mxu0
        %v1373 = vpop.f32.mrb[0].mxu0
        %v1374 = vadd.f32 %v999, %v1373
        %v1375 = vpop.f32.mrb[0].mxu0
        %1376 = vmatprep.mubr.bf16.mxu0 0
        %1377 = vmatmul.mubr.bf16.gmra.mrb[0].mxu0 %v1311
        %v1378 = vpop.f32.mrb[0].mxu0
        %v1379 = vadd.f32 %v1000, %v1378
        %v1380 = vpop.f32.mrb[0].mxu0
        %v1381 = vpop.f32.mrb[0].mxu0
        %v1382 = vadd.f32 %v1001, %v1381
        %v1383 = vpop.f32.mrb[0].mxu0
        %1384 = vmatprep.mubr.bf16.mxu0 0
        %1385 = vmatmul.mubr.bf16.gmra.mrb[0].mxu0 %v1314
        %v1386 = vpop.f32.mrb[0].mxu0
        %v1387 = vadd.f32 %v1002, %v1386
        %v1388 = vpop.f32.mrb[0].mxu0
        %v1389 = vpop.f32.mrb[0].mxu0
        %v1390 = vadd.f32 %v1003, %v1389
        %v1391 = vpop.f32.mrb[0].mxu0
        %1392 = vdwg.mxu0
        %v1394 = vsel %vm1036, %v729, 0
        %v1397 = vsel %vm1036, %v731, 0
        %v1400 = vsel %vm1036, %v733, 0
        %v1403 = vsel %vm1036, %v735, 0
        %v1406 = vsel %vm1036, %v789, 0
        %v1409 = vsel %vm1036, %v791, 0
        %v1412 = vsel %vm1036, %v793, 0
        %v1415 = vsel %vm1036, %v795, 0
        %1417 = vmatprep.subr.bf16.mxu0 0
        %1418 = vmatpush1.bf16.xpose.msra.mxu0 %v1406
        %1419 = vmatprep.subr.bf16.mxu0 0
        %1420 = vmatpush1.bf16.xpose.msra.mxu0 %v1409
        %1421 = vmatprep.subr.bf16.mxu0 0
        %1422 = vmatpush1.bf16.xpose.msra.mxu0 %v1412
        %1423 = vmatprep.subr.bf16.mxu0 0
        %1424 = vmatpush1.bf16.xpose.msra.mxu0 %v1415
        %1425 = vmatprep.subr.bf16.mxu0 0
        %1426 = vmatpush1.bf16.xpose.msra.mxu0 0
        %1427 = vmatprep.subr.bf16.mxu0 0
        %1428 = vmatpush1.bf16.xpose.msra.mxu0 0
        %1429 = vmatprep.subr.bf16.mxu0 0
        %1430 = vmatpush1.bf16.xpose.msra.mxu0 0
        %1431 = vmatprep.subr.bf16.mxu0 0
        %1432 = vmatpush1.bf16.xpose.msra.mxu0 0
        %1433 = vmatprep.subr.bf16.mxu0 0
        %1434 = vmatpush1.bf16.xpose.msra.mxu0 0
        %1435 = vmatprep.subr.bf16.mxu0 0
        %1436 = vmatpush1.bf16.xpose.msra.mxu0 0
        %1437 = vmatprep.subr.bf16.mxu0 0
        %1438 = vmatpush1.bf16.xpose.msra.mxu0 0
        %1439 = vmatprep.subr.bf16.mxu0 0
        %1440 = vmatpush1.bf16.xpose.msra.mxu0 0
        %1441 = vmatprep.subr.bf16.mxu0 0
        %1442 = vmatpush1.bf16.xpose.msra.mxu0 0
        %1443 = vmatprep.subr.bf16.mxu0 0
        %1444 = vmatpush1.bf16.xpose.msra.mxu0 0
        %1445 = vmatprep.subr.bf16.mxu0 0
        %1446 = vmatpush1.bf16.xpose.msra.mxu0 0
        %1447 = vmatprep.subr.bf16.mxu0 0
        %1448 = vmatpush1.bf16.xpose.msra.mxu0 0
        %1449 = vmatprep.mubr.bf16.mxu0 0
        %1450 = vmatmul.mubr.bf16.gmra.mrb[0].mxu0 %v1394
        %v1451 = vpop.f32.mrb[0].mxu0
        %v1452 = vadd.f32 %v1004, %v1451
        %v1453 = vpop.f32.mrb[0].mxu0
        %v1454 = vpop.f32.mrb[0].mxu0
        %v1455 = vadd.f32 %v1005, %v1454
        %v1456 = vpop.f32.mrb[0].mxu0
        %1457 = vmatprep.mubr.bf16.mxu0 0
        %1458 = vmatmul.mubr.bf16.gmra.mrb[0].mxu0 %v1397
        %v1459 = vpop.f32.mrb[0].mxu0
        %v1460 = vadd.f32 %v1006, %v1459
        %v1461 = vpop.f32.mrb[0].mxu0
        %v1462 = vpop.f32.mrb[0].mxu0
        %v1463 = vadd.f32 %v1007, %v1462
        %v1464 = vpop.f32.mrb[0].mxu0
        %1465 = vmatprep.mubr.bf16.mxu0 0
        %1466 = vmatmul.mubr.bf16.gmra.mrb[0].mxu0 %v1400
        %v1467 = vpop.f32.mrb[0].mxu0
        %v1468 = vadd.f32 %v1008, %v1467
        %v1469 = vpop.f32.mrb[0].mxu0
        %v1470 = vpop.f32.mrb[0].mxu0
        %v1471 = vadd.f32 %v1009, %v1470
        %v1472 = vpop.f32.mrb[0].mxu0
        %1473 = vmatprep.mubr.bf16.mxu0 0
        %1474 = vmatmul.mubr.bf16.gmra.mrb[0].mxu0 %v1403
        %v1475 = vpop.f32.mrb[0].mxu0
        %v1476 = vadd.f32 %v1010, %v1475
        %v1477 = vpop.f32.mrb[0].mxu0
        %v1478 = vpop.f32.mrb[0].mxu0
        %v1479 = vadd.f32 %v1011, %v1478
        %v1480 = vpop.f32.mrb[0].mxu0
        %1481 = vdwg.mxu0
        %v1483 = vsel %vm1036, %v737, 0
        %v1486 = vsel %vm1036, %v739, 0
        %v1489 = vsel %vm1036, %v741, 0
        %v1492 = vsel %vm1036, %v743, 0
        %v1495 = vsel %vm1036, %v797, 0
        %v1498 = vsel %vm1036, %v799, 0
        %v1501 = vsel %vm1036, %v801, 0
        %v1504 = vsel %vm1036, %v803, 0
        %1506 = vmatprep.subr.bf16.mxu0 0
        %1507 = vmatpush1.bf16.xpose.msra.mxu0 %v1495
        %1508 = vmatprep.subr.bf16.mxu0 0
        %1509 = vmatpush1.bf16.xpose.msra.mxu0 %v1498
        %1510 = vmatprep.subr.bf16.mxu0 0
        %1511 = vmatpush1.bf16.xpose.msra.mxu0 %v1501
        %1512 = vmatprep.subr.bf16.mxu0 0
        %1513 = vmatpush1.bf16.xpose.msra.mxu0 %v1504
        %1514 = vmatprep.subr.bf16.mxu0 0
        %1515 = vmatpush1.bf16.xpose.msra.mxu0 0
        %1516 = vmatprep.subr.bf16.mxu0 0
        %1517 = vmatpush1.bf16.xpose.msra.mxu0 0
        %1518 = vmatprep.subr.bf16.mxu0 0
        %1519 = vmatpush1.bf16.xpose.msra.mxu0 0
        %1520 = vmatprep.subr.bf16.mxu0 0
        %1521 = vmatpush1.bf16.xpose.msra.mxu0 0
        %1522 = vmatprep.subr.bf16.mxu0 0
        %1523 = vmatpush1.bf16.xpose.msra.mxu0 0
        %1524 = vmatprep.subr.bf16.mxu0 0
        %1525 = vmatpush1.bf16.xpose.msra.mxu0 0
        %1526 = vmatprep.subr.bf16.mxu0 0
        %1527 = vmatpush1.bf16.xpose.msra.mxu0 0
        %1528 = vmatprep.subr.bf16.mxu0 0
        %1529 = vmatpush1.bf16.xpose.msra.mxu0 0
        %1530 = vmatprep.subr.bf16.mxu0 0
        %1531 = vmatpush1.bf16.xpose.msra.mxu0 0
        %1532 = vmatprep.subr.bf16.mxu0 0
        %1533 = vmatpush1.bf16.xpose.msra.mxu0 0
        %1534 = vmatprep.subr.bf16.mxu0 0
        %1535 = vmatpush1.bf16.xpose.msra.mxu0 0
        %1536 = vmatprep.subr.bf16.mxu0 0
        %1537 = vmatpush1.bf16.xpose.msra.mxu0 0
        %1538 = vmatprep.mubr.bf16.mxu0 0
        %1539 = vmatmul.mubr.bf16.gmra.mrb[0].mxu0 %v1483
        %v1540 = vpop.f32.mrb[0].mxu0
        %v1541 = vadd.f32 %v1012, %v1540
        %v1542 = vpop.f32.mrb[0].mxu0
        %v1543 = vpop.f32.mrb[0].mxu0
        %v1544 = vadd.f32 %v1013, %v1543
        %v1545 = vpop.f32.mrb[0].mxu0
        %1546 = vmatprep.mubr.bf16.mxu0 0
        %1547 = vmatmul.mubr.bf16.gmra.mrb[0].mxu0 %v1486
        %v1548 = vpop.f32.mrb[0].mxu0
        %v1549 = vadd.f32 %v1014, %v1548
        %v1550 = vpop.f32.mrb[0].mxu0
        %v1551 = vpop.f32.mrb[0].mxu0
        %v1552 = vadd.f32 %v1015, %v1551
        %v1553 = vpop.f32.mrb[0].mxu0
        %1554 = vmatprep.mubr.bf16.mxu0 0
        %1555 = vmatmul.mubr.bf16.gmra.mrb[0].mxu0 %v1489
        %v1556 = vpop.f32.mrb[0].mxu0
        %v1557 = vadd.f32 %v1016, %v1556
        %v1558 = vpop.f32.mrb[0].mxu0
        %v1559 = vpop.f32.mrb[0].mxu0
        %v1560 = vadd.f32 %v1017, %v1559
        %v1561 = vpop.f32.mrb[0].mxu0
        %1562 = vmatprep.mubr.bf16.mxu0 0
        %1563 = vmatmul.mubr.bf16.gmra.mrb[0].mxu0 %v1492
        %v1564 = vpop.f32.mrb[0].mxu0
        %v1565 = vadd.f32 %v1018, %v1564
        %v1566 = vpop.f32.mrb[0].mxu0
        %v1567 = vpop.f32.mrb[0].mxu0
        %v1568 = vadd.f32 %v1019, %v1567
        %v1569 = vpop.f32.mrb[0].mxu0
        %1570 = vdwg.mxu0
        %v1572 = vsel %vm1036, %v745, 0
        %v1575 = vsel %vm1036, %v747, 0
        %v1578 = vsel %vm1036, %v749, 0
        %v1581 = vsel %vm1036, %v751, 0
        %v1584 = vsel %vm1036, %v805, 0
        %v1587 = vsel %vm1036, %v807, 0
        %v1590 = vsel %vm1036, %v809, 0
        %v1593 = vsel %vm1036, %v811, 0
        %1595 = vmatprep.subr.bf16.mxu0 0
        %1596 = vmatpush1.bf16.xpose.msra.mxu0 %v1584
        %1597 = vmatprep.subr.bf16.mxu0 0
        %1598 = vmatpush1.bf16.xpose.msra.mxu0 %v1587
        %1599 = vmatprep.subr.bf16.mxu0 0
        %1600 = vmatpush1.bf16.xpose.msra.mxu0 %v1590
        %1601 = vmatprep.subr.bf16.mxu0 0
        %1602 = vmatpush1.bf16.xpose.msra.mxu0 %v1593
        %1603 = vmatprep.subr.bf16.mxu0 0
        %1604 = vmatpush1.bf16.xpose.msra.mxu0 0
        %1605 = vmatprep.subr.bf16.mxu0 0
        %1606 = vmatpush1.bf16.xpose.msra.mxu0 0
        %1607 = vmatprep.subr.bf16.mxu0 0
        %1608 = vmatpush1.bf16.xpose.msra.mxu0 0
        %1609 = vmatprep.subr.bf16.mxu0 0
        %1610 = vmatpush1.bf16.xpose.msra.mxu0 0
        %1611 = vmatprep.subr.bf16.mxu0 0
        %1612 = vmatpush1.bf16.xpose.msra.mxu0 0
        %1613 = vmatprep.subr.bf16.mxu0 0
        %1614 = vmatpush1.bf16.xpose.msra.mxu0 0
        %1615 = vmatprep.subr.bf16.mxu0 0
        %1616 = vmatpush1.bf16.xpose.msra.mxu0 0
        %1617 = vmatprep.subr.bf16.mxu0 0
        %1618 = vmatpush1.bf16.xpose.msra.mxu0 0
        %1619 = vmatprep.subr.bf16.mxu0 0
        %1620 = vmatpush1.bf16.xpose.msra.mxu0 0
        %1621 = vmatprep.subr.bf16.mxu0 0
        %1622 = vmatpush1.bf16.xpose.msra.mxu0 0
        %1623 = vmatprep.subr.bf16.mxu0 0
        %1624 = vmatpush1.bf16.xpose.msra.mxu0 0
        %1625 = vmatprep.subr.bf16.mxu0 0
        %1626 = vmatpush1.bf16.xpose.msra.mxu0 0
        %1627 = vmatprep.mubr.bf16.mxu0 0
        %1628 = vmatmul.mubr.bf16.gmra.mrb[0].mxu0 %v1572
        %v1629 = vpop.f32.mrb[0].mxu0
        %v1630 = vadd.f32 %v1020, %v1629
        %v1631 = vpop.f32.mrb[0].mxu0
        %v1632 = vpop.f32.mrb[0].mxu0
        %v1633 = vadd.f32 %v1021, %v1632
        %v1634 = vpop.f32.mrb[0].mxu0
        %1635 = vmatprep.mubr.bf16.mxu0 0
        %1636 = vmatmul.mubr.bf16.gmra.mrb[0].mxu0 %v1575
        %v1637 = vpop.f32.mrb[0].mxu0
        %v1638 = vadd.f32 %v1022, %v1637
        %v1639 = vpop.f32.mrb[0].mxu0
        %v1640 = vpop.f32.mrb[0].mxu0
        %v1641 = vadd.f32 %v1023, %v1640
        %v1642 = vpop.f32.mrb[0].mxu0
        %1643 = vmatprep.mubr.bf16.mxu0 0
        %1644 = vmatmul.mubr.bf16.gmra.mrb[0].mxu0 %v1578
        %v1645 = vpop.f32.mrb[0].mxu0
        %v1646 = vadd.f32 %v1024, %v1645
        %v1647 = vpop.f32.mrb[0].mxu0
        %v1648 = vpop.f32.mrb[0].mxu0
        %v1649 = vadd.f32 %v1025, %v1648
        %v1650 = vpop.f32.mrb[0].mxu0
        %1651 = vmatprep.mubr.bf16.mxu0 0
        %1652 = vmatmul.mubr.bf16.gmra.mrb[0].mxu0 %v1581
        %v1653 = vpop.f32.mrb[0].mxu0
        %v1654 = vadd.f32 %v1026, %v1653
        %v1655 = vpop.f32.mrb[0].mxu0
        %v1656 = vpop.f32.mrb[0].mxu0
        %v1657 = vadd.f32 %v1027, %v1656
        %v1658 = vpop.f32.mrb[0].mxu0
        %1659 = vdwg.mxu0
        %v1661 = vsel %vm1036, %v753, 0
        %v1664 = vsel %vm1036, %v755, 0
        %v1667 = vsel %vm1036, %v757, 0
        %v1670 = vsel %vm1036, %v759, 0
        %v1673 = vsel %vm1036, %v813, 0
        %v1676 = vsel %vm1036, %v815, 0
        %v1679 = vsel %vm1036, %v817, 0
        %v1682 = vsel %vm1036, %v819, 0
        %1684 = vmatprep.subr.bf16.mxu0 0
        %1685 = vmatpush1.bf16.xpose.msra.mxu0 %v1673
        %1686 = vmatprep.subr.bf16.mxu0 0
        %1687 = vmatpush1.bf16.xpose.msra.mxu0 %v1676
        %1688 = vmatprep.subr.bf16.mxu0 0
        %1689 = vmatpush1.bf16.xpose.msra.mxu0 %v1679
        %1690 = vmatprep.subr.bf16.mxu0 0
        %1691 = vmatpush1.bf16.xpose.msra.mxu0 %v1682
        %1692 = vmatprep.subr.bf16.mxu0 0
        %1693 = vmatpush1.bf16.xpose.msra.mxu0 0
        %1694 = vmatprep.subr.bf16.mxu0 0
        %1695 = vmatpush1.bf16.xpose.msra.mxu0 0
        %1696 = vmatprep.subr.bf16.mxu0 0
        %1697 = vmatpush1.bf16.xpose.msra.mxu0 0
        %1698 = vmatprep.subr.bf16.mxu0 0
        %1699 = vmatpush1.bf16.xpose.msra.mxu0 0
        %1700 = vmatprep.subr.bf16.mxu0 0
        %1701 = vmatpush1.bf16.xpose.msra.mxu0 0
        %1702 = vmatprep.subr.bf16.mxu0 0
        %1703 = vmatpush1.bf16.xpose.msra.mxu0 0
        %1704 = vmatprep.subr.bf16.mxu0 0
        %1705 = vmatpush1.bf16.xpose.msra.mxu0 0
        %1706 = vmatprep.subr.bf16.mxu0 0
        %1707 = vmatpush1.bf16.xpose.msra.mxu0 0
        %1708 = vmatprep.subr.bf16.mxu0 0
        %1709 = vmatpush1.bf16.xpose.msra.mxu0 0
        %1710 = vmatprep.subr.bf16.mxu0 0
        %1711 = vmatpush1.bf16.xpose.msra.mxu0 0
        %1712 = vmatprep.subr.bf16.mxu0 0
        %1713 = vmatpush1.bf16.xpose.msra.mxu0 0
        %1714 = vmatprep.subr.bf16.mxu0 0
        %1715 = vmatpush1.bf16.xpose.msra.mxu0 0
        %1716 = vmatprep.mubr.bf16.mxu0 0
        %1717 = vmatmul.mubr.bf16.gmra.mrb[0].mxu0 %v1661
        %v1718 = vpop.f32.mrb[0].mxu0
        %v1719 = vadd.f32 %v1028, %v1718
        %v1720 = vpop.f32.mrb[0].mxu0
        %v1721 = vpop.f32.mrb[0].mxu0
        %v1722 = vadd.f32 %v1029, %v1721
        %v1723 = vpop.f32.mrb[0].mxu0
        %1724 = vmatprep.mubr.bf16.mxu0 0
        %1725 = vmatmul.mubr.bf16.gmra.mrb[0].mxu0 %v1664
        %v1726 = vpop.f32.mrb[0].mxu0
        %v1727 = vadd.f32 %v1030, %v1726
        %v1728 = vpop.f32.mrb[0].mxu0
        %v1729 = vpop.f32.mrb[0].mxu0
        %v1730 = vadd.f32 %v1031, %v1729
        %v1731 = vpop.f32.mrb[0].mxu0
        %1732 = vmatprep.mubr.bf16.mxu0 0
        %1733 = vmatmul.mubr.bf16.gmra.mrb[0].mxu0 %v1667
        %v1734 = vpop.f32.mrb[0].mxu0
        %v1735 = vadd.f32 %v1032, %v1734
        %v1736 = vpop.f32.mrb[0].mxu0
        %v1737 = vpop.f32.mrb[0].mxu0
        %v1738 = vadd.f32 %v1033, %v1737
        %v1739 = vpop.f32.mrb[0].mxu0
        %1740 = vmatprep.mubr.bf16.mxu0 0
        %1741 = vmatmul.mubr.bf16.gmra.mrb[0].mxu0 %v1670
        %v1742 = vpop.f32.mrb[0].mxu0
        %v1743 = vadd.f32 %v1034, %v1742
        %v1744 = vpop.f32.mrb[0].mxu0
        %v1745 = vpop.f32.mrb[0].mxu0
        %v1746 = vadd.f32 %v1035, %v1745
        %v1747 = vpop.f32.mrb[0].mxu0
        %1748 = vdwg.mxu0
        %vm1749 = vcmask 523264
        %v1750 = vsel %vm1749, %v1096, -inf
        %1751 = vmax.xlane.f32.xlu0 %v1750
        %v1752 = vpop.xlane.xlu0 %1751
        %v1753 = vsel %vm1749, %v1099, -inf
        %1754 = vmax.xlane.f32.xlu0 %v1753
        %v1755 = vpop.xlane.xlu0 %1754
        %v1756 = vsel %vm1749, %v1104, -inf
        %1757 = vmax.xlane.f32.xlu0 %v1756
        %v1758 = vpop.xlane.xlu0 %1757
        %v1759 = vsel %vm1749, %v1107, -inf
        %1760 = vmax.xlane.f32.xlu0 %v1759
        %v1761 = vpop.xlane.xlu0 %1760
        %v1762 = vsel %vm1749, %v1112, -inf
        %1763 = vmax.xlane.f32.xlu0 %v1762
        %v1764 = vpop.xlane.xlu0 %1763
        %v1765 = vsel %vm1749, %v1115, -inf
        %1766 = vmax.xlane.f32.xlu0 %v1765
        %v1767 = vpop.xlane.xlu0 %1766
        %v1768 = vsel %vm1749, %v1120, -inf
        %1769 = vmax.xlane.f32.xlu0 %v1768
        %v1770 = vpop.xlane.xlu0 %1769
        %v1771 = vsel %vm1749, %v1123, -inf
        %1772 = vmax.xlane.f32.xlu0 %v1771
        %v1773 = vpop.xlane.xlu0 %1772
        %v1774 = vsel %vm1749, %v1185, -inf
        %1775 = vmax.xlane.f32.xlu0 %v1774
        %v1776 = vpop.xlane.xlu0 %1775
        %v1777 = vsel %vm1749, %v1188, -inf
        %1778 = vmax.xlane.f32.xlu0 %v1777
        %v1779 = vpop.xlane.xlu0 %1778
        %v1780 = vsel %vm1749, %v1193, -inf
        %1781 = vmax.xlane.f32.xlu0 %v1780
        %v1782 = vpop.xlane.xlu0 %1781
        %v1783 = vsel %vm1749, %v1196, -inf
        %1784 = vmax.xlane.f32.xlu0 %v1783
        %v1785 = vpop.xlane.xlu0 %1784
        %v1786 = vsel %vm1749, %v1201, -inf
        %1787 = vmax.xlane.f32.xlu0 %v1786
        %v1788 = vpop.xlane.xlu0 %1787
        %v1789 = vsel %vm1749, %v1204, -inf
        %1790 = vmax.xlane.f32.xlu0 %v1789
        %v1791 = vpop.xlane.xlu0 %1790
        %v1792 = vsel %vm1749, %v1209, -inf
        %1793 = vmax.xlane.f32.xlu0 %v1792
        %v1794 = vpop.xlane.xlu0 %1793
        %v1795 = vsel %vm1749, %v1212, -inf
        %1796 = vmax.xlane.f32.xlu0 %v1795
        %v1797 = vpop.xlane.xlu0 %1796
        %v1798 = vsel %vm1749, %v1274, -inf
        %1799 = vmax.xlane.f32.xlu0 %v1798
        %v1800 = vpop.xlane.xlu0 %1799
        %v1801 = vsel %vm1749, %v1277, -inf
        %1802 = vmax.xlane.f32.xlu0 %v1801
        %v1803 = vpop.xlane.xlu0 %1802
        %v1804 = vsel %vm1749, %v1282, -inf
        %1805 = vmax.xlane.f32.xlu0 %v1804
        %v1806 = vpop.xlane.xlu0 %1805
        %v1807 = vsel %vm1749, %v1285, -inf
        %1808 = vmax.xlane.f32.xlu0 %v1807
        %v1809 = vpop.xlane.xlu0 %1808
        %v1810 = vsel %vm1749, %v1290, -inf
        %1811 = vmax.xlane.f32.xlu0 %v1810
        %v1812 = vpop.xlane.xlu0 %1811
        %v1813 = vsel %vm1749, %v1293, -inf
        %1814 = vmax.xlane.f32.xlu0 %v1813
        %v1815 = vpop.xlane.xlu0 %1814
        %v1816 = vsel %vm1749, %v1298, -inf
        %1817 = vmax.xlane.f32.xlu0 %v1816
        %v1818 = vpop.xlane.xlu0 %1817
        %v1819 = vsel %vm1749, %v1301, -inf
        %1820 = vmax.xlane.f32.xlu0 %v1819
        %v1821 = vpop.xlane.xlu0 %1820
        %v1822 = vsel %vm1749, %v1363, -inf
        %1823 = vmax.xlane.f32.xlu0 %v1822
        %v1824 = vpop.xlane.xlu0 %1823
        %v1825 = vsel %vm1749, %v1366, -inf
        %1826 = vmax.xlane.f32.xlu0 %v1825
        %v1827 = vpop.xlane.xlu0 %1826
        %v1828 = vsel %vm1749, %v1371, -inf
        %1829 = vmax.xlane.f32.xlu0 %v1828
        %v1830 = vpop.xlane.xlu0 %1829
        %v1831 = vsel %vm1749, %v1374, -inf
        %1832 = vmax.xlane.f32.xlu0 %v1831
        %v1833 = vpop.xlane.xlu0 %1832
        %v1834 = vsel %vm1749, %v1379, -inf
        %1835 = vmax.xlane.f32.xlu0 %v1834
        %v1836 = vpop.xlane.xlu0 %1835
        %v1837 = vsel %vm1749, %v1382, -inf
        %1838 = vmax.xlane.f32.xlu0 %v1837
        %v1839 = vpop.xlane.xlu0 %1838
        %v1840 = vsel %vm1749, %v1387, -inf
        %1841 = vmax.xlane.f32.xlu0 %v1840
        %v1842 = vpop.xlane.xlu0 %1841
        %v1843 = vsel %vm1749, %v1390, -inf
        %1844 = vmax.xlane.f32.xlu0 %v1843
        %v1845 = vpop.xlane.xlu0 %1844
        %v1846 = vsel %vm1749, %v1452, -inf
        %1847 = vmax.xlane.f32.xlu0 %v1846
        %v1848 = vpop.xlane.xlu0 %1847
        %v1849 = vsel %vm1749, %v1455, -inf
        %1850 = vmax.xlane.f32.xlu0 %v1849
        %v1851 = vpop.xlane.xlu0 %1850
        %v1852 = vsel %vm1749, %v1460, -inf
        %1853 = vmax.xlane.f32.xlu0 %v1852
        %v1854 = vpop.xlane.xlu0 %1853
        %v1855 = vsel %vm1749, %v1463, -inf
        %1856 = vmax.xlane.f32.xlu0 %v1855
        %v1857 = vpop.xlane.xlu0 %1856
        %v1858 = vsel %vm1749, %v1468, -inf
        %1859 = vmax.xlane.f32.xlu0 %v1858
        %v1860 = vpop.xlane.xlu0 %1859
        %v1861 = vsel %vm1749, %v1471, -inf
        %1862 = vmax.xlane.f32.xlu0 %v1861
        %v1863 = vpop.xlane.xlu0 %1862
        %v1864 = vsel %vm1749, %v1476, -inf
        %1865 = vmax.xlane.f32.xlu0 %v1864
        %v1866 = vpop.xlane.xlu0 %1865
        %v1867 = vsel %vm1749, %v1479, -inf
        %1868 = vmax.xlane.f32.xlu0 %v1867
        %v1869 = vpop.xlane.xlu0 %1868
        %v1870 = vsel %vm1749, %v1541, -inf
        %1871 = vmax.xlane.f32.xlu0 %v1870
        %v1872 = vpop.xlane.xlu0 %1871
        %v1873 = vsel %vm1749, %v1544, -inf
        %1874 = vmax.xlane.f32.xlu0 %v1873
        %v1875 = vpop.xlane.xlu0 %1874
        %v1876 = vsel %vm1749, %v1549, -inf
        %1877 = vmax.xlane.f32.xlu0 %v1876
        %v1878 = vpop.xlane.xlu0 %1877
        %v1879 = vsel %vm1749, %v1552, -inf
        %1880 = vmax.xlane.f32.xlu0 %v1879
        %v1881 = vpop.xlane.xlu0 %1880
        %v1882 = vsel %vm1749, %v1557, -inf
        %1883 = vmax.xlane.f32.xlu0 %v1882
        %v1884 = vpop.xlane.xlu0 %1883
        %v1885 = vsel %vm1749, %v1560, -inf
        %1886 = vmax.xlane.f32.xlu0 %v1885
        %v1887 = vpop.xlane.xlu0 %1886
        %v1888 = vsel %vm1749, %v1565, -inf
        %1889 = vmax.xlane.f32.xlu0 %v1888
        %v1890 = vpop.xlane.xlu0 %1889
        %v1891 = vsel %vm1749, %v1568, -inf
        %1892 = vmax.xlane.f32.xlu0 %v1891
        %v1893 = vpop.xlane.xlu0 %1892
        %v1894 = vsel %vm1749, %v1630, -inf
        %1895 = vmax.xlane.f32.xlu0 %v1894
        %v1896 = vpop.xlane.xlu0 %1895
        %v1897 = vsel %vm1749, %v1633, -inf
        %1898 = vmax.xlane.f32.xlu0 %v1897
        %v1899 = vpop.xlane.xlu0 %1898
        %v1900 = vsel %vm1749, %v1638, -inf
        %1901 = vmax.xlane.f32.xlu0 %v1900
        %v1902 = vpop.xlane.xlu0 %1901
        %v1903 = vsel %vm1749, %v1641, -inf
        %1904 = vmax.xlane.f32.xlu0 %v1903
        %v1905 = vpop.xlane.xlu0 %1904
        %v1906 = vsel %vm1749, %v1646, -inf
        %1907 = vmax.xlane.f32.xlu0 %v1906
        %v1908 = vpop.xlane.xlu0 %1907
        %v1909 = vsel %vm1749, %v1649, -inf
        %1910 = vmax.xlane.f32.xlu0 %v1909
        %v1911 = vpop.xlane.xlu0 %1910
        %v1912 = vsel %vm1749, %v1654, -inf
        %1913 = vmax.xlane.f32.xlu0 %v1912
        %v1914 = vpop.xlane.xlu0 %1913
        %v1915 = vsel %vm1749, %v1657, -inf
        %1916 = vmax.xlane.f32.xlu0 %v1915
        %v1917 = vpop.xlane.xlu0 %1916
        %v1918 = vsel %vm1749, %v1719, -inf
        %1919 = vmax.xlane.f32.xlu0 %v1918
        %v1920 = vpop.xlane.xlu0 %1919
        %v1921 = vsel %vm1749, %v1722, -inf
        %1922 = vmax.xlane.f32.xlu0 %v1921
        %v1923 = vpop.xlane.xlu0 %1922
        %v1924 = vsel %vm1749, %v1727, -inf
        %1925 = vmax.xlane.f32.xlu0 %v1924
        %v1926 = vpop.xlane.xlu0 %1925
        %v1927 = vsel %vm1749, %v1730, -inf
        %1928 = vmax.xlane.f32.xlu0 %v1927
        %v1929 = vpop.xlane.xlu0 %1928
        %v1930 = vsel %vm1749, %v1735, -inf
        %1931 = vmax.xlane.f32.xlu0 %v1930
        %v1932 = vpop.xlane.xlu0 %1931
        %v1933 = vsel %vm1749, %v1738, -inf
        %1934 = vmax.xlane.f32.xlu0 %v1933
        %v1935 = vpop.xlane.xlu0 %1934
        %v1936 = vsel %vm1749, %v1743, -inf
        %1937 = vmax.xlane.f32.xlu0 %v1936
        %v1938 = vpop.xlane.xlu0 %1937
        %v1939 = vsel %vm1749, %v1746, -inf
        %1940 = vmax.xlane.f32.xlu0 %v1939
        %v1941 = vpop.xlane.xlu0 %1940
        %v1942 = vsub.f32 %v1096, %v1752
        %v1943 = vsub.f32 %v1099, %v1755
        %v1944 = vsub.f32 %v1104, %v1758
        %v1945 = vsub.f32 %v1107, %v1761
        %v1946 = vsub.f32 %v1112, %v1764
        %v1947 = vsub.f32 %v1115, %v1767
        %v1948 = vsub.f32 %v1120, %v1770
        %v1949 = vsub.f32 %v1123, %v1773
        %v1950 = vsub.f32 %v1185, %v1776
        %v1951 = vsub.f32 %v1188, %v1779
        %v1952 = vsub.f32 %v1193, %v1782
        %v1953 = vsub.f32 %v1196, %v1785
        %v1954 = vsub.f32 %v1201, %v1788
        %v1955 = vsub.f32 %v1204, %v1791
        %v1956 = vsub.f32 %v1209, %v1794
        %v1957 = vsub.f32 %v1212, %v1797
        %v1958 = vsub.f32 %v1274, %v1800
        %v1959 = vsub.f32 %v1277, %v1803
        %v1960 = vsub.f32 %v1282, %v1806
        %v1961 = vsub.f32 %v1285, %v1809
        %v1962 = vsub.f32 %v1290, %v1812
        %v1963 = vsub.f32 %v1293, %v1815
        %v1964 = vsub.f32 %v1298, %v1818
        %v1965 = vsub.f32 %v1301, %v1821
        %v1966 = vsub.f32 %v1363, %v1824
        %v1967 = vsub.f32 %v1366, %v1827
        %v1968 = vsub.f32 %v1371, %v1830
        %v1969 = vsub.f32 %v1374, %v1833
        %v1970 = vsub.f32 %v1379, %v1836
        %v1971 = vsub.f32 %v1382, %v1839
        %v1972 = vsub.f32 %v1387, %v1842
        %v1973 = vsub.f32 %v1390, %v1845
        %v1974 = vsub.f32 %v1452, %v1848
        %v1975 = vsub.f32 %v1455, %v1851
        %v1976 = vsub.f32 %v1460, %v1854
        %v1977 = vsub.f32 %v1463, %v1857
        %v1978 = vsub.f32 %v1468, %v1860
        %v1979 = vsub.f32 %v1471, %v1863
        %v1980 = vsub.f32 %v1476, %v1866
        %v1981 = vsub.f32 %v1479, %v1869
        %v1982 = vsub.f32 %v1541, %v1872
        %v1983 = vsub.f32 %v1544, %v1875
        %v1984 = vsub.f32 %v1549, %v1878
        %v1985 = vsub.f32 %v1552, %v1881
        %v1986 = vsub.f32 %v1557, %v1884
        %v1987 = vsub.f32 %v1560, %v1887
        %v1988 = vsub.f32 %v1565, %v1890
        %v1989 = vsub.f32 %v1568, %v1893
        %v1990 = vsub.f32 %v1630, %v1896
        %v1991 = vsub.f32 %v1633, %v1899
        %v1992 = vsub.f32 %v1638, %v1902
        %v1993 = vsub.f32 %v1641, %v1905
        %v1994 = vsub.f32 %v1646, %v1908
        %v1995 = vsub.f32 %v1649, %v1911
        %v1996 = vsub.f32 %v1654, %v1914
        %v1997 = vsub.f32 %v1657, %v1917
        %v1998 = vsub.f32 %v1719, %v1920
        %v1999 = vsub.f32 %v1722, %v1923
        %v2000 = vsub.f32 %v1727, %v1926
        %v2001 = vsub.f32 %v1730, %v1929
        %v2002 = vsub.f32 %v1735, %v1932
        %v2003 = vsub.f32 %v1738, %v1935
        %v2004 = vsub.f32 %v1743, %v1938
        %v2005 = vsub.f32 %v1746, %v1941
        %v2006 = vmul.f32 %v1942, 1.442695
        %v2007 = vpow.pop %v2006
        %v2008 = vmul.f32 %v1943, 1.442695
        %v2009 = vpow.pop %v2008
        %v2010 = vmul.f32 %v1944, 1.442695
        %v2011 = vpow.pop %v2010
        %v2012 = vmul.f32 %v1945, 1.442695
        %v2013 = vpow.pop %v2012
        %v2014 = vmul.f32 %v1946, 1.442695
        %v2015 = vpow.pop %v2014
        %v2016 = vmul.f32 %v1947, 1.442695
        %v2017 = vpow.pop %v2016
        %v2018 = vmul.f32 %v1948, 1.442695
        %v2019 = vpow.pop %v2018
        %v2020 = vmul.f32 %v1949, 1.442695
        %v2021 = vpow.pop %v2020
        %v2022 = vmul.f32 %v1950, 1.442695
        %v2023 = vpow.pop %v2022
        %v2024 = vmul.f32 %v1951, 1.442695
        %v2025 = vpow.pop %v2024
        %v2026 = vmul.f32 %v1952, 1.442695
        %v2027 = vpow.pop %v2026
        %v2028 = vmul.f32 %v1953, 1.442695
        %v2029 = vpow.pop %v2028
        %v2030 = vmul.f32 %v1954, 1.442695
        %v2031 = vpow.pop %v2030
        %v2032 = vmul.f32 %v1955, 1.442695
        %v2033 = vpow.pop %v2032
        %v2034 = vmul.f32 %v1956, 1.442695
        %v2035 = vpow.pop %v2034
        %v2036 = vmul.f32 %v1957, 1.442695
        %v2037 = vpow.pop %v2036
        %v2038 = vmul.f32 %v1958, 1.442695
        %v2039 = vpow.pop %v2038
        %v2040 = vmul.f32 %v1959, 1.442695
        %v2041 = vpow.pop %v2040
        %v2042 = vmul.f32 %v1960, 1.442695
        %v2043 = vpow.pop %v2042
        %v2044 = vmul.f32 %v1961, 1.442695
        %v2045 = vpow.pop %v2044
        %v2046 = vmul.f32 %v1962, 1.442695
        %v2047 = vpow.pop %v2046
        %v2048 = vmul.f32 %v1963, 1.442695
        %v2049 = vpow.pop %v2048
        %v2050 = vmul.f32 %v1964, 1.442695
        %v2051 = vpow.pop %v2050
        %v2052 = vmul.f32 %v1965, 1.442695
        %v2053 = vpow.pop %v2052
        %v2054 = vmul.f32 %v1966, 1.442695
        %v2055 = vpow.pop %v2054
        %v2056 = vmul.f32 %v1967, 1.442695
        %v2057 = vpow.pop %v2056
        %v2058 = vmul.f32 %v1968, 1.442695
        %v2059 = vpow.pop %v2058
        %v2060 = vmul.f32 %v1969, 1.442695
        %v2061 = vpow.pop %v2060
        %v2062 = vmul.f32 %v1970, 1.442695
        %v2063 = vpow.pop %v2062
        %v2064 = vmul.f32 %v1971, 1.442695
        %v2065 = vpow.pop %v2064
        %v2066 = vmul.f32 %v1972, 1.442695
        %v2067 = vpow.pop %v2066
        %v2068 = vmul.f32 %v1973, 1.442695
        %v2069 = vpow.pop %v2068
        %v2070 = vmul.f32 %v1974, 1.442695
        %v2071 = vpow.pop %v2070
        %v2072 = vmul.f32 %v1975, 1.442695
        %v2073 = vpow.pop %v2072
        %v2074 = vmul.f32 %v1976, 1.442695
        %v2075 = vpow.pop %v2074
        %v2076 = vmul.f32 %v1977, 1.442695
        %v2077 = vpow.pop %v2076
        %v2078 = vmul.f32 %v1978, 1.442695
        %v2079 = vpow.pop %v2078
        %v2080 = vmul.f32 %v1979, 1.442695
        %v2081 = vpow.pop %v2080
        %v2082 = vmul.f32 %v1980, 1.442695
        %v2083 = vpow.pop %v2082
        %v2084 = vmul.f32 %v1981, 1.442695
        %v2085 = vpow.pop %v2084
        %v2086 = vmul.f32 %v1982, 1.442695
        %v2087 = vpow.pop %v2086
        %v2088 = vmul.f32 %v1983, 1.442695
        %v2089 = vpow.pop %v2088
        %v2090 = vmul.f32 %v1984, 1.442695
        %v2091 = vpow.pop %v2090
        %v2092 = vmul.f32 %v1985, 1.442695
        %v2093 = vpow.pop %v2092
        %v2094 = vmul.f32 %v1986, 1.442695
        %v2095 = vpow.pop %v2094
        %v2096 = vmul.f32 %v1987, 1.442695
        %v2097 = vpow.pop %v2096
        %v2098 = vmul.f32 %v1988, 1.442695
        %v2099 = vpow.pop %v2098
        %v2100 = vmul.f32 %v1989, 1.442695
        %v2101 = vpow.pop %v2100
        %v2102 = vmul.f32 %v1990, 1.442695
        %v2103 = vpow.pop %v2102
        %v2104 = vmul.f32 %v1991, 1.442695
        %v2105 = vpow.pop %v2104
        %v2106 = vmul.f32 %v1992, 1.442695
        %v2107 = vpow.pop %v2106
        %v2108 = vmul.f32 %v1993, 1.442695
        %v2109 = vpow.pop %v2108
        %v2110 = vmul.f32 %v1994, 1.442695
        %v2111 = vpow.pop %v2110
        %v2112 = vmul.f32 %v1995, 1.442695
        %v2113 = vpow.pop %v2112
        %v2114 = vmul.f32 %v1996, 1.442695
        %v2115 = vpow.pop %v2114
        %v2116 = vmul.f32 %v1997, 1.442695
        %v2117 = vpow.pop %v2116
        %v2118 = vmul.f32 %v1998, 1.442695
        %v2119 = vpow.pop %v2118
        %v2120 = vmul.f32 %v1999, 1.442695
        %v2121 = vpow.pop %v2120
        %v2122 = vmul.f32 %v2000, 1.442695
        %v2123 = vpow.pop %v2122
        %v2124 = vmul.f32 %v2001, 1.442695
        %v2125 = vpow.pop %v2124
        %v2126 = vmul.f32 %v2002, 1.442695
        %v2127 = vpow.pop %v2126
        %v2128 = vmul.f32 %v2003, 1.442695
        %v2129 = vpow.pop %v2128
        %v2130 = vmul.f32 %v2004, 1.442695
        %v2131 = vpow.pop %v2130
        %v2132 = vmul.f32 %v2005, 1.442695
        %v2133 = vpow.pop %v2132
        %v2134 = vsel %vm1749, %v2007, 0.0
        %2135 = vadd.xlane.f32.xlu0 %v2134
        %v2136 = vpop.xlane.xlu0 %2135
        %v2137 = vsel %vm1749, %v2009, 0.0
        %2138 = vadd.xlane.f32.xlu0 %v2137
        %v2139 = vpop.xlane.xlu0 %2138
        %v2140 = vsel %vm1749, %v2011, 0.0
        %2141 = vadd.xlane.f32.xlu0 %v2140
        %v2142 = vpop.xlane.xlu0 %2141
        %v2143 = vsel %vm1749, %v2013, 0.0
        %2144 = vadd.xlane.f32.xlu0 %v2143
        %v2145 = vpop.xlane.xlu0 %2144
        %v2146 = vsel %vm1749, %v2015, 0.0
        %2147 = vadd.xlane.f32.xlu0 %v2146
        %v2148 = vpop.xlane.xlu0 %2147
        %v2149 = vsel %vm1749, %v2017, 0.0
        %2150 = vadd.xlane.f32.xlu0 %v2149
        %v2151 = vpop.xlane.xlu0 %2150
        %v2152 = vsel %vm1749, %v2019, 0.0
        %2153 = vadd.xlane.f32.xlu0 %v2152
        %v2154 = vpop.xlane.xlu0 %2153
        %v2155 = vsel %vm1749, %v2021, 0.0
        %2156 = vadd.xlane.f32.xlu0 %v2155
        %v2157 = vpop.xlane.xlu0 %2156
        %v2158 = vsel %vm1749, %v2023, 0.0
        %2159 = vadd.xlane.f32.xlu0 %v2158
        %v2160 = vpop.xlane.xlu0 %2159
        %v2161 = vsel %vm1749, %v2025, 0.0
        %2162 = vadd.xlane.f32.xlu0 %v2161
        %v2163 = vpop.xlane.xlu0 %2162
        %v2164 = vsel %vm1749, %v2027, 0.0
        %2165 = vadd.xlane.f32.xlu0 %v2164
        %v2166 = vpop.xlane.xlu0 %2165
        %v2167 = vsel %vm1749, %v2029, 0.0
        %2168 = vadd.xlane.f32.xlu0 %v2167
        %v2169 = vpop.xlane.xlu0 %2168
        %v2170 = vsel %vm1749, %v2031, 0.0
        %2171 = vadd.xlane.f32.xlu0 %v2170
        %v2172 = vpop.xlane.xlu0 %2171
        %v2173 = vsel %vm1749, %v2033, 0.0
        %2174 = vadd.xlane.f32.xlu0 %v2173
        %v2175 = vpop.xlane.xlu0 %2174
        %v2176 = vsel %vm1749, %v2035, 0.0
        %2177 = vadd.xlane.f32.xlu0 %v2176
        %v2178 = vpop.xlane.xlu0 %2177
        %v2179 = vsel %vm1749, %v2037, 0.0
        %2180 = vadd.xlane.f32.xlu0 %v2179
        %v2181 = vpop.xlane.xlu0 %2180
        %v2182 = vsel %vm1749, %v2039, 0.0
        %2183 = vadd.xlane.f32.xlu0 %v2182
        %v2184 = vpop.xlane.xlu0 %2183
        %v2185 = vsel %vm1749, %v2041, 0.0
        %2186 = vadd.xlane.f32.xlu0 %v2185
        %v2187 = vpop.xlane.xlu0 %2186
        %v2188 = vsel %vm1749, %v2043, 0.0
        %2189 = vadd.xlane.f32.xlu0 %v2188
        %v2190 = vpop.xlane.xlu0 %2189
        %v2191 = vsel %vm1749, %v2045, 0.0
        %2192 = vadd.xlane.f32.xlu0 %v2191
        %v2193 = vpop.xlane.xlu0 %2192
        %v2194 = vsel %vm1749, %v2047, 0.0
        %2195 = vadd.xlane.f32.xlu0 %v2194
        %v2196 = vpop.xlane.xlu0 %2195
        %v2197 = vsel %vm1749, %v2049, 0.0
        %2198 = vadd.xlane.f32.xlu0 %v2197
        %v2199 = vpop.xlane.xlu0 %2198
        %v2200 = vsel %vm1749, %v2051, 0.0
        %2201 = vadd.xlane.f32.xlu0 %v2200
        %v2202 = vpop.xlane.xlu0 %2201
        %v2203 = vsel %vm1749, %v2053, 0.0
        %2204 = vadd.xlane.f32.xlu0 %v2203
        %v2205 = vpop.xlane.xlu0 %2204
        %v2206 = vsel %vm1749, %v2055, 0.0
        %2207 = vadd.xlane.f32.xlu0 %v2206
        %v2208 = vpop.xlane.xlu0 %2207
        %v2209 = vsel %vm1749, %v2057, 0.0
        %2210 = vadd.xlane.f32.xlu0 %v2209
        %v2211 = vpop.xlane.xlu0 %2210
        %v2212 = vsel %vm1749, %v2059, 0.0
        %2213 = vadd.xlane.f32.xlu0 %v2212
        %v2214 = vpop.xlane.xlu0 %2213
        %v2215 = vsel %vm1749, %v2061, 0.0
        %2216 = vadd.xlane.f32.xlu0 %v2215
        %v2217 = vpop.xlane.xlu0 %2216
        %v2218 = vsel %vm1749, %v2063, 0.0
        %2219 = vadd.xlane.f32.xlu0 %v2218
        %v2220 = vpop.xlane.xlu0 %2219
        %v2221 = vsel %vm1749, %v2065, 0.0
        %2222 = vadd.xlane.f32.xlu0 %v2221
        %v2223 = vpop.xlane.xlu0 %2222
        %v2224 = vsel %vm1749, %v2067, 0.0
        %2225 = vadd.xlane.f32.xlu0 %v2224
        %v2226 = vpop.xlane.xlu0 %2225
        %v2227 = vsel %vm1749, %v2069, 0.0
        %2228 = vadd.xlane.f32.xlu0 %v2227
        %v2229 = vpop.xlane.xlu0 %2228
        %v2230 = vsel %vm1749, %v2071, 0.0
        %2231 = vadd.xlane.f32.xlu0 %v2230
        %v2232 = vpop.xlane.xlu0 %2231
        %v2233 = vsel %vm1749, %v2073, 0.0
        %2234 = vadd.xlane.f32.xlu0 %v2233
        %v2235 = vpop.xlane.xlu0 %2234
        %v2236 = vsel %vm1749, %v2075, 0.0
        %2237 = vadd.xlane.f32.xlu0 %v2236
        %v2238 = vpop.xlane.xlu0 %2237
        %v2239 = vsel %vm1749, %v2077, 0.0
        %2240 = vadd.xlane.f32.xlu0 %v2239
        %v2241 = vpop.xlane.xlu0 %2240
        %v2242 = vsel %vm1749, %v2079, 0.0
        %2243 = vadd.xlane.f32.xlu0 %v2242
        %v2244 = vpop.xlane.xlu0 %2243
        %v2245 = vsel %vm1749, %v2081, 0.0
        %2246 = vadd.xlane.f32.xlu0 %v2245
        %v2247 = vpop.xlane.xlu0 %2246
        %v2248 = vsel %vm1749, %v2083, 0.0
        %2249 = vadd.xlane.f32.xlu0 %v2248
        %v2250 = vpop.xlane.xlu0 %2249
        %v2251 = vsel %vm1749, %v2085, 0.0
        %2252 = vadd.xlane.f32.xlu0 %v2251
        %v2253 = vpop.xlane.xlu0 %2252
        %v2254 = vsel %vm1749, %v2087, 0.0
        %2255 = vadd.xlane.f32.xlu0 %v2254
        %v2256 = vpop.xlane.xlu0 %2255
        %v2257 = vsel %vm1749, %v2089, 0.0
        %2258 = vadd.xlane.f32.xlu0 %v2257
        %v2259 = vpop.xlane.xlu0 %2258
        %v2260 = vsel %vm1749, %v2091, 0.0
        %2261 = vadd.xlane.f32.xlu0 %v2260
        %v2262 = vpop.xlane.xlu0 %2261
        %v2263 = vsel %vm1749, %v2093, 0.0
        %2264 = vadd.xlane.f32.xlu0 %v2263
        %v2265 = vpop.xlane.xlu0 %2264
        %v2266 = vsel %vm1749, %v2095, 0.0
        %2267 = vadd.xlane.f32.xlu0 %v2266
        %v2268 = vpop.xlane.xlu0 %2267
        %v2269 = vsel %vm1749, %v2097, 0.0
        %2270 = vadd.xlane.f32.xlu0 %v2269
        %v2271 = vpop.xlane.xlu0 %2270
        %v2272 = vsel %vm1749, %v2099, 0.0
        %2273 = vadd.xlane.f32.xlu0 %v2272
        %v2274 = vpop.xlane.xlu0 %2273
        %v2275 = vsel %vm1749, %v2101, 0.0
        %2276 = vadd.xlane.f32.xlu0 %v2275
        %v2277 = vpop.xlane.xlu0 %2276
        %v2278 = vsel %vm1749, %v2103, 0.0
        %2279 = vadd.xlane.f32.xlu0 %v2278
        %v2280 = vpop.xlane.xlu0 %2279
        %v2281 = vsel %vm1749, %v2105, 0.0
        %2282 = vadd.xlane.f32.xlu0 %v2281
        %v2283 = vpop.xlane.xlu0 %2282
        %v2284 = vsel %vm1749, %v2107, 0.0
        %2285 = vadd.xlane.f32.xlu0 %v2284
        %v2286 = vpop.xlane.xlu0 %2285
        %v2287 = vsel %vm1749, %v2109, 0.0
        %2288 = vadd.xlane.f32.xlu0 %v2287
        %v2289 = vpop.xlane.xlu0 %2288
        %v2290 = vsel %vm1749, %v2111, 0.0
        %2291 = vadd.xlane.f32.xlu0 %v2290
        %v2292 = vpop.xlane.xlu0 %2291
        %v2293 = vsel %vm1749, %v2113, 0.0
        %2294 = vadd.xlane.f32.xlu0 %v2293
        %v2295 = vpop.xlane.xlu0 %2294
        %v2296 = vsel %vm1749, %v2115, 0.0
        %2297 = vadd.xlane.f32.xlu0 %v2296
        %v2298 = vpop.xlane.xlu0 %2297
        %v2299 = vsel %vm1749, %v2117, 0.0
        %2300 = vadd.xlane.f32.xlu0 %v2299
        %v2301 = vpop.xlane.xlu0 %2300
        %v2302 = vsel %vm1749, %v2119, 0.0
        %2303 = vadd.xlane.f32.xlu0 %v2302
        %v2304 = vpop.xlane.xlu0 %2303
        %v2305 = vsel %vm1749, %v2121, 0.0
        %2306 = vadd.xlane.f32.xlu0 %v2305
        %v2307 = vpop.xlane.xlu0 %2306
        %v2308 = vsel %vm1749, %v2123, 0.0
        %2309 = vadd.xlane.f32.xlu0 %v2308
        %v2310 = vpop.xlane.xlu0 %2309
        %v2311 = vsel %vm1749, %v2125, 0.0
        %2312 = vadd.xlane.f32.xlu0 %v2311
        %v2313 = vpop.xlane.xlu0 %2312
        %v2314 = vsel %vm1749, %v2127, 0.0
        %2315 = vadd.xlane.f32.xlu0 %v2314
        %v2316 = vpop.xlane.xlu0 %2315
        %v2317 = vsel %vm1749, %v2129, 0.0
        %2318 = vadd.xlane.f32.xlu0 %v2317
        %v2319 = vpop.xlane.xlu0 %2318
        %v2320 = vsel %vm1749, %v2131, 0.0
        %2321 = vadd.xlane.f32.xlu0 %v2320
        %v2322 = vpop.xlane.xlu0 %2321
        %v2323 = vsel %vm1749, %v2133, 0.0
        %2324 = vadd.xlane.f32.xlu0 %v2323
        %v2325 = vpop.xlane.xlu0 %2324
        %v2326 = vrcp.pop %v2136
        %v2327 = vrcp.pop %v2139
        %v2328 = vrcp.pop %v2142
        %v2329 = vrcp.pop %v2145
        %v2330 = vrcp.pop %v2148
        %v2331 = vrcp.pop %v2151
        %v2332 = vrcp.pop %v2154
        %v2333 = vrcp.pop %v2157
        %v2334 = vrcp.pop %v2160
        %v2335 = vrcp.pop %v2163
        %v2336 = vrcp.pop %v2166
        %v2337 = vrcp.pop %v2169
        %v2338 = vrcp.pop %v2172
        %v2339 = vrcp.pop %v2175
        %v2340 = vrcp.pop %v2178
        %v2341 = vrcp.pop %v2181
        %v2342 = vrcp.pop %v2184
        %v2343 = vrcp.pop %v2187
        %v2344 = vrcp.pop %v2190
        %v2345 = vrcp.pop %v2193
        %v2346 = vrcp.pop %v2196
        %v2347 = vrcp.pop %v2199
        %v2348 = vrcp.pop %v2202
        %v2349 = vrcp.pop %v2205
        %v2350 = vrcp.pop %v2208
        %v2351 = vrcp.pop %v2211
        %v2352 = vrcp.pop %v2214
        %v2353 = vrcp.pop %v2217
        %v2354 = vrcp.pop %v2220
        %v2355 = vrcp.pop %v2223
        %v2356 = vrcp.pop %v2226
        %v2357 = vrcp.pop %v2229
        %v2358 = vrcp.pop %v2232
        %v2359 = vrcp.pop %v2235
        %v2360 = vrcp.pop %v2238
        %v2361 = vrcp.pop %v2241
        %v2362 = vrcp.pop %v2244
        %v2363 = vrcp.pop %v2247
        %v2364 = vrcp.pop %v2250
        %v2365 = vrcp.pop %v2253
        %v2366 = vrcp.pop %v2256
        %v2367 = vrcp.pop %v2259
        %v2368 = vrcp.pop %v2262
        %v2369 = vrcp.pop %v2265
        %v2370 = vrcp.pop %v2268
        %v2371 = vrcp.pop %v2271
        %v2372 = vrcp.pop %v2274
        %v2373 = vrcp.pop %v2277
        %v2374 = vrcp.pop %v2280
        %v2375 = vrcp.pop %v2283
        %v2376 = vrcp.pop %v2286
        %v2377 = vrcp.pop %v2289
        %v2378 = vrcp.pop %v2292
        %v2379 = vrcp.pop %v2295
        %v2380 = vrcp.pop %v2298
        %v2381 = vrcp.pop %v2301
        %v2382 = vrcp.pop %v2304
        %v2383 = vrcp.pop %v2307
        %v2384 = vrcp.pop %v2310
        %v2385 = vrcp.pop %v2313
        %v2386 = vrcp.pop %v2316
        %v2387 = vrcp.pop %v2319
        %v2388 = vrcp.pop %v2322
        %v2389 = vrcp.pop %v2325
        %v2390 = vmul.f32 %v2007, %v2326
        %v2391 = vmul.f32 %v2009, %v2327
        %v2392 = vmul.f32 %v2011, %v2328
        %v2393 = vmul.f32 %v2013, %v2329
        %v2394 = vmul.f32 %v2015, %v2330
        %v2395 = vmul.f32 %v2017, %v2331
        %v2396 = vmul.f32 %v2019, %v2332
        %v2397 = vmul.f32 %v2021, %v2333
        %v2398 = vmul.f32 %v2023, %v2334
        %v2399 = vmul.f32 %v2025, %v2335
        %v2400 = vmul.f32 %v2027, %v2336
        %v2401 = vmul.f32 %v2029, %v2337
        %v2402 = vmul.f32 %v2031, %v2338
        %v2403 = vmul.f32 %v2033, %v2339
        %v2404 = vmul.f32 %v2035, %v2340
        %v2405 = vmul.f32 %v2037, %v2341
        %v2406 = vmul.f32 %v2039, %v2342
        %v2407 = vmul.f32 %v2041, %v2343
        %v2408 = vmul.f32 %v2043, %v2344
        %v2409 = vmul.f32 %v2045, %v2345
        %v2410 = vmul.f32 %v2047, %v2346
        %v2411 = vmul.f32 %v2049, %v2347
        %v2412 = vmul.f32 %v2051, %v2348
        %v2413 = vmul.f32 %v2053, %v2349
        %v2414 = vmul.f32 %v2055, %v2350
        %v2415 = vmul.f32 %v2057, %v2351
        %v2416 = vmul.f32 %v2059, %v2352
        %v2417 = vmul.f32 %v2061, %v2353
        %v2418 = vmul.f32 %v2063, %v2354
        %v2419 = vmul.f32 %v2065, %v2355
        %v2420 = vmul.f32 %v2067, %v2356
        %v2421 = vmul.f32 %v2069, %v2357
        %v2422 = vmul.f32 %v2071, %v2358
        %v2423 = vmul.f32 %v2073, %v2359
        %v2424 = vmul.f32 %v2075, %v2360
        %v2425 = vmul.f32 %v2077, %v2361
        %v2426 = vmul.f32 %v2079, %v2362
        %v2427 = vmul.f32 %v2081, %v2363
        %v2428 = vmul.f32 %v2083, %v2364
        %v2429 = vmul.f32 %v2085, %v2365
        %v2430 = vmul.f32 %v2087, %v2366
        %v2431 = vmul.f32 %v2089, %v2367
        %v2432 = vmul.f32 %v2091, %v2368
        %v2433 = vmul.f32 %v2093, %v2369
        %v2434 = vmul.f32 %v2095, %v2370
        %v2435 = vmul.f32 %v2097, %v2371
        %v2436 = vmul.f32 %v2099, %v2372
        %v2437 = vmul.f32 %v2101, %v2373
        %v2438 = vmul.f32 %v2103, %v2374
        %v2439 = vmul.f32 %v2105, %v2375
        %v2440 = vmul.f32 %v2107, %v2376
        %v2441 = vmul.f32 %v2109, %v2377
        %v2442 = vmul.f32 %v2111, %v2378
        %v2443 = vmul.f32 %v2113, %v2379
        %v2444 = vmul.f32 %v2115, %v2380
        %v2445 = vmul.f32 %v2117, %v2381
        %v2446 = vmul.f32 %v2119, %v2382
        %v2447 = vmul.f32 %v2121, %v2383
        %v2448 = vmul.f32 %v2123, %v2384
        %v2449 = vmul.f32 %v2125, %v2385
        %v2450 = vmul.f32 %v2127, %v2386
        %v2451 = vmul.f32 %v2129, %v2387
        %v2452 = vmul.f32 %v2131, %v2388
        %v2453 = vmul.f32 %v2133, %v2389
        %v2454 = vpack.c.bf16 %v2391, %v2390
        %v2455 = vpack.c.bf16 %v2393, %v2392
        %v2456 = vpack.c.bf16 %v2395, %v2394
        %v2457 = vpack.c.bf16 %v2397, %v2396
        %v2458 = vpack.c.bf16 %v2399, %v2398
        %v2459 = vpack.c.bf16 %v2401, %v2400
        %v2460 = vpack.c.bf16 %v2403, %v2402
        %v2461 = vpack.c.bf16 %v2405, %v2404
        %v2462 = vpack.c.bf16 %v2407, %v2406
        %v2463 = vpack.c.bf16 %v2409, %v2408
        %v2464 = vpack.c.bf16 %v2411, %v2410
        %v2465 = vpack.c.bf16 %v2413, %v2412
        %v2466 = vpack.c.bf16 %v2415, %v2414
        %v2467 = vpack.c.bf16 %v2417, %v2416
        %v2468 = vpack.c.bf16 %v2419, %v2418
        %v2469 = vpack.c.bf16 %v2421, %v2420
        %v2470 = vpack.c.bf16 %v2423, %v2422
        %v2471 = vpack.c.bf16 %v2425, %v2424
        %v2472 = vpack.c.bf16 %v2427, %v2426
        %v2473 = vpack.c.bf16 %v2429, %v2428
        %v2474 = vpack.c.bf16 %v2431, %v2430
        %v2475 = vpack.c.bf16 %v2433, %v2432
        %v2476 = vpack.c.bf16 %v2435, %v2434
        %v2477 = vpack.c.bf16 %v2437, %v2436
        %v2478 = vpack.c.bf16 %v2439, %v2438
        %v2479 = vpack.c.bf16 %v2441, %v2440
        %v2480 = vpack.c.bf16 %v2443, %v2442
        %v2481 = vpack.c.bf16 %v2445, %v2444
        %v2482 = vpack.c.bf16 %v2447, %v2446
        %v2483 = vpack.c.bf16 %v2449, %v2448
        %v2484 = vpack.c.bf16 %v2451, %v2450
        %v2485 = vpack.c.bf16 %v2453, %v2452
        %v2487 = vsel %vm1749, %v2454, 0
        %v2490 = vsel %vm1749, %v2455, 0
        %v2493 = vsel %vm1749, %v2456, 0
        %v2496 = vsel %vm1749, %v2457, 0
        %2498 = vmatprep.subr.bf16.mxu0 0
        %2499 = vmatpush1.bf16.msra.mxu0 %v696
        %2500 = vmatprep.subr.bf16.mxu0 0
        %2501 = vmatpush1.bf16.msra.mxu0 %v697
        %2502 = vmatprep.subr.bf16.mxu0 0
        %2503 = vmatpush1.bf16.msra.mxu0 %v698
        %2504 = vmatprep.subr.bf16.mxu0 0
        %2505 = vmatpush1.bf16.msra.mxu0 %v699
        %2506 = vmatprep.subr.bf16.mxu0 0
        %2507 = vmatpush1.bf16.msra.mxu0 0
        %2508 = vmatprep.subr.bf16.mxu0 0
        %2509 = vmatpush1.bf16.msra.mxu0 0
        %2510 = vmatprep.subr.bf16.mxu0 0
        %2511 = vmatpush1.bf16.msra.mxu0 0
        %2512 = vmatprep.subr.bf16.mxu0 0
        %2513 = vmatpush1.bf16.msra.mxu0 0
        %2514 = vmatprep.subr.bf16.mxu0 0
        %2515 = vmatpush1.bf16.msra.mxu0 0
        %2516 = vmatprep.subr.bf16.mxu0 0
        %2517 = vmatpush1.bf16.msra.mxu0 0
        %2518 = vmatprep.subr.bf16.mxu0 0
        %2519 = vmatpush1.bf16.msra.mxu0 0
        %2520 = vmatprep.subr.bf16.mxu0 0
        %2521 = vmatpush1.bf16.msra.mxu0 0
        %2522 = vmatprep.subr.bf16.mxu0 0
        %2523 = vmatpush1.bf16.msra.mxu0 0
        %2524 = vmatprep.subr.bf16.mxu0 0
        %2525 = vmatpush1.bf16.msra.mxu0 0
        %2526 = vmatprep.subr.bf16.mxu0 0
        %2527 = vmatpush1.bf16.msra.mxu0 0
        %2528 = vmatprep.subr.bf16.mxu0 0
        %2529 = vmatpush1.bf16.msra.mxu0 0
        %2530 = vmatprep.mubr.bf16.mxu0 0
        %2531 = vmatmul.mubr.bf16.gmra.mrb[0].mxu0 %v2487
        %v2532 = vpop.f32.mrb[0].mxu0
        %v2533 = vadd.f32 0.0, %v2532
        %v2534 = vpop.f32.mrb[0].mxu0
        %v2535 = vpop.f32.mrb[0].mxu0
        %v2536 = vadd.f32 0.0, %v2535
        %v2537 = vpop.f32.mrb[0].mxu0
        %2538 = vmatprep.mubr.bf16.mxu0 0
        %2539 = vmatmul.mubr.bf16.gmra.mrb[0].mxu0 %v2490
        %v2540 = vpop.f32.mrb[0].mxu0
        %v2541 = vadd.f32 0.0, %v2540
        %v2542 = vpop.f32.mrb[0].mxu0
        %v2543 = vpop.f32.mrb[0].mxu0
        %v2544 = vadd.f32 0.0, %v2543
        %v2545 = vpop.f32.mrb[0].mxu0
        %2546 = vmatprep.mubr.bf16.mxu0 0
        %2547 = vmatmul.mubr.bf16.gmra.mrb[0].mxu0 %v2493
        %v2548 = vpop.f32.mrb[0].mxu0
        %v2549 = vadd.f32 0.0, %v2548
        %v2550 = vpop.f32.mrb[0].mxu0
        %v2551 = vpop.f32.mrb[0].mxu0
        %v2552 = vadd.f32 0.0, %v2551
        %v2553 = vpop.f32.mrb[0].mxu0
        %2554 = vmatprep.mubr.bf16.mxu0 0
        %2555 = vmatmul.mubr.bf16.gmra.mrb[0].mxu0 %v2496
        %v2556 = vpop.f32.mrb[0].mxu0
        %v2557 = vadd.f32 0.0, %v2556
        %v2558 = vpop.f32.mrb[0].mxu0
        %v2559 = vpop.f32.mrb[0].mxu0
        %v2560 = vadd.f32 0.0, %v2559
        %v2561 = vpop.f32.mrb[0].mxu0
        %2562 = vdwg.mxu0
        %v2564 = vsel %vm1749, %v2458, 0
        %v2567 = vsel %vm1749, %v2459, 0
        %v2570 = vsel %vm1749, %v2460, 0
        %v2573 = vsel %vm1749, %v2461, 0
        %2575 = vmatprep.subr.bf16.mxu0 0
        %2576 = vmatpush1.bf16.msra.mxu0 %v825
        %2577 = vmatprep.subr.bf16.mxu0 0
        %2578 = vmatpush1.bf16.msra.mxu0 %v827
        %2579 = vmatprep.subr.bf16.mxu0 0
        %2580 = vmatpush1.bf16.msra.mxu0 %v829
        %2581 = vmatprep.subr.bf16.mxu0 0
        %2582 = vmatpush1.bf16.msra.mxu0 %v831
        %2583 = vmatprep.subr.bf16.mxu0 0
        %2584 = vmatpush1.bf16.msra.mxu0 0
        %2585 = vmatprep.subr.bf16.mxu0 0
        %2586 = vmatpush1.bf16.msra.mxu0 0
        %2587 = vmatprep.subr.bf16.mxu0 0
        %2588 = vmatpush1.bf16.msra.mxu0 0
        %2589 = vmatprep.subr.bf16.mxu0 0
        %2590 = vmatpush1.bf16.msra.mxu0 0
        %2591 = vmatprep.subr.bf16.mxu0 0
        %2592 = vmatpush1.bf16.msra.mxu0 0
        %2593 = vmatprep.subr.bf16.mxu0 0
        %2594 = vmatpush1.bf16.msra.mxu0 0
        %2595 = vmatprep.subr.bf16.mxu0 0
        %2596 = vmatpush1.bf16.msra.mxu0 0
        %2597 = vmatprep.subr.bf16.mxu0 0
        %2598 = vmatpush1.bf16.msra.mxu0 0
        %2599 = vmatprep.subr.bf16.mxu0 0
        %2600 = vmatpush1.bf16.msra.mxu0 0
        %2601 = vmatprep.subr.bf16.mxu0 0
        %2602 = vmatpush1.bf16.msra.mxu0 0
        %2603 = vmatprep.subr.bf16.mxu0 0
        %2604 = vmatpush1.bf16.msra.mxu0 0
        %2605 = vmatprep.subr.bf16.mxu0 0
        %2606 = vmatpush1.bf16.msra.mxu0 0
        %2607 = vmatprep.mubr.bf16.mxu0 0
        %2608 = vmatmul.mubr.bf16.gmra.mrb[0].mxu0 %v2564
        %v2609 = vpop.f32.mrb[0].mxu0
        %v2610 = vadd.f32 0.0, %v2609
        %v2611 = vpop.f32.mrb[0].mxu0
        %v2612 = vpop.f32.mrb[0].mxu0
        %v2613 = vadd.f32 0.0, %v2612
        %v2614 = vpop.f32.mrb[0].mxu0
        %2615 = vmatprep.mubr.bf16.mxu0 0
        %2616 = vmatmul.mubr.bf16.gmra.mrb[0].mxu0 %v2567
        %v2617 = vpop.f32.mrb[0].mxu0
        %v2618 = vadd.f32 0.0, %v2617
        %v2619 = vpop.f32.mrb[0].mxu0
        %v2620 = vpop.f32.mrb[0].mxu0
        %v2621 = vadd.f32 0.0, %v2620
        %v2622 = vpop.f32.mrb[0].mxu0
        %2623 = vmatprep.mubr.bf16.mxu0 0
        %2624 = vmatmul.mubr.bf16.gmra.mrb[0].mxu0 %v2570
        %v2625 = vpop.f32.mrb[0].mxu0
        %v2626 = vadd.f32 0.0, %v2625
        %v2627 = vpop.f32.mrb[0].mxu0
        %v2628 = vpop.f32.mrb[0].mxu0
        %v2629 = vadd.f32 0.0, %v2628
        %v2630 = vpop.f32.mrb[0].mxu0
        %2631 = vmatprep.mubr.bf16.mxu0 0
        %2632 = vmatmul.mubr.bf16.gmra.mrb[0].mxu0 %v2573
        %v2633 = vpop.f32.mrb[0].mxu0
        %v2634 = vadd.f32 0.0, %v2633
        %v2635 = vpop.f32.mrb[0].mxu0
        %v2636 = vpop.f32.mrb[0].mxu0
        %v2637 = vadd.f32 0.0, %v2636
        %v2638 = vpop.f32.mrb[0].mxu0
        %2639 = vdwg.mxu0
        %v2641 = vsel %vm1749, %v2462, 0
        %v2644 = vsel %vm1749, %v2463, 0
        %v2647 = vsel %vm1749, %v2464, 0
        %v2650 = vsel %vm1749, %v2465, 0
        %2652 = vmatprep.subr.bf16.mxu0 0
        %2653 = vmatpush1.bf16.msra.mxu0 %v837
        %2654 = vmatprep.subr.bf16.mxu0 0
        %2655 = vmatpush1.bf16.msra.mxu0 %v839
        %2656 = vmatprep.subr.bf16.mxu0 0
        %2657 = vmatpush1.bf16.msra.mxu0 %v841
        %2658 = vmatprep.subr.bf16.mxu0 0
        %2659 = vmatpush1.bf16.msra.mxu0 %v843
        %2660 = vmatprep.subr.bf16.mxu0 0
        %2661 = vmatpush1.bf16.msra.mxu0 0
        %2662 = vmatprep.subr.bf16.mxu0 0
        %2663 = vmatpush1.bf16.msra.mxu0 0
        %2664 = vmatprep.subr.bf16.mxu0 0
        %2665 = vmatpush1.bf16.msra.mxu0 0
        %2666 = vmatprep.subr.bf16.mxu0 0
        %2667 = vmatpush1.bf16.msra.mxu0 0
        %2668 = vmatprep.subr.bf16.mxu0 0
        %2669 = vmatpush1.bf16.msra.mxu0 0
        %2670 = vmatprep.subr.bf16.mxu0 0
        %2671 = vmatpush1.bf16.msra.mxu0 0
        %2672 = vmatprep.subr.bf16.mxu0 0
        %2673 = vmatpush1.bf16.msra.mxu0 0
        %2674 = vmatprep.subr.bf16.mxu0 0
        %2675 = vmatpush1.bf16.msra.mxu0 0
        %2676 = vmatprep.subr.bf16.mxu0 0
        %2677 = vmatpush1.bf16.msra.mxu0 0
        %2678 = vmatprep.subr.bf16.mxu0 0
        %2679 = vmatpush1.bf16.msra.mxu0 0
        %2680 = vmatprep.subr.bf16.mxu0 0
        %2681 = vmatpush1.bf16.msra.mxu0 0
        %2682 = vmatprep.subr.bf16.mxu0 0
        %2683 = vmatpush1.bf16.msra.mxu0 0
        %2684 = vmatprep.mubr.bf16.mxu0 0
        %2685 = vmatmul.mubr.bf16.gmra.mrb[0].mxu0 %v2641
        %v2686 = vpop.f32.mrb[0].mxu0
        %v2687 = vadd.f32 0.0, %v2686
        %v2688 = vpop.f32.mrb[0].mxu0
        %v2689 = vpop.f32.mrb[0].mxu0
        %v2690 = vadd.f32 0.0, %v2689
        %v2691 = vpop.f32.mrb[0].mxu0
        %2692 = vmatprep.mubr.bf16.mxu0 0
        %2693 = vmatmul.mubr.bf16.gmra.mrb[0].mxu0 %v2644
        %v2694 = vpop.f32.mrb[0].mxu0
        %v2695 = vadd.f32 0.0, %v2694
        %v2696 = vpop.f32.mrb[0].mxu0
        %v2697 = vpop.f32.mrb[0].mxu0
        %v2698 = vadd.f32 0.0, %v2697
        %v2699 = vpop.f32.mrb[0].mxu0
        %2700 = vmatprep.mubr.bf16.mxu0 0
        %2701 = vmatmul.mubr.bf16.gmra.mrb[0].mxu0 %v2647
        %v2702 = vpop.f32.mrb[0].mxu0
        %v2703 = vadd.f32 0.0, %v2702
        %v2704 = vpop.f32.mrb[0].mxu0
        %v2705 = vpop.f32.mrb[0].mxu0
        %v2706 = vadd.f32 0.0, %v2705
        %v2707 = vpop.f32.mrb[0].mxu0
        %2708 = vmatprep.mubr.bf16.mxu0 0
        %2709 = vmatmul.mubr.bf16.gmra.mrb[0].mxu0 %v2650
        %v2710 = vpop.f32.mrb[0].mxu0
        %v2711 = vadd.f32 0.0, %v2710
        %v2712 = vpop.f32.mrb[0].mxu0
        %v2713 = vpop.f32.mrb[0].mxu0
        %v2714 = vadd.f32 0.0, %v2713
        %v2715 = vpop.f32.mrb[0].mxu0
        %2716 = vdwg.mxu0
        %v2718 = vsel %vm1749, %v2466, 0
        %v2721 = vsel %vm1749, %v2467, 0
        %v2724 = vsel %vm1749, %v2468, 0
        %v2727 = vsel %vm1749, %v2469, 0
        %2729 = vmatprep.subr.bf16.mxu0 0
        %2730 = vmatpush1.bf16.msra.mxu0 %v849
        %2731 = vmatprep.subr.bf16.mxu0 0
        %2732 = vmatpush1.bf16.msra.mxu0 %v851
        %2733 = vmatprep.subr.bf16.mxu0 0
        %2734 = vmatpush1.bf16.msra.mxu0 %v853
        %2735 = vmatprep.subr.bf16.mxu0 0
        %2736 = vmatpush1.bf16.msra.mxu0 %v855
        %2737 = vmatprep.subr.bf16.mxu0 0
        %2738 = vmatpush1.bf16.msra.mxu0 0
        %2739 = vmatprep.subr.bf16.mxu0 0
        %2740 = vmatpush1.bf16.msra.mxu0 0
        %2741 = vmatprep.subr.bf16.mxu0 0
        %2742 = vmatpush1.bf16.msra.mxu0 0
        %2743 = vmatprep.subr.bf16.mxu0 0
        %2744 = vmatpush1.bf16.msra.mxu0 0
        %2745 = vmatprep.subr.bf16.mxu0 0
        %2746 = vmatpush1.bf16.msra.mxu0 0
        %2747 = vmatprep.subr.bf16.mxu0 0
        %2748 = vmatpush1.bf16.msra.mxu0 0
        %2749 = vmatprep.subr.bf16.mxu0 0
        %2750 = vmatpush1.bf16.msra.mxu0 0
        %2751 = vmatprep.subr.bf16.mxu0 0
        %2752 = vmatpush1.bf16.msra.mxu0 0
        %2753 = vmatprep.subr.bf16.mxu0 0
        %2754 = vmatpush1.bf16.msra.mxu0 0
        %2755 = vmatprep.subr.bf16.mxu0 0
        %2756 = vmatpush1.bf16.msra.mxu0 0
        %2757 = vmatprep.subr.bf16.mxu0 0
        %2758 = vmatpush1.bf16.msra.mxu0 0
        %2759 = vmatprep.subr.bf16.mxu0 0
        %2760 = vmatpush1.bf16.msra.mxu0 0
        %2761 = vmatprep.mubr.bf16.mxu0 0
        %2762 = vmatmul.mubr.bf16.gmra.mrb[0].mxu0 %v2718
        %v2763 = vpop.f32.mrb[0].mxu0
        %v2764 = vadd.f32 0.0, %v2763
        %v2765 = vpop.f32.mrb[0].mxu0
        %v2766 = vpop.f32.mrb[0].mxu0
        %v2767 = vadd.f32 0.0, %v2766
        %v2768 = vpop.f32.mrb[0].mxu0
        %2769 = vmatprep.mubr.bf16.mxu0 0
        %2770 = vmatmul.mubr.bf16.gmra.mrb[0].mxu0 %v2721
        %v2771 = vpop.f32.mrb[0].mxu0
        %v2772 = vadd.f32 0.0, %v2771
        %v2773 = vpop.f32.mrb[0].mxu0
        %v2774 = vpop.f32.mrb[0].mxu0
        %v2775 = vadd.f32 0.0, %v2774
        %v2776 = vpop.f32.mrb[0].mxu0
        %2777 = vmatprep.mubr.bf16.mxu0 0
        %2778 = vmatmul.mubr.bf16.gmra.mrb[0].mxu0 %v2724
        %v2779 = vpop.f32.mrb[0].mxu0
        %v2780 = vadd.f32 0.0, %v2779
        %v2781 = vpop.f32.mrb[0].mxu0
        %v2782 = vpop.f32.mrb[0].mxu0
        %v2783 = vadd.f32 0.0, %v2782
        %v2784 = vpop.f32.mrb[0].mxu0
        %2785 = vmatprep.mubr.bf16.mxu0 0
        %2786 = vmatmul.mubr.bf16.gmra.mrb[0].mxu0 %v2727
        %v2787 = vpop.f32.mrb[0].mxu0
        %v2788 = vadd.f32 0.0, %v2787
        %v2789 = vpop.f32.mrb[0].mxu0
        %v2790 = vpop.f32.mrb[0].mxu0
        %v2791 = vadd.f32 0.0, %v2790
        %v2792 = vpop.f32.mrb[0].mxu0
        %2793 = vdwg.mxu0
        %v2795 = vsel %vm1749, %v2470, 0
        %v2798 = vsel %vm1749, %v2471, 0
        %v2801 = vsel %vm1749, %v2472, 0
        %v2804 = vsel %vm1749, %v2473, 0
        %2806 = vmatprep.subr.bf16.mxu0 0
        %2807 = vmatpush1.bf16.msra.mxu0 %v861
        %2808 = vmatprep.subr.bf16.mxu0 0
        %2809 = vmatpush1.bf16.msra.mxu0 %v863
        %2810 = vmatprep.subr.bf16.mxu0 0
        %2811 = vmatpush1.bf16.msra.mxu0 %v865
        %2812 = vmatprep.subr.bf16.mxu0 0
        %2813 = vmatpush1.bf16.msra.mxu0 %v867
        %2814 = vmatprep.subr.bf16.mxu0 0
        %2815 = vmatpush1.bf16.msra.mxu0 0
        %2816 = vmatprep.subr.bf16.mxu0 0
        %2817 = vmatpush1.bf16.msra.mxu0 0
        %2818 = vmatprep.subr.bf16.mxu0 0
        %2819 = vmatpush1.bf16.msra.mxu0 0
        %2820 = vmatprep.subr.bf16.mxu0 0
        %2821 = vmatpush1.bf16.msra.mxu0 0
        %2822 = vmatprep.subr.bf16.mxu0 0
        %2823 = vmatpush1.bf16.msra.mxu0 0
        %2824 = vmatprep.subr.bf16.mxu0 0
        %2825 = vmatpush1.bf16.msra.mxu0 0
        %2826 = vmatprep.subr.bf16.mxu0 0
        %2827 = vmatpush1.bf16.msra.mxu0 0
        %2828 = vmatprep.subr.bf16.mxu0 0
        %2829 = vmatpush1.bf16.msra.mxu0 0
        %2830 = vmatprep.subr.bf16.mxu0 0
        %2831 = vmatpush1.bf16.msra.mxu0 0
        %2832 = vmatprep.subr.bf16.mxu0 0
        %2833 = vmatpush1.bf16.msra.mxu0 0
        %2834 = vmatprep.subr.bf16.mxu0 0
        %2835 = vmatpush1.bf16.msra.mxu0 0
        %2836 = vmatprep.subr.bf16.mxu0 0
        %2837 = vmatpush1.bf16.msra.mxu0 0
        %2838 = vmatprep.mubr.bf16.mxu0 0
        %2839 = vmatmul.mubr.bf16.gmra.mrb[0].mxu0 %v2795
        %v2840 = vpop.f32.mrb[0].mxu0
        %v2841 = vadd.f32 0.0, %v2840
        %v2842 = vpop.f32.mrb[0].mxu0
        %v2843 = vpop.f32.mrb[0].mxu0
        %v2844 = vadd.f32 0.0, %v2843
        %v2845 = vpop.f32.mrb[0].mxu0
        %2846 = vmatprep.mubr.bf16.mxu0 0
        %2847 = vmatmul.mubr.bf16.gmra.mrb[0].mxu0 %v2798
        %v2848 = vpop.f32.mrb[0].mxu0
        %v2849 = vadd.f32 0.0, %v2848
        %v2850 = vpop.f32.mrb[0].mxu0
        %v2851 = vpop.f32.mrb[0].mxu0
        %v2852 = vadd.f32 0.0, %v2851
        %v2853 = vpop.f32.mrb[0].mxu0
        %2854 = vmatprep.mubr.bf16.mxu0 0
        %2855 = vmatmul.mubr.bf16.gmra.mrb[0].mxu0 %v2801
        %v2856 = vpop.f32.mrb[0].mxu0
        %v2857 = vadd.f32 0.0, %v2856
        %v2858 = vpop.f32.mrb[0].mxu0
        %v2859 = vpop.f32.mrb[0].mxu0
        %v2860 = vadd.f32 0.0, %v2859
        %v2861 = vpop.f32.mrb[0].mxu0
        %2862 = vmatprep.mubr.bf16.mxu0 0
        %2863 = vmatmul.mubr.bf16.gmra.mrb[0].mxu0 %v2804
        %v2864 = vpop.f32.mrb[0].mxu0
        %v2865 = vadd.f32 0.0, %v2864
        %v2866 = vpop.f32.mrb[0].mxu0
        %v2867 = vpop.f32.mrb[0].mxu0
        %v2868 = vadd.f32 0.0, %v2867
        %v2869 = vpop.f32.mrb[0].mxu0
        %2870 = vdwg.mxu0
        %v2872 = vsel %vm1749, %v2474, 0
        %v2875 = vsel %vm1749, %v2475, 0
        %v2878 = vsel %vm1749, %v2476, 0
        %v2881 = vsel %vm1749, %v2477, 0
        %2883 = vmatprep.subr.bf16.mxu0 0
        %2884 = vmatpush1.bf16.msra.mxu0 %v873
        %2885 = vmatprep.subr.bf16.mxu0 0
        %2886 = vmatpush1.bf16.msra.mxu0 %v875
        %2887 = vmatprep.subr.bf16.mxu0 0
        %2888 = vmatpush1.bf16.msra.mxu0 %v877
        %2889 = vmatprep.subr.bf16.mxu0 0
        %2890 = vmatpush1.bf16.msra.mxu0 %v879
        %2891 = vmatprep.subr.bf16.mxu0 0
        %2892 = vmatpush1.bf16.msra.mxu0 0
        %2893 = vmatprep.subr.bf16.mxu0 0
        %2894 = vmatpush1.bf16.msra.mxu0 0
        %2895 = vmatprep.subr.bf16.mxu0 0
        %2896 = vmatpush1.bf16.msra.mxu0 0
        %2897 = vmatprep.subr.bf16.mxu0 0
        %2898 = vmatpush1.bf16.msra.mxu0 0
        %2899 = vmatprep.subr.bf16.mxu0 0
        %2900 = vmatpush1.bf16.msra.mxu0 0
        %2901 = vmatprep.subr.bf16.mxu0 0
        %2902 = vmatpush1.bf16.msra.mxu0 0
        %2903 = vmatprep.subr.bf16.mxu0 0
        %2904 = vmatpush1.bf16.msra.mxu0 0
        %2905 = vmatprep.subr.bf16.mxu0 0
        %2906 = vmatpush1.bf16.msra.mxu0 0
        %2907 = vmatprep.subr.bf16.mxu0 0
        %2908 = vmatpush1.bf16.msra.mxu0 0
        %2909 = vmatprep.subr.bf16.mxu0 0
        %2910 = vmatpush1.bf16.msra.mxu0 0
        %2911 = vmatprep.subr.bf16.mxu0 0
        %2912 = vmatpush1.bf16.msra.mxu0 0
        %2913 = vmatprep.subr.bf16.mxu0 0
        %2914 = vmatpush1.bf16.msra.mxu0 0
        %2915 = vmatprep.mubr.bf16.mxu0 0
        %2916 = vmatmul.mubr.bf16.gmra.mrb[0].mxu0 %v2872
        %v2917 = vpop.f32.mrb[0].mxu0
        %v2918 = vadd.f32 0.0, %v2917
        %v2919 = vpop.f32.mrb[0].mxu0
        %v2920 = vpop.f32.mrb[0].mxu0
        %v2921 = vadd.f32 0.0, %v2920
        %v2922 = vpop.f32.mrb[0].mxu0
        %2923 = vmatprep.mubr.bf16.mxu0 0
        %2924 = vmatmul.mubr.bf16.gmra.mrb[0].mxu0 %v2875
        %v2925 = vpop.f32.mrb[0].mxu0
        %v2926 = vadd.f32 0.0, %v2925
        %v2927 = vpop.f32.mrb[0].mxu0
        %v2928 = vpop.f32.mrb[0].mxu0
        %v2929 = vadd.f32 0.0, %v2928
        %v2930 = vpop.f32.mrb[0].mxu0
        %2931 = vmatprep.mubr.bf16.mxu0 0
        %2932 = vmatmul.mubr.bf16.gmra.mrb[0].mxu0 %v2878
        %v2933 = vpop.f32.mrb[0].mxu0
        %v2934 = vadd.f32 0.0, %v2933
        %v2935 = vpop.f32.mrb[0].mxu0
        %v2936 = vpop.f32.mrb[0].mxu0
        %v2937 = vadd.f32 0.0, %v2936
        %v2938 = vpop.f32.mrb[0].mxu0
        %2939 = vmatprep.mubr.bf16.mxu0 0
        %2940 = vmatmul.mubr.bf16.gmra.mrb[0].mxu0 %v2881
        %v2941 = vpop.f32.mrb[0].mxu0
        %v2942 = vadd.f32 0.0, %v2941
        %v2943 = vpop.f32.mrb[0].mxu0
        %v2944 = vpop.f32.mrb[0].mxu0
        %v2945 = vadd.f32 0.0, %v2944
        %v2946 = vpop.f32.mrb[0].mxu0
        %2947 = vdwg.mxu0
        %v2949 = vsel %vm1749, %v2478, 0
        %v2952 = vsel %vm1749, %v2479, 0
        %v2955 = vsel %vm1749, %v2480, 0
        %v2958 = vsel %vm1749, %v2481, 0
        %2960 = vmatprep.subr.bf16.mxu0 0
        %2961 = vmatpush1.bf16.msra.mxu0 %v885
        %2962 = vmatprep.subr.bf16.mxu0 0
        %2963 = vmatpush1.bf16.msra.mxu0 %v887
        %2964 = vmatprep.subr.bf16.mxu0 0
        %2965 = vmatpush1.bf16.msra.mxu0 %v889
        %2966 = vmatprep.subr.bf16.mxu0 0
        %2967 = vmatpush1.bf16.msra.mxu0 %v891
        %2968 = vmatprep.subr.bf16.mxu0 0
        %2969 = vmatpush1.bf16.msra.mxu0 0
        %2970 = vmatprep.subr.bf16.mxu0 0
        %2971 = vmatpush1.bf16.msra.mxu0 0
        %2972 = vmatprep.subr.bf16.mxu0 0
        %2973 = vmatpush1.bf16.msra.mxu0 0
        %2974 = vmatprep.subr.bf16.mxu0 0
        %2975 = vmatpush1.bf16.msra.mxu0 0
        %2976 = vmatprep.subr.bf16.mxu0 0
        %2977 = vmatpush1.bf16.msra.mxu0 0
        %2978 = vmatprep.subr.bf16.mxu0 0
        %2979 = vmatpush1.bf16.msra.mxu0 0
        %2980 = vmatprep.subr.bf16.mxu0 0
        %2981 = vmatpush1.bf16.msra.mxu0 0
        %2982 = vmatprep.subr.bf16.mxu0 0
        %2983 = vmatpush1.bf16.msra.mxu0 0
        %2984 = vmatprep.subr.bf16.mxu0 0
        %2985 = vmatpush1.bf16.msra.mxu0 0
        %2986 = vmatprep.subr.bf16.mxu0 0
        %2987 = vmatpush1.bf16.msra.mxu0 0
        %2988 = vmatprep.subr.bf16.mxu0 0
        %2989 = vmatpush1.bf16.msra.mxu0 0
        %2990 = vmatprep.subr.bf16.mxu0 0
        %2991 = vmatpush1.bf16.msra.mxu0 0
        %2992 = vmatprep.mubr.bf16.mxu0 0
        %2993 = vmatmul.mubr.bf16.gmra.mrb[0].mxu0 %v2949
        %v2994 = vpop.f32.mrb[0].mxu0
        %v2995 = vadd.f32 0.0, %v2994
        %v2996 = vpop.f32.mrb[0].mxu0
        %v2997 = vpop.f32.mrb[0].mxu0
        %v2998 = vadd.f32 0.0, %v2997
        %v2999 = vpop.f32.mrb[0].mxu0
        %3000 = vmatprep.mubr.bf16.mxu0 0
        %3001 = vmatmul.mubr.bf16.gmra.mrb[0].mxu0 %v2952
        %v3002 = vpop.f32.mrb[0].mxu0
        %v3003 = vadd.f32 0.0, %v3002
        %v3004 = vpop.f32.mrb[0].mxu0
        %v3005 = vpop.f32.mrb[0].mxu0
        %v3006 = vadd.f32 0.0, %v3005
        %v3007 = vpop.f32.mrb[0].mxu0
        %3008 = vmatprep.mubr.bf16.mxu0 0
        %3009 = vmatmul.mubr.bf16.gmra.mrb[0].mxu0 %v2955
        %v3010 = vpop.f32.mrb[0].mxu0
        %v3011 = vadd.f32 0.0, %v3010
        %v3012 = vpop.f32.mrb[0].mxu0
        %v3013 = vpop.f32.mrb[0].mxu0
        %v3014 = vadd.f32 0.0, %v3013
        %v3015 = vpop.f32.mrb[0].mxu0
        %3016 = vmatprep.mubr.bf16.mxu0 0
        %3017 = vmatmul.mubr.bf16.gmra.mrb[0].mxu0 %v2958
        %v3018 = vpop.f32.mrb[0].mxu0
        %v3019 = vadd.f32 0.0, %v3018
        %v3020 = vpop.f32.mrb[0].mxu0
        %v3021 = vpop.f32.mrb[0].mxu0
        %v3022 = vadd.f32 0.0, %v3021
        %v3023 = vpop.f32.mrb[0].mxu0
        %3024 = vdwg.mxu0
        %v3026 = vsel %vm1749, %v2482, 0
        %v3029 = vsel %vm1749, %v2483, 0
        %v3032 = vsel %vm1749, %v2484, 0
        %v3035 = vsel %vm1749, %v2485, 0
        %3037 = vmatprep.subr.bf16.mxu0 0
        %3038 = vmatpush1.bf16.msra.mxu0 %v897
        %3039 = vmatprep.subr.bf16.mxu0 0
        %3040 = vmatpush1.bf16.msra.mxu0 %v899
        %3041 = vmatprep.subr.bf16.mxu0 0
        %3042 = vmatpush1.bf16.msra.mxu0 %v901
        %3043 = vmatprep.subr.bf16.mxu0 0
        %3044 = vmatpush1.bf16.msra.mxu0 %v903
        %3045 = vmatprep.subr.bf16.mxu0 0
        %3046 = vmatpush1.bf16.msra.mxu0 0
        %3047 = vmatprep.subr.bf16.mxu0 0
        %3048 = vmatpush1.bf16.msra.mxu0 0
        %3049 = vmatprep.subr.bf16.mxu0 0
        %3050 = vmatpush1.bf16.msra.mxu0 0
        %3051 = vmatprep.subr.bf16.mxu0 0
        %3052 = vmatpush1.bf16.msra.mxu0 0
        %3053 = vmatprep.subr.bf16.mxu0 0
        %3054 = vmatpush1.bf16.msra.mxu0 0
        %3055 = vmatprep.subr.bf16.mxu0 0
        %3056 = vmatpush1.bf16.msra.mxu0 0
        %3057 = vmatprep.subr.bf16.mxu0 0
        %3058 = vmatpush1.bf16.msra.mxu0 0
        %3059 = vmatprep.subr.bf16.mxu0 0
        %3060 = vmatpush1.bf16.msra.mxu0 0
        %3061 = vmatprep.subr.bf16.mxu0 0
        %3062 = vmatpush1.bf16.msra.mxu0 0
        %3063 = vmatprep.subr.bf16.mxu0 0
        %3064 = vmatpush1.bf16.msra.mxu0 0
        %3065 = vmatprep.subr.bf16.mxu0 0
        %3066 = vmatpush1.bf16.msra.mxu0 0
        %3067 = vmatprep.subr.bf16.mxu0 0
        %3068 = vmatpush1.bf16.msra.mxu0 0
        %3069 = vmatprep.mubr.bf16.mxu0 0
        %3070 = vmatmul.mubr.bf16.gmra.mrb[0].mxu0 %v3026
        %v3071 = vpop.f32.mrb[0].mxu0
        %v3072 = vadd.f32 0.0, %v3071
        %v3073 = vpop.f32.mrb[0].mxu0
        %v3074 = vpop.f32.mrb[0].mxu0
        %v3075 = vadd.f32 0.0, %v3074
        %v3076 = vpop.f32.mrb[0].mxu0
        %3077 = vmatprep.mubr.bf16.mxu0 0
        %3078 = vmatmul.mubr.bf16.gmra.mrb[0].mxu0 %v3029
        %v3079 = vpop.f32.mrb[0].mxu0
        %v3080 = vadd.f32 0.0, %v3079
        %v3081 = vpop.f32.mrb[0].mxu0
        %v3082 = vpop.f32.mrb[0].mxu0
        %v3083 = vadd.f32 0.0, %v3082
        %v3084 = vpop.f32.mrb[0].mxu0
        %3085 = vmatprep.mubr.bf16.mxu0 0
        %3086 = vmatmul.mubr.bf16.gmra.mrb[0].mxu0 %v3032
        %v3087 = vpop.f32.mrb[0].mxu0
        %v3088 = vadd.f32 0.0, %v3087
        %v3089 = vpop.f32.mrb[0].mxu0
        %v3090 = vpop.f32.mrb[0].mxu0
        %v3091 = vadd.f32 0.0, %v3090
        %v3092 = vpop.f32.mrb[0].mxu0
        %3093 = vmatprep.mubr.bf16.mxu0 0
        %3094 = vmatmul.mubr.bf16.gmra.mrb[0].mxu0 %v3035
        %v3095 = vpop.f32.mrb[0].mxu0
        %v3096 = vadd.f32 0.0, %v3095
        %v3097 = vpop.f32.mrb[0].mxu0
        %v3098 = vpop.f32.mrb[0].mxu0
        %v3099 = vadd.f32 0.0, %v3098
        %v3100 = vpop.f32.mrb[0].mxu0
        %3101 = vdwg.mxu0
        %3110 = vrot.lane.b32.xlu0 %v2610, 16
        %v3111 = vpop.permute.xlu0 %3110
        %3112 = vrot.lane.b32.xlu0 %v2613, 16
        %v3113 = vpop.permute.xlu0 %3112
        %3114 = vrot.lane.b32.xlu0 %v2618, 16
        %v3115 = vpop.permute.xlu0 %3114
        %3116 = vrot.lane.b32.xlu0 %v2621, 16
        %v3117 = vpop.permute.xlu0 %3116
        %3118 = vrot.lane.b32.xlu0 %v2626, 16
        %v3119 = vpop.permute.xlu0 %3118
        %3120 = vrot.lane.b32.xlu0 %v2629, 16
        %v3121 = vpop.permute.xlu0 %3120
        %3122 = vrot.lane.b32.xlu0 %v2634, 16
        %v3123 = vpop.permute.xlu0 %3122
        %3124 = vrot.lane.b32.xlu0 %v2637, 16
        %v3125 = vpop.permute.xlu0 %3124
        %3142 = vrot.lane.b32.xlu0 %v2687, 32
        %v3143 = vpop.permute.xlu0 %3142
        %3144 = vrot.lane.b32.xlu0 %v2690, 32
        %v3145 = vpop.permute.xlu0 %3144
        %3146 = vrot.lane.b32.xlu0 %v2695, 32
        %v3147 = vpop.permute.xlu0 %3146
        %3148 = vrot.lane.b32.xlu0 %v2698, 32
        %v3149 = vpop.permute.xlu0 %3148
        %3150 = vrot.lane.b32.xlu0 %v2703, 32
        %v3151 = vpop.permute.xlu0 %3150
        %3152 = vrot.lane.b32.xlu0 %v2706, 32
        %v3153 = vpop.permute.xlu0 %3152
        %3154 = vrot.lane.b32.xlu0 %v2711, 32
        %v3155 = vpop.permute.xlu0 %3154
        %3156 = vrot.lane.b32.xlu0 %v2714, 32
        %v3157 = vpop.permute.xlu0 %3156
        %3174 = vrot.lane.b32.xlu0 %v2764, 48
        %v3175 = vpop.permute.xlu0 %3174
        %3176 = vrot.lane.b32.xlu0 %v2767, 48
        %v3177 = vpop.permute.xlu0 %3176
        %3178 = vrot.lane.b32.xlu0 %v2772, 48
        %v3179 = vpop.permute.xlu0 %3178
        %3180 = vrot.lane.b32.xlu0 %v2775, 48
        %v3181 = vpop.permute.xlu0 %3180
        %3182 = vrot.lane.b32.xlu0 %v2780, 48
        %v3183 = vpop.permute.xlu0 %3182
        %3184 = vrot.lane.b32.xlu0 %v2783, 48
        %v3185 = vpop.permute.xlu0 %3184
        %3186 = vrot.lane.b32.xlu0 %v2788, 48
        %v3187 = vpop.permute.xlu0 %3186
        %3188 = vrot.lane.b32.xlu0 %v2791, 48
        %v3189 = vpop.permute.xlu0 %3188
        %3206 = vrot.lane.b32.xlu0 %v2841, 64
        %v3207 = vpop.permute.xlu0 %3206
        %3208 = vrot.lane.b32.xlu0 %v2844, 64
        %v3209 = vpop.permute.xlu0 %3208
        %3210 = vrot.lane.b32.xlu0 %v2849, 64
        %v3211 = vpop.permute.xlu0 %3210
        %3212 = vrot.lane.b32.xlu0 %v2852, 64
        %v3213 = vpop.permute.xlu0 %3212
        %3214 = vrot.lane.b32.xlu0 %v2857, 64
        %v3215 = vpop.permute.xlu0 %3214
        %3216 = vrot.lane.b32.xlu0 %v2860, 64
        %v3217 = vpop.permute.xlu0 %3216
        %3218 = vrot.lane.b32.xlu0 %v2865, 64
        %v3219 = vpop.permute.xlu0 %3218
        %3220 = vrot.lane.b32.xlu0 %v2868, 64
        %v3221 = vpop.permute.xlu0 %3220
        %3238 = vrot.lane.b32.xlu0 %v2918, 80
        %v3239 = vpop.permute.xlu0 %3238
        %3240 = vrot.lane.b32.xlu0 %v2921, 80
        %v3241 = vpop.permute.xlu0 %3240
        %3242 = vrot.lane.b32.xlu0 %v2926, 80
        %v3243 = vpop.permute.xlu0 %3242
        %3244 = vrot.lane.b32.xlu0 %v2929, 80
        %v3245 = vpop.permute.xlu0 %3244
        %3246 = vrot.lane.b32.xlu0 %v2934, 80
        %v3247 = vpop.permute.xlu0 %3246
        %3248 = vrot.lane.b32.xlu0 %v2937, 80
        %v3249 = vpop.permute.xlu0 %3248
        %3250 = vrot.lane.b32.xlu0 %v2942, 80
        %v3251 = vpop.permute.xlu0 %3250
        %3252 = vrot.lane.b32.xlu0 %v2945, 80
        %v3253 = vpop.permute.xlu0 %3252
        %3270 = vrot.lane.b32.xlu0 %v2995, 96
        %v3271 = vpop.permute.xlu0 %3270
        %3272 = vrot.lane.b32.xlu0 %v2998, 96
        %v3273 = vpop.permute.xlu0 %3272
        %3274 = vrot.lane.b32.xlu0 %v3003, 96
        %v3275 = vpop.permute.xlu0 %3274
        %3276 = vrot.lane.b32.xlu0 %v3006, 96
        %v3277 = vpop.permute.xlu0 %3276
        %3278 = vrot.lane.b32.xlu0 %v3011, 96
        %v3279 = vpop.permute.xlu0 %3278
        %3280 = vrot.lane.b32.xlu0 %v3014, 96
        %v3281 = vpop.permute.xlu0 %3280
        %3282 = vrot.lane.b32.xlu0 %v3019, 96
        %v3283 = vpop.permute.xlu0 %3282
        %3284 = vrot.lane.b32.xlu0 %v3022, 96
        %v3285 = vpop.permute.xlu0 %3284
        %3302 = vrot.lane.b32.xlu0 %v3072, 112
        %v3303 = vpop.permute.xlu0 %3302
        %3304 = vrot.lane.b32.xlu0 %v3075, 112
        %v3305 = vpop.permute.xlu0 %3304
        %3306 = vrot.lane.b32.xlu0 %v3080, 112
        %v3307 = vpop.permute.xlu0 %3306
        %3308 = vrot.lane.b32.xlu0 %v3083, 112
        %v3309 = vpop.permute.xlu0 %3308
        %3310 = vrot.lane.b32.xlu0 %v3088, 112
        %v3311 = vpop.permute.xlu0 %3310
        %3312 = vrot.lane.b32.xlu0 %v3091, 112
        %v3313 = vpop.permute.xlu0 %3312
        %3314 = vrot.lane.b32.xlu0 %v3096, 112
        %v3315 = vpop.permute.xlu0 %3314
        %3316 = vrot.lane.b32.xlu0 %v3099, 112
        %v3317 = vpop.permute.xlu0 %3316
        %v3326 = vsel %vm1036, %v2533, %v3111
        %v3327 = vsel %vm1036, %v2536, %v3113
        %v3328 = vsel %vm1036, %v2541, %v3115
        %v3329 = vsel %vm1036, %v2544, %v3117
        %v3330 = vsel %vm1036, %v2549, %v3119
        %v3331 = vsel %vm1036, %v2552, %v3121
        %v3332 = vsel %vm1036, %v2557, %v3123
        %v3333 = vsel %vm1036, %v2560, %v3125
        %vm3334 = vcmask 261120
        %v3335 = vsel %vm3334, %v3326, %v3143
        %v3336 = vsel %vm3334, %v3327, %v3145
        %v3337 = vsel %vm3334, %v3328, %v3147
        %v3338 = vsel %vm3334, %v3329, %v3149
        %v3339 = vsel %vm3334, %v3330, %v3151
        %v3340 = vsel %vm3334, %v3331, %v3153
        %v3341 = vsel %vm3334, %v3332, %v3155
        %v3342 = vsel %vm3334, %v3333, %v3157
        %vm3343 = vcmask 392192
        %v3344 = vsel %vm3343, %v3335, %v3175
        %v3345 = vsel %vm3343, %v3336, %v3177
        %v3346 = vsel %vm3343, %v3337, %v3179
        %v3347 = vsel %vm3343, %v3338, %v3181
        %v3348 = vsel %vm3343, %v3339, %v3183
        %v3349 = vsel %vm3343, %v3340, %v3185
        %v3350 = vsel %vm3343, %v3341, %v3187
        %v3351 = vsel %vm3343, %v3342, %v3189
        %v3352 = vsel %vm1749, %v3344, %v3207
        %v3353 = vsel %vm1749, %v3345, %v3209
        %v3354 = vsel %vm1749, %v3346, %v3211
        %v3355 = vsel %vm1749, %v3347, %v3213
        %v3356 = vsel %vm1749, %v3348, %v3215
        %v3357 = vsel %vm1749, %v3349, %v3217
        %v3358 = vsel %vm1749, %v3350, %v3219
        %v3359 = vsel %vm1749, %v3351, %v3221
        %vm3360 = vcmask 654336
        %v3361 = vsel %vm3360, %v3352, %v3239
        %v3362 = vsel %vm3360, %v3353, %v3241
        %v3363 = vsel %vm3360, %v3354, %v3243
        %v3364 = vsel %vm3360, %v3355, %v3245
        %v3365 = vsel %vm3360, %v3356, %v3247
        %v3366 = vsel %vm3360, %v3357, %v3249
        %v3367 = vsel %vm3360, %v3358, %v3251
        %v3368 = vsel %vm3360, %v3359, %v3253
        %vm3369 = vcmask 785408
        %v3370 = vsel %vm3369, %v3361, %v3271
        %v3371 = vsel %vm3369, %v3362, %v3273
        %v3372 = vsel %vm3369, %v3363, %v3275
        %v3373 = vsel %vm3369, %v3364, %v3277
        %v3374 = vsel %vm3369, %v3365, %v3279
        %v3375 = vsel %vm3369, %v3366, %v3281
        %v3376 = vsel %vm3369, %v3367, %v3283
        %v3377 = vsel %vm3369, %v3368, %v3285
        %vm3378 = vcmask 916480
        %v3379 = vsel %vm3378, %v3370, %v3303
        %v3380 = vsel %vm3378, %v3371, %v3305
        %v3381 = vsel %vm3378, %v3372, %v3307
        %v3382 = vsel %vm3378, %v3373, %v3309
        %v3383 = vsel %vm3378, %v3374, %v3311
        %v3384 = vsel %vm3378, %v3375, %v3313
        %v3385 = vsel %vm3378, %v3376, %v3315
        %v3386 = vsel %vm3378, %v3377, %v3317
        %v3387 = vpack.c.bf16 %v3380, %v3379
        %v3388 = vpack.c.bf16 %v3382, %v3381
        %v3389 = vpack.c.bf16 %v3384, %v3383
        %v3390 = vpack.c.bf16 %v3386, %v3385
        %v3391 = vld [vmem:[#allocation7] sm:$0xf]
        %v3392 = vld [vmem:[#allocation7 + $0x4] sm:$0xf]
        %v3393 = vld [vmem:[#allocation7 + $0x8] sm:$0xf]
        %v3394 = vld [vmem:[#allocation7 + $0xc] sm:$0xf]
        %v3395 = vld [vmem:[#allocation7 + $0x10] sm:$0xf]
        %v3396 = vld [vmem:[#allocation7 + $0x14] sm:$0xf]
        %v3397 = vld [vmem:[#allocation7 + $0x18] sm:$0xf]
        %v3398 = vld [vmem:[#allocation7 + $0x1c] sm:$0xf]
        %v3399 = vld [vmem:[#allocation7 + $0x20] sm:$0xf]
        %v3400 = vld [vmem:[#allocation7 + $0x24] sm:$0xf]
        %v3401 = vld [vmem:[#allocation7 + $0x28] sm:$0xf]
        %v3402 = vld [vmem:[#allocation7 + $0x2c] sm:$0xf]
        %v3403 = vld [vmem:[#allocation7 + $0x30] sm:$0xf]
        %v3404 = vld [vmem:[#allocation7 + $0x34] sm:$0xf]
        %v3405 = vld [vmem:[#allocation7 + $0x38] sm:$0xf]
        %v3406 = vld [vmem:[#allocation7 + $0x3c] sm:$0xf]
        %v3407 = vld [vmem:[%s4] sm:$0x1]
        %v3409 = vlaneseq
        %v3410 = vshrl.u32 %v3409, 7
        %v3411 = vsub.s32 0, %v3410
        %v3412 = vrot.slane %v3407, %v3411
        %v3430 = vunpack.c.l.b16 %v3391
        %v3431 = vunpack.c.l.b16 %v3392
        %v3432 = vunpack.c.l.b16 %v3393
        %v3433 = vunpack.c.l.b16 %v3394
        %v3434 = vunpack.c.l.b16 %v3395
        %v3435 = vunpack.c.l.b16 %v3396
        %v3436 = vunpack.c.l.b16 %v3397
        %v3437 = vunpack.c.l.b16 %v3398
        %v3438 = vunpack.c.l.b16 %v3399
        %v3439 = vunpack.c.l.b16 %v3400
        %v3440 = vunpack.c.l.b16 %v3401
        %v3441 = vunpack.c.l.b16 %v3402
        %v3442 = vunpack.c.l.b16 %v3403
        %v3443 = vunpack.c.l.b16 %v3404
        %v3444 = vunpack.c.l.b16 %v3405
        %v3445 = vunpack.c.l.b16 %v3406
        %v3446 = vpack.c.b16 %v3431, %v3430
        %v3447 = vpack.c.b16 %v3433, %v3432
        %v3448 = vpack.c.b16 %v3435, %v3434
        %v3449 = vpack.c.b16 %v3437, %v3436
        %v3450 = vpack.c.b16 %v3439, %v3438
        %v3451 = vpack.c.b16 %v3441, %v3440
        %v3452 = vpack.c.b16 %v3443, %v3442
        %v3453 = vpack.c.b16 %v3445, %v3444
        %3462 = vmatprep.subr.bf16.mxu0 0
        %3463 = vmatpush1.bf16.msra.mxu0 %v3446
        %3464 = vmatprep.subr.bf16.mxu0 0
        %3465 = vmatpush1.bf16.msra.mxu0 %v3447
        %3466 = vmatprep.subr.bf16.mxu0 0
        %3467 = vmatpush1.bf16.msra.mxu0 %v3448
        %3468 = vmatprep.subr.bf16.mxu0 0
        %3469 = vmatpush1.bf16.msra.mxu0 %v3449
        %3470 = vmatprep.subr.bf16.mxu0 0
        %3471 = vmatpush1.bf16.msra.mxu0 %v3450
        %3472 = vmatprep.subr.bf16.mxu0 0
        %3473 = vmatpush1.bf16.msra.mxu0 %v3451
        %3474 = vmatprep.subr.bf16.mxu0 0
        %3475 = vmatpush1.bf16.msra.mxu0 %v3452
        %3476 = vmatprep.subr.bf16.mxu0 0
        %3477 = vmatpush1.bf16.msra.mxu0 %v3453
        %3478 = vmatprep.subr.bf16.mxu0 0
        %3479 = vmatpush1.bf16.msra.mxu0 0
        %3480 = vmatprep.subr.bf16.mxu0 0
        %3481 = vmatpush1.bf16.msra.mxu0 0
        %3482 = vmatprep.subr.bf16.mxu0 0
        %3483 = vmatpush1.bf16.msra.mxu0 0
        %3484 = vmatprep.subr.bf16.mxu0 0
        %3485 = vmatpush1.bf16.msra.mxu0 0
        %3486 = vmatprep.subr.bf16.mxu0 0
        %3487 = vmatpush1.bf16.msra.mxu0 0
        %3488 = vmatprep.subr.bf16.mxu0 0
        %3489 = vmatpush1.bf16.msra.mxu0 0
        %3490 = vmatprep.subr.bf16.mxu0 0
        %3491 = vmatpush1.bf16.msra.mxu0 0
        %3492 = vmatprep.subr.bf16.mxu0 0
        %3493 = vmatpush1.bf16.msra.mxu0 0
        %3494 = vmatprep.mubr.bf16.mxu0 0
        %3495 = vmatmul.mubr.bf16.gmra.mrb[0].mxu0 %v3387
        %v3496 = vpop.f32.mrb[0].mxu0
        %v3497 = vadd.f32 %v3412, %v3496
        %v3498 = vpop.f32.mrb[0].mxu0
        %v3499 = vpop.f32.mrb[0].mxu0
        %v3500 = vadd.f32 %v3412, %v3499
        %v3501 = vpop.f32.mrb[0].mxu0
        %3502 = vmatprep.mubr.bf16.mxu0 0
        %3503 = vmatmul.mubr.bf16.gmra.mrb[0].mxu0 %v3388
        %v3504 = vpop.f32.mrb[0].mxu0
        %v3505 = vadd.f32 %v3412, %v3504
        %v3506 = vpop.f32.mrb[0].mxu0
        %v3507 = vpop.f32.mrb[0].mxu0
        %v3508 = vadd.f32 %v3412, %v3507
        %v3509 = vpop.f32.mrb[0].mxu0
        %3510 = vmatprep.mubr.bf16.mxu0 0
        %3511 = vmatmul.mubr.bf16.gmra.mrb[0].mxu0 %v3389
        %v3512 = vpop.f32.mrb[0].mxu0
        %v3513 = vadd.f32 %v3412, %v3512
        %v3514 = vpop.f32.mrb[0].mxu0
        %v3515 = vpop.f32.mrb[0].mxu0
        %v3516 = vadd.f32 %v3412, %v3515
        %v3517 = vpop.f32.mrb[0].mxu0
        %3518 = vmatprep.mubr.bf16.mxu0 0
        %3519 = vmatmul.mubr.bf16.gmra.mrb[0].mxu0 %v3390
        %v3520 = vpop.f32.mrb[0].mxu0
        %v3521 = vadd.f32 %v3412, %v3520
        %v3522 = vpop.f32.mrb[0].mxu0
        %v3523 = vpop.f32.mrb[0].mxu0
        %v3524 = vadd.f32 %v3412, %v3523
        %v3525 = vpop.f32.mrb[0].mxu0
        %3526 = vdwg.mxu0
        %3527 = vst [vmem:[%s339] sm:$0xff] %v3497
        %3528 = vst [vmem:[%s339 + $0x8] sm:$0xff] %v3500
        %3529 = vst [vmem:[%s339 + $0x10] sm:$0xff] %v3505
        %3530 = vst [vmem:[%s339 + $0x18] sm:$0xff] %v3508
        %3531 = vst [vmem:[%s339 + $0x20] sm:$0xff] %v3513
        %3532 = vst [vmem:[%s339 + $0x28] sm:$0xff] %v3516
        %3533 = vst [vmem:[%s339 + $0x30] sm:$0xff] %v3521
        %3534 = vst [vmem:[%s339 + $0x38] sm:$0xff] %v3524
        %s3535 = sand.u32 %s185, 1
        %s3536 = scalar_lea.sflag [#allocation4], %s3535
        %s3537 = sand.u32 %s185, 1
        %s3538 = smul.addr %s3537, 64
        %s3539 = scalar_lea.vmem [#allocation10], %s3538
        // Predicated region
        $region61: #{tpu_custom_call.1} parent=43 // pred_check
          %p3540 = pneg %p195
        $region62: #{tpu_custom_call.1} parent=43 // pred_check_branch
          %3542 = sbr.rel (%p3540) target = $region64
        $region63: #{tpu_custom_call.1} parent=43 // pred_region
          %s3544 = ssub.s32 1024, 1024
          %3545 = vsyncadd %s3536, %s3544
          %s3546 = smul.addr %s30, 8
          %s3547 = smul.addr %s29, 8
          %s3548 = sadd.s32 %s3546, %s3547
          %s3549 = smul.addr %s3548, 128
          %s3550 = scalar_lea.hbm %s6, %s3549
          %s3551 = sshll.u32 %s3539, 4
          %s3552 = int_to_ptr.vmem [resolvable:$true] %s3551
          %3557 = dma.vmem_to_hbm [thread:$0]  %s3552, 1024, %s3550, %s3536, 128, 128, 8
        $region64: #{tpu_custom_call.1} parent=43 // pred_fallthru
          _
      $region44: #{tpu_custom_call.1} parent=5 // pred_fallthru
        _
      %p3558 = scmp.le.s32.totalorder 2, %s20
      // Predicated region
      $region65: #{tpu_custom_call.1} parent=5 // pred_check
        %p3559 = pneg %p3558
      $region66: #{tpu_custom_call.1} parent=5 // pred_check_branch
        %3561 = sbr.rel (%p3559) target = $region68
      $region67: #{tpu_custom_call.1} parent=5 // pred_region
        %s3562 = ssub.s32 %s20, 2
        // Predicated region
        $region69: #{tpu_custom_call.1} parent=67 // pred_check
          %p3563 = pneg %p201
        $region70: #{tpu_custom_call.1} parent=67 // pred_check_branch
          %3565 = sbr.rel (%p3563) target = $region72
        $region71: #{tpu_custom_call.1} parent=67 // pred_region
          %s3566 = sand.u32 %s186, 1
          %s3567 = scalar_lea.sflag [#allocation4], %s3566
          %s3568 = sand.u32 %s186, 1
          %s3569 = smul.addr %s3568, 64
          %s3570 = scalar_lea.vmem [#allocation10], %s3569
          %3571 = dma.done %s3567, 1024
        $region72: #{tpu_custom_call.1} parent=67 // pred_fallthru
          _
      $region68: #{tpu_custom_call.1} parent=5 // pred_fallthru
        _
    $region6: #{tpu_custom_call.1} parent=1 // loop_footer
      %s24 = sadd.s32 1, %s20
    $region7: #{tpu_custom_call.1} parent=1 // loop_footer_branch
      %19 = sbr.rel target = $region3
    $region8: #{tpu_custom_call.1} parent=1 // loop_exit
      _
    %3572 = vsyncpa [#allocation3], 1
    %s3573 = scalar_lea.sflag [#allocation3], 1
    %3574 = vsyncpa %s3573, 1
    %3575 = vsyncpa [#allocation6], 1
    %3576 = vsyncpa [#allocation9], 1
    %3577 = vsyncpa [#allocation4], 1
    %s3578 = scalar_lea.sflag [#allocation4], 1
    %3579 = vsyncpa %s3578, 1

</llo_original>
